<compile_context>
chip_gen: v6e
topology: v6e:2x2x1
jax: 0.10.0
libtpu: 0.0.40
codegen_flags: <defaults>
</compile_context>

<pallas_src>
import jax
import jax.numpy as jnp
from jax.experimental import pallas as pl
from jax.experimental.pallas import tpu as pltpu


# ----------------------------------------------------------------------------
# Wrapper-side weight preprocessing (pure XLA, tiny, done once per call)
# ----------------------------------------------------------------------------
def _conv_band(w, b, w_in, w_out):
    """Banded matrices for conv-as-matmul.

    w: PyTorch OIHW layout (Cout, Cin, KH, KW).
    Returns band (KH, W_in*Cin, W_out*Cout) and bias row (1, W_out*Cout) such
    that  preact = sum_di  X[rows shifted by di] @ band[di] + bias
    with input columns ordered (w*Cin + ci) and output columns (j*Cout + co).
    """
    c_out, c_in, kh, kw = w.shape
    m = jnp.arange(w_in * c_in)
    wpos, ci = m // c_in, m % c_in
    n = jnp.arange(w_out * c_out)
    j, co = n // c_out, n % c_out
    dj = wpos[:, None] - j[None, :]                      # (M, Ncol)
    valid = (dj >= 0) & (dj < kw)
    djc = jnp.clip(dj, 0, kw - 1)
    di = jnp.arange(kh)[:, None, None]                   # (KH, 1, 1)
    band = jnp.where(valid[None],
                     w[co[None, None, :], ci[None, :, None], di, djc[None]],
                     0.0)                                 # (KH, M, Ncol)
    bias_row = jnp.tile(b, w_out)[None, :]                # (1, Ncol)
    return band.astype(jnp.float32), bias_row.astype(jnp.float32)


def _pool_mats(h_in, w_in, c):
    """Matrices for 2x2/stride-2 average pooling: out = Ph @ A @ Pw."""
    h_out, w_out = h_in // 2, w_in // 2
    ph = 0.5 * (jnp.arange(h_in)[None, :] // 2 ==
                jnp.arange(h_out)[:, None]).astype(jnp.float32)       # (Hout, Hin)
    m = jnp.arange(w_in * c)
    jm, cm = m // c, m % c
    n = jnp.arange(w_out * c)
    pn, cn = n // c, n % c
    pw = 0.5 * ((jm[:, None] // 2 == pn[None, :]) &
                (cm[:, None] == cn[None, :])).astype(jnp.float32)     # (Win*C, Wout*C)
    return ph, pw


# ----------------------------------------------------------------------------
# Fused Pallas kernel: conv1 -> sigmoid -> pool1 -> conv2 -> sigmoid -> pool2
#                      -> fc1 -> sigmoid -> fc2 -> sigmoid -> fc3
# The whole image tile is processed with batched 2-D matmuls.
# ----------------------------------------------------------------------------
def _lenet_kernel(x_ref, c1w_ref, c1b_ref, p1h_ref, p1w_ref,
                  c2w_ref, c2b_ref, p2h_ref, p2w_ref,
                  f1w_ref, f1b_ref, f2w_ref, f2b_ref, f3w_ref, f3b_ref,
                  out_ref,
                  acc1, acc2, r1s, stg2, r2s, fcin):
    def mm(a, b):
        return jnp.dot(a, b, preferred_element_type=jnp.float32)

    def sigmoid(z):
        # exp + reciprocal on the EUP -> VALU slots stay free.
        return pl.reciprocal(1.0 + jnp.exp(-z), approx=True)

    bt = out_ref.shape[0]                  # images per grid step
    kh1 = c1w_ref.shape[0]
    kh2 = c2w_ref.shape[0]
    hq1 = r1s.shape[0] // bt               # pool1 output rows per image
    h2 = stg2.shape[0] // bt               # conv2 output rows per image
    hq2 = r2s.shape[0] // bt               # pool2 output rows per image
    wc2 = r2s.shape[1]                     # wq2 * c2out lanes per row

    # ---- conv1: the wrapper pre-stacked all KH taps row-wise across the tile,
    #      so each tap is one (bt*H1, Win*Cin) @ (Win*Cin, W1*C1) matmul.
    acc1[...] = mm(x_ref[0], c1w_ref[0])
    for di in range(1, kh1):
        acc1[...] += mm(x_ref[di], c1w_ref[di])
    a1 = sigmoid(acc1[...] + c1b_ref[...])                 # (bt*28, 28*6)

    # ---- pool1: block-diag row pooling, then (W,C)-interleaved column pooling
    r1s[...] = mm(mm(p1h_ref[...], a1), p1w_ref[...])      # (bt*14, 14*6)

    # ---- conv2: stage per-image row windows (cheap VMEM copies, static
    #      offsets), then one batched matmul per kernel-row tap.
    for di in range(kh2):
        for b in range(bt):
            stg2[pl.ds(b * h2, h2), :] = r1s[pl.ds(b * hq1 + di, h2), :]
        if di == 0:
            acc2[...] = mm(stg2[...], c2w_ref[0])
        else:
            acc2[...] += mm(stg2[...], c2w_ref[di])
    a2 = sigmoid(acc2[...] + c2b_ref[...])                 # (bt*10, 10*16)

    # ---- pool2
    r2s[...] = mm(mm(p2h_ref[...], a2), p2w_ref[...])      # (bt*5, 5*16)

    # ---- flatten each image to one 400-wide row (fc1 weights are
    #      pre-permuted in the wrapper to match this "kernel order").
    for b in range(bt):
        for i in range(hq2):
            fcin[pl.ds(b, 1), pl.ds(i * wc2, wc2)] = r2s[pl.ds(b * hq2 + i, 1), :]

    # ---- batched fully-connected stack (M = bt)
    h3 = sigmoid(mm(fcin[...], f1w_ref[...]) + f1b_ref[...])   # (bt, 120)
    h4 = sigmoid(mm(h3, f2w_ref[...]) + f2b_ref[...])          # (bt, 84)
    out_ref[...] = mm(h4, f3w_ref[...]) + f3b_ref[...]         # (bt, 128) lane-dense


# ----------------------------------------------------------------------------
# Forward pass (PyTorch-layout params, NCHW input)
# ----------------------------------------------------------------------------
_IMAGES_PER_PROGRAM = 8


def lenet_forward(params, x_nchw):
    n, c_in, h, w = x_nchw.shape
    w1, b1 = params["w1"], params["b1"]          # (6, Cin, 5, 5), (6,)
    w2, b2 = params["w2"], params["b2"]          # (16, 6, 5, 5), (16,)
    wf1, bf1 = params["wf1"], params["bf1"]      # (120, 400), (120,)
    wf2, bf2 = params["wf2"], params["bf2"]      # (84, 120), (84,)
    wf3, bf3 = params["wf3"], params["bf3"]      # (nc, 84), (nc,)

    c1o, _, kh1, kw1 = w1.shape
    c2o, _, kh2, kw2 = w2.shape
    num_classes = wf3.shape[0]

    pad = 2
    hp, wp = h + 2 * pad, w + 2 * pad
    h1o, w1o = hp - kh1 + 1, wp - kw1 + 1        # conv1 out (28, 28)
    assert h1o % 2 == 0 and w1o % 2 == 0
    hq1, wq1 = h1o // 2, w1o // 2                # pool1 (14, 14)
    h2o, w2o = hq1 - kh2 + 1, wq1 - kw2 + 1      # conv2 out (10, 10)
    assert h2o % 2 == 0 and w2o % 2 == 0
    hq2, wq2 = h2o // 2, w2o // 2                # pool2 (5, 5)
    assert wf1.shape[1] == hq2 * wq2 * c2o
    out_lanes = ((num_classes + 127) // 128) * 128

    bt = min(_IMAGES_PER_PROGRAM, n)             # images per grid step
    n_pad = n + (-n) % bt
    grid = (n_pad // bt,)

    # --- input: NCHW -> padded (N, Hp, Wp*Cin) with channels fastest in lanes,
    #     then unfold the KH conv1 taps so each grid step reads row-stacked
    #     2-D slabs and the kernel needs zero staging for conv1.
    xi = jnp.transpose(x_nchw.astype(jnp.float32), (0, 2, 3, 1))
    xi = jnp.pad(xi, ((0, n_pad - n), (pad, pad), (pad, pad), (0, 0)))
    xi = xi.reshape(n_pad, hp, wp * c_in)
    x_taps = jnp.stack([xi[:, di:di + h1o, :] for di in range(kh1)], axis=0)
    x_taps = x_taps.reshape(kh1, n_pad * h1o, wp * c_in)

    # --- preprocess weights into banded / pooling / permuted matrices
    c1w, c1b = _conv_band(w1, b1, wp, w1o)
    p1h, p1w = _pool_mats(h1o, w1o, c1o)
    p1h = jnp.kron(jnp.eye(bt, dtype=jnp.float32), p1h)   # block-diag over tile
    c2w, c2b = _conv_band(w2, b2, wq1, w2o)
    p2h, p2w = _pool_mats(h2o, w2o, c2o)
    p2h = jnp.kron(jnp.eye(bt, dtype=jnp.float32), p2h)

    # fc1: permute PyTorch's NCHW-flatten order into the kernel's (i, j, c) order
    g = jnp.arange(hq2 * wq2 * c2o)
    gi, rem = g // (wq2 * c2o), g % (wq2 * c2o)
    gj, gc = rem // c2o, rem % c2o
    t = gc * (hq2 * wq2) + gi * wq2 + gj
    f1w = wf1[:, t].T.astype(jnp.float32)                 # (400, 120)
    f1b = bf1[None, :].astype(jnp.float32)
    f2w = wf2.T.astype(jnp.float32)
    f2b = bf2[None, :].astype(jnp.float32)
    f3w = jnp.zeros((wf3.shape[1], out_lanes), jnp.float32).at[:, :num_classes].set(wf3.T)
    f3b = jnp.zeros((1, out_lanes), jnp.float32).at[:, :num_classes].set(bf3)

    def resident(arr):
        nd = arr.ndim
        return pl.BlockSpec(arr.shape, lambda i, nd=nd: (0,) * nd)

    operands = (x_taps, c1w, c1b, p1h, p1w, c2w, c2b, p2h, p2w,
                f1w, f1b, f2w, f2b, f3w, f3b)
    in_specs = [pl.BlockSpec((kh1, bt * h1o, wp * c_in), lambda i: (0, i, 0))]
    in_specs += [resident(op) for op in operands[1:]]

    scratch_shapes = [
        pltpu.VMEM((bt * h1o, w1o * c1o), jnp.float32),   # acc1 (conv1 pre-act)
        pltpu.VMEM((bt * h2o, w2o * c2o), jnp.float32),   # acc2 (conv2 pre-act)
        pltpu.VMEM((bt * hq1, wq1 * c1o), jnp.float32),   # r1s  (pool1 out)
        pltpu.VMEM((bt * h2o, wq1 * c1o), jnp.float32),   # stg2 (conv2 row windows)
        pltpu.VMEM((bt * hq2, wq2 * c2o), jnp.float32),   # r2s  (pool2 out)
        pltpu.VMEM((bt, hq2 * wq2 * c2o), jnp.float32),   # fcin (flattened rows)
    ]

    out = pl.pallas_call(
        _lenet_kernel,
        grid=grid,
        in_specs=in_specs,
        out_specs=pl.BlockSpec((bt, out_lanes), lambda i: (i, 0)),
        out_shape=jax.ShapeDtypeStruct((n_pad, out_lanes), jnp.float32),
        scratch_shapes=scratch_shapes,
        compiler_params=pltpu.CompilerParams(
            dimension_semantics=("parallel",)),
    )(*operands)
    return out[:n, :num_classes]


# ----------------------------------------------------------------------------
# Parameters (PyTorch layouts) and a pure-JAX reference for validation
# ----------------------------------------------------------------------------
def init_params(key, in_channels=1, num_classes=10):
    fc_in = 16 * 5 * 5
    ks = jax.random.split(key, 10)
    s = 0.1
    return {
        "w1": s * jax.random.normal(ks[0], (6, in_channels, 5, 5), jnp.float32),
        "b1": s * jax.random.normal(ks[1], (6,), jnp.float32),
        "w2": s * jax.random.normal(ks[2], (16, 6, 5, 5), jnp.float32),
        "b2": s * jax.random.normal(ks[3], (16,), jnp.float32),
        "wf1": s * jax.random.normal(ks[4], (120, fc_in), jnp.float32),
        "bf1": s * jax.random.normal(ks[5], (120,), jnp.float32),
        "wf2": s * jax.random.normal(ks[6], (84, 120), jnp.float32),
        "bf2": s * jax.random.normal(ks[7], (84,), jnp.float32),
        "wf3": s * jax.random.normal(ks[8], (num_classes, 84), jnp.float32),
        "bf3": s * jax.random.normal(ks[9], (num_classes,), jnp.float32),
    }


def lenet_reference(params, x_nchw):
    x = x_nchw.astype(jnp.float32)

    def conv(x, wt, b, padding):
        y = jax.lax.conv_general_dilated(
            x, wt, window_strides=(1, 1),
            padding=[(padding, padding), (padding, padding)],
            dimension_numbers=("NCHW", "OIHW", "NCHW"))
        return y + b[None, :, None, None]

    def avgpool(x):
        nn, cc, hh, ww = x.shape
        return x.reshape(nn, cc, hh // 2, 2, ww // 2, 2).mean(axis=(3, 5))

    x = jax.nn.sigmoid(conv(x, params["w1"], params["b1"], 2))
    x = avgpool(x)
    x = jax.nn.sigmoid(conv(x, params["w2"], params["b2"], 0))
    x = avgpool(x)
    x = x.reshape(x.shape[0], -1)
    x = jax.nn.sigmoid(x @ params["wf1"].T + params["bf1"])
    x = jax.nn.sigmoid(x @ params["wf2"].T + params["bf2"])
    return x @ params["wf3"].T + params["bf3"]


if __name__ == "__main__":
    key = jax.random.PRNGKey(0)
    pkey, xkey = jax.random.split(key)
    params = init_params(pkey, in_channels=1, num_classes=10)
    x = jax.random.normal(xkey, (2, 1, 28, 28), jnp.float32)   # NCHW like PyTorch

    out = jax.jit(lenet_forward)(params, x)
    out = jax.block_until_ready(out)
    assert out.shape == (2, 10), out.shape
    assert bool(jnp.all(jnp.isfinite(out)))

    ref = lenet_reference(params, x)
    max_err = float(jnp.max(jnp.abs(out - ref)))
    # approx reciprocal in the sigmoid => loose-but-meaningful tolerance
    assert max_err < 5e-2, f"mismatch vs reference, max abs err = {max_err}"
    print("KERNEL_OK")
</pallas_src>

<mosaic_0001>
module attributes {stable_mosaic.version = 11 : i64} {
  func.func @_lenet_kernel(%arg0: i32, %arg1: memref<5x56x32xf32, #tpu.memory_space<vmem>>, %arg2: memref<5x32x168xf32, #tpu.memory_space<vmem>>, %arg3: memref<1x168xf32, #tpu.memory_space<vmem>>, %arg4: memref<28x56xf32, #tpu.memory_space<vmem>>, %arg5: memref<168x84xf32, #tpu.memory_space<vmem>>, %arg6: memref<5x84x160xf32, #tpu.memory_space<vmem>>, %arg7: memref<1x160xf32, #tpu.memory_space<vmem>>, %arg8: memref<10x20xf32, #tpu.memory_space<vmem>>, %arg9: memref<160x80xf32, #tpu.memory_space<vmem>>, %arg10: memref<400x120xf32, #tpu.memory_space<vmem>>, %arg11: memref<1x120xf32, #tpu.memory_space<vmem>>, %arg12: memref<120x84xf32, #tpu.memory_space<vmem>>, %arg13: memref<1x84xf32, #tpu.memory_space<vmem>>, %arg14: memref<84x128xf32, #tpu.memory_space<vmem>>, %arg15: memref<1x128xf32, #tpu.memory_space<vmem>>, %arg16: memref<2x128xf32, #tpu.memory_space<vmem>>, %arg17: memref<56x168xf32, #tpu.memory_space<vmem>>, %arg18: memref<20x160xf32, #tpu.memory_space<vmem>>, %arg19: memref<28x84xf32, #tpu.memory_space<vmem>>, %arg20: memref<20x84xf32, #tpu.memory_space<vmem>>, %arg21: memref<10x80xf32, #tpu.memory_space<vmem>>, %arg22: memref<2x400xf32, #tpu.memory_space<vmem>>) attributes {dimension_semantics = [#tpu.dimension_semantics<parallel>], iteration_bounds = array<i64: 1>, scalar_prefetch = 0 : i64, scratch_operands = 6 : i64, tpu.core_type = #tpu.core_type<tc>, window_params = [{transform_indices = @transform_0, window_bounds = array<i64: 5, 56, 32>}, {pipeline_mode = #tpu.pipeline_mode<synchronous>, transform_indices = @transform_1, window_bounds = array<i64: 5, 32, 168>}, {pipeline_mode = #tpu.pipeline_mode<synchronous>, transform_indices = @transform_2, window_bounds = array<i64: 1, 168>}, {pipeline_mode = #tpu.pipeline_mode<synchronous>, transform_indices = @transform_3, window_bounds = array<i64: 28, 56>}, {pipeline_mode = #tpu.pipeline_mode<synchronous>, transform_indices = @transform_4, window_bounds = array<i64: 168, 84>}, {pipeline_mode = #tpu.pipeline_mode<synchronous>, transform_indices = @transform_5, window_bounds = array<i64: 5, 84, 160>}, {pipeline_mode = #tpu.pipeline_mode<synchronous>, transform_indices = @transform_6, window_bounds = array<i64: 1, 160>}, {pipeline_mode = #tpu.pipeline_mode<synchronous>, transform_indices = @transform_7, window_bounds = array<i64: 10, 20>}, {pipeline_mode = #tpu.pipeline_mode<synchronous>, transform_indices = @transform_8, window_bounds = array<i64: 160, 80>}, {pipeline_mode = #tpu.pipeline_mode<synchronous>, transform_indices = @transform_9, window_bounds = array<i64: 400, 120>}, {pipeline_mode = #tpu.pipeline_mode<synchronous>, transform_indices = @transform_10, window_bounds = array<i64: 1, 120>}, {pipeline_mode = #tpu.pipeline_mode<synchronous>, transform_indices = @transform_11, window_bounds = array<i64: 120, 84>}, {pipeline_mode = #tpu.pipeline_mode<synchronous>, transform_indices = @transform_12, window_bounds = array<i64: 1, 84>}, {pipeline_mode = #tpu.pipeline_mode<synchronous>, transform_indices = @transform_13, window_bounds = array<i64: 84, 128>}, {pipeline_mode = #tpu.pipeline_mode<synchronous>, transform_indices = @transform_14, window_bounds = array<i64: 1, 128>}, {transform_indices = @transform_15, window_bounds = array<i64: 2, 128>}]} {
    %c0 = arith.constant 0 : index
    %c0_0 = arith.constant 0 : index
    %c0_1 = arith.constant 0 : index
    %0 = vector.load %arg1[%c0, %c0_0, %c0_1] : memref<5x56x32xf32, #tpu.memory_space<vmem>>, vector<1x56x32xf32>
    %1 = vector.shape_cast %0 : vector<1x56x32xf32> to vector<56x32xf32>
    %c0_2 = arith.constant 0 : index
    %c0_3 = arith.constant 0 : index
    %c0_4 = arith.constant 0 : index
    %2 = vector.load %arg2[%c0_2, %c0_3, %c0_4] : memref<5x32x168xf32, #tpu.memory_space<vmem>>, vector<1x32x168xf32>
    %3 = vector.shape_cast %2 : vector<1x32x168xf32> to vector<32x168xf32>
    %cst = arith.constant dense<0.000000e+00> : vector<56x168xf32>
    %4 = tpu.matmul %1, %3, %cst {dimension_numbers = #tpu.dot_dimension_numbers<[1], [0], [0], [1], [0, 0, 1, 1], [], []>} : vector<56x32xf32>, vector<32x168xf32>, vector<56x168xf32> -> vector<56x168xf32>
    %c0_5 = arith.constant 0 : index
    %c0_6 = arith.constant 0 : index
    %5 = vector.load %arg17[%c0_5, %c0_6] : memref<56x168xf32, #tpu.memory_space<vmem>>, vector<56x168xf32>
    tpu.vector_store %arg17[%c0_5, %c0_6], %4 {strides = array<i32>} : memref<56x168xf32, #tpu.memory_space<vmem>>, vector<56x168xf32>,
    %c0_7 = arith.constant 0 : index
    %c0_8 = arith.constant 0 : index
    %6 = vector.load %arg17[%c0_7, %c0_8] : memref<56x168xf32, #tpu.memory_space<vmem>>, vector<56x168xf32>
    %c1 = arith.constant 1 : index
    %c0_9 = arith.constant 0 : index
    %c0_10 = arith.constant 0 : index
    %7 = vector.load %arg1[%c1, %c0_9, %c0_10] : memref<5x56x32xf32, #tpu.memory_space<vmem>>, vector<1x56x32xf32>
    %8 = vector.shape_cast %7 : vector<1x56x32xf32> to vector<56x32xf32>
    %c1_11 = arith.constant 1 : index
    %c0_12 = arith.constant 0 : index
    %c0_13 = arith.constant 0 : index
    %9 = vector.load %arg2[%c1_11, %c0_12, %c0_13] : memref<5x32x168xf32, #tpu.memory_space<vmem>>, vector<1x32x168xf32>
    %10 = vector.shape_cast %9 : vector<1x32x168xf32> to vector<32x168xf32>
    %cst_14 = arith.constant dense<0.000000e+00> : vector<56x168xf32>
    %11 = tpu.matmul %8, %10, %cst_14 {dimension_numbers = #tpu.dot_dimension_numbers<[1], [0], [0], [1], [0, 0, 1, 1], [], []>} : vector<56x32xf32>, vector<32x168xf32>, vector<56x168xf32> -> vector<56x168xf32>
    %12 = arith.addf %6, %11 : vector<56x168xf32>
    %c0_15 = arith.constant 0 : index
    %c0_16 = arith.constant 0 : index
    %13 = vector.load %arg17[%c0_15, %c0_16] : memref<56x168xf32, #tpu.memory_space<vmem>>, vector<56x168xf32>
    tpu.vector_store %arg17[%c0_15, %c0_16], %12 {strides = array<i32>} : memref<56x168xf32, #tpu.memory_space<vmem>>, vector<56x168xf32>,
    %c0_17 = arith.constant 0 : index
    %c0_18 = arith.constant 0 : index
    %14 = vector.load %arg17[%c0_17, %c0_18] : memref<56x168xf32, #tpu.memory_space<vmem>>, vector<56x168xf32>
    %c2 = arith.constant 2 : index
    %c0_19 = arith.constant 0 : index
    %c0_20 = arith.constant 0 : index
    %15 = vector.load %arg1[%c2, %c0_19, %c0_20] : memref<5x56x32xf32, #tpu.memory_space<vmem>>, vector<1x56x32xf32>
    %16 = vector.shape_cast %15 : vector<1x56x32xf32> to vector<56x32xf32>
    %c2_21 = arith.constant 2 : index
    %c0_22 = arith.constant 0 : index
    %c0_23 = arith.constant 0 : index
    %17 = vector.load %arg2[%c2_21, %c0_22, %c0_23] : memref<5x32x168xf32, #tpu.memory_space<vmem>>, vector<1x32x168xf32>
    %18 = vector.shape_cast %17 : vector<1x32x168xf32> to vector<32x168xf32>
    %cst_24 = arith.constant dense<0.000000e+00> : vector<56x168xf32>
    %19 = tpu.matmul %16, %18, %cst_24 {dimension_numbers = #tpu.dot_dimension_numbers<[1], [0], [0], [1], [0, 0, 1, 1], [], []>} : vector<56x32xf32>, vector<32x168xf32>, vector<56x168xf32> -> vector<56x168xf32>
    %20 = arith.addf %14, %19 : vector<56x168xf32>
    %c0_25 = arith.constant 0 : index
    %c0_26 = arith.constant 0 : index
    %21 = vector.load %arg17[%c0_25, %c0_26] : memref<56x168xf32, #tpu.memory_space<vmem>>, vector<56x168xf32>
    tpu.vector_store %arg17[%c0_25, %c0_26], %20 {strides = array<i32>} : memref<56x168xf32, #tpu.memory_space<vmem>>, vector<56x168xf32>,
    %c0_27 = arith.constant 0 : index
    %c0_28 = arith.constant 0 : index
    %22 = vector.load %arg17[%c0_27, %c0_28] : memref<56x168xf32, #tpu.memory_space<vmem>>, vector<56x168xf32>
    %c3 = arith.constant 3 : index
    %c0_29 = arith.constant 0 : index
    %c0_30 = arith.constant 0 : index
    %23 = vector.load %arg1[%c3, %c0_29, %c0_30] : memref<5x56x32xf32, #tpu.memory_space<vmem>>, vector<1x56x32xf32>
    %24 = vector.shape_cast %23 : vector<1x56x32xf32> to vector<56x32xf32>
    %c3_31 = arith.constant 3 : index
    %c0_32 = arith.constant 0 : index
    %c0_33 = arith.constant 0 : index
    %25 = vector.load %arg2[%c3_31, %c0_32, %c0_33] : memref<5x32x168xf32, #tpu.memory_space<vmem>>, vector<1x32x168xf32>
    %26 = vector.shape_cast %25 : vector<1x32x168xf32> to vector<32x168xf32>
    %cst_34 = arith.constant dense<0.000000e+00> : vector<56x168xf32>
    %27 = tpu.matmul %24, %26, %cst_34 {dimension_numbers = #tpu.dot_dimension_numbers<[1], [0], [0], [1], [0, 0, 1, 1], [], []>} : vector<56x32xf32>, vector<32x168xf32>, vector<56x168xf32> -> vector<56x168xf32>
    %28 = arith.addf %22, %27 : vector<56x168xf32>
    %c0_35 = arith.constant 0 : index
    %c0_36 = arith.constant 0 : index
    %29 = vector.load %arg17[%c0_35, %c0_36] : memref<56x168xf32, #tpu.memory_space<vmem>>, vector<56x168xf32>
    tpu.vector_store %arg17[%c0_35, %c0_36], %28 {strides = array<i32>} : memref<56x168xf32, #tpu.memory_space<vmem>>, vector<56x168xf32>,
    %c0_37 = arith.constant 0 : index
    %c0_38 = arith.constant 0 : index
    %30 = vector.load %arg17[%c0_37, %c0_38] : memref<56x168xf32, #tpu.memory_space<vmem>>, vector<56x168xf32>
    %c4 = arith.constant 4 : index
    %c0_39 = arith.constant 0 : index
    %c0_40 = arith.constant 0 : index
    %31 = vector.load %arg1[%c4, %c0_39, %c0_40] : memref<5x56x32xf32, #tpu.memory_space<vmem>>, vector<1x56x32xf32>
    %32 = vector.shape_cast %31 : vector<1x56x32xf32> to vector<56x32xf32>
    %c4_41 = arith.constant 4 : index
    %c0_42 = arith.constant 0 : index
    %c0_43 = arith.constant 0 : index
    %33 = vector.load %arg2[%c4_41, %c0_42, %c0_43] : memref<5x32x168xf32, #tpu.memory_space<vmem>>, vector<1x32x168xf32>
    %34 = vector.shape_cast %33 : vector<1x32x168xf32> to vector<32x168xf32>
    %cst_44 = arith.constant dense<0.000000e+00> : vector<56x168xf32>
    %35 = tpu.matmul %32, %34, %cst_44 {dimension_numbers = #tpu.dot_dimension_numbers<[1], [0], [0], [1], [0, 0, 1, 1], [], []>} : vector<56x32xf32>, vector<32x168xf32>, vector<56x168xf32> -> vector<56x168xf32>
    %36 = arith.addf %30, %35 : vector<56x168xf32>
    %c0_45 = arith.constant 0 : index
    %c0_46 = arith.constant 0 : index
    %37 = vector.load %arg17[%c0_45, %c0_46] : memref<56x168xf32, #tpu.memory_space<vmem>>, vector<56x168xf32>
    tpu.vector_store %arg17[%c0_45, %c0_46], %36 {strides = array<i32>} : memref<56x168xf32, #tpu.memory_space<vmem>>, vector<56x168xf32>,
    %c0_47 = arith.constant 0 : index
    %c0_48 = arith.constant 0 : index
    %38 = vector.load %arg17[%c0_47, %c0_48] : memref<56x168xf32, #tpu.memory_space<vmem>>, vector<56x168xf32>
    %c0_49 = arith.constant 0 : index
    %c0_50 = arith.constant 0 : index
    %39 = vector.load %arg3[%c0_49, %c0_50] : memref<1x168xf32, #tpu.memory_space<vmem>>, vector<1x168xf32>
    %40 = vector.broadcast %39 : vector<1x168xf32> to vector<56x168xf32>
    %41 = arith.addf %38, %40 : vector<56x168xf32>
    %cst_51 = arith.constant 0.000000e+00 : f32
    %42 = vector.broadcast %cst_51 : f32 to vector<56x168xf32>
    %43 = arith.subf %42, %41 : vector<56x168xf32>
    %44 = math.exp %43 : vector<56x168xf32>
    %cst_52 = arith.constant 1.000000e+00 : f32
    %45 = vector.broadcast %cst_52 : f32 to vector<56x168xf32>
    %46 = arith.addf %45, %44 : vector<56x168xf32>
    %47 = tpu.reciprocal %46 {approx = true} : vector<56x168xf32> -> vector<56x168xf32>
    %c0_53 = arith.constant 0 : index
    %c0_54 = arith.constant 0 : index
    %48 = vector.load %arg4[%c0_53, %c0_54] : memref<28x56xf32, #tpu.memory_space<vmem>>, vector<28x56xf32>
    %cst_55 = arith.constant dense<0.000000e+00> : vector<28x168xf32>
    %49 = tpu.matmul %48, %47, %cst_55 {dimension_numbers = #tpu.dot_dimension_numbers<[1], [0], [0], [1], [0, 0, 1, 1], [], []>} : vector<28x56xf32>, vector<56x168xf32>, vector<28x168xf32> -> vector<28x168xf32>
    %c0_56 = arith.constant 0 : index
    %c0_57 = arith.constant 0 : index
    %50 = vector.load %arg5[%c0_56, %c0_57] : memref<168x84xf32, #tpu.memory_space<vmem>>, vector<168x84xf32>
    %cst_58 = arith.constant dense<0.000000e+00> : vector<28x84xf32>
    %51 = tpu.matmul %49, %50, %cst_58 {dimension_numbers = #tpu.dot_dimension_numbers<[1], [0], [0], [1], [0, 0, 1, 1], [], []>} : vector<28x168xf32>, vector<168x84xf32>, vector<28x84xf32> -> vector<28x84xf32>
    %c0_59 = arith.constant 0 : index
    %c0_60 = arith.constant 0 : index
    %52 = vector.load %arg19[%c0_59, %c0_60] : memref<28x84xf32, #tpu.memory_space<vmem>>, vector<28x84xf32>
    tpu.vector_store %arg19[%c0_59, %c0_60], %51 {strides = array<i32>} : memref<28x84xf32, #tpu.memory_space<vmem>>, vector<28x84xf32>,
    %c0_61 = arith.constant 0 : index
    %c0_62 = arith.constant 0 : index
    %53 = vector.load %arg19[%c0_61, %c0_62] : memref<28x84xf32, #tpu.memory_space<vmem>>, vector<10x84xf32>
    %c0_63 = arith.constant 0 : index
    %c0_64 = arith.constant 0 : index
    %54 = vector.load %arg20[%c0_63, %c0_64] : memref<20x84xf32, #tpu.memory_space<vmem>>, vector<10x84xf32>
    tpu.vector_store %arg20[%c0_63, %c0_64], %53 {strides = array<i32>} : memref<20x84xf32, #tpu.memory_space<vmem>>, vector<10x84xf32>,
    %c14 = arith.constant 14 : index
    %c0_65 = arith.constant 0 : index
    %55 = vector.load %arg19[%c14, %c0_65] : memref<28x84xf32, #tpu.memory_space<vmem>>, vector<10x84xf32>
    %c10 = arith.constant 10 : index
    %c0_66 = arith.constant 0 : index
    %56 = vector.load %arg20[%c10, %c0_66] : memref<20x84xf32, #tpu.memory_space<vmem>>, vector<10x84xf32>
    tpu.vector_store %arg20[%c10, %c0_66], %55 {strides = array<i32>} : memref<20x84xf32, #tpu.memory_space<vmem>>, vector<10x84xf32>,
    %c0_67 = arith.constant 0 : index
    %c0_68 = arith.constant 0 : index
    %57 = vector.load %arg20[%c0_67, %c0_68] : memref<20x84xf32, #tpu.memory_space<vmem>>, vector<20x84xf32>
    %c0_69 = arith.constant 0 : index
    %c0_70 = arith.constant 0 : index
    %c0_71 = arith.constant 0 : index
    %58 = vector.load %arg6[%c0_69, %c0_70, %c0_71] : memref<5x84x160xf32, #tpu.memory_space<vmem>>, vector<1x84x160xf32>
    %59 = vector.shape_cast %58 : vector<1x84x160xf32> to vector<84x160xf32>
    %cst_72 = arith.constant dense<0.000000e+00> : vector<20x160xf32>
    %60 = tpu.matmul %57, %59, %cst_72 {dimension_numbers = #tpu.dot_dimension_numbers<[1], [0], [0], [1], [0, 0, 1, 1], [], []>} : vector<20x84xf32>, vector<84x160xf32>, vector<20x160xf32> -> vector<20x160xf32>
    %c0_73 = arith.constant 0 : index
    %c0_74 = arith.constant 0 : index
    %61 = vector.load %arg18[%c0_73, %c0_74] : memref<20x160xf32, #tpu.memory_space<vmem>>, vector<20x160xf32>
    tpu.vector_store %arg18[%c0_73, %c0_74], %60 {strides = array<i32>} : memref<20x160xf32, #tpu.memory_space<vmem>>, vector<20x160xf32>,
    %c1_75 = arith.constant 1 : index
    %c0_76 = arith.constant 0 : index
    %62 = vector.load %arg19[%c1_75, %c0_76] : memref<28x84xf32, #tpu.memory_space<vmem>>, vector<10x84xf32>
    %c0_77 = arith.constant 0 : index
    %c0_78 = arith.constant 0 : index
    %63 = vector.load %arg20[%c0_77, %c0_78] : memref<20x84xf32, #tpu.memory_space<vmem>>, vector<10x84xf32>
    tpu.vector_store %arg20[%c0_77, %c0_78], %62 {strides = array<i32>} : memref<20x84xf32, #tpu.memory_space<vmem>>, vector<10x84xf32>,
    %c15 = arith.constant 15 : index
    %c0_79 = arith.constant 0 : index
    %64 = vector.load %arg19[%c15, %c0_79] : memref<28x84xf32, #tpu.memory_space<vmem>>, vector<10x84xf32>
    %c10_80 = arith.constant 10 : index
    %c0_81 = arith.constant 0 : index
    %65 = vector.load %arg20[%c10_80, %c0_81] : memref<20x84xf32, #tpu.memory_space<vmem>>, vector<10x84xf32>
    tpu.vector_store %arg20[%c10_80, %c0_81], %64 {strides = array<i32>} : memref<20x84xf32, #tpu.memory_space<vmem>>, vector<10x84xf32>,
    %c0_82 = arith.constant 0 : index
    %c0_83 = arith.constant 0 : index
    %66 = vector.load %arg18[%c0_82, %c0_83] : memref<20x160xf32, #tpu.memory_space<vmem>>, vector<20x160xf32>
    %c0_84 = arith.constant 0 : index
    %c0_85 = arith.constant 0 : index
    %67 = vector.load %arg20[%c0_84, %c0_85] : memref<20x84xf32, #tpu.memory_space<vmem>>, vector<20x84xf32>
    %c1_86 = arith.constant 1 : index
    %c0_87 = arith.constant 0 : index
    %c0_88 = arith.constant 0 : index
    %68 = vector.load %arg6[%c1_86, %c0_87, %c0_88] : memref<5x84x160xf32, #tpu.memory_space<vmem>>, vector<1x84x160xf32>
    %69 = vector.shape_cast %68 : vector<1x84x160xf32> to vector<84x160xf32>
    %cst_89 = arith.constant dense<0.000000e+00> : vector<20x160xf32>
    %70 = tpu.matmul %67, %69, %cst_89 {dimension_numbers = #tpu.dot_dimension_numbers<[1], [0], [0], [1], [0, 0, 1, 1], [], []>} : vector<20x84xf32>, vector<84x160xf32>, vector<20x160xf32> -> vector<20x160xf32>
    %71 = arith.addf %66, %70 : vector<20x160xf32>
    %c0_90 = arith.constant 0 : index
    %c0_91 = arith.constant 0 : index
    %72 = vector.load %arg18[%c0_90, %c0_91] : memref<20x160xf32, #tpu.memory_space<vmem>>, vector<20x160xf32>
    tpu.vector_store %arg18[%c0_90, %c0_91], %71 {strides = array<i32>} : memref<20x160xf32, #tpu.memory_space<vmem>>, vector<20x160xf32>,
    %c2_92 = arith.constant 2 : index
    %c0_93 = arith.constant 0 : index
    %73 = vector.load %arg19[%c2_92, %c0_93] : memref<28x84xf32, #tpu.memory_space<vmem>>, vector<10x84xf32>
    %c0_94 = arith.constant 0 : index
    %c0_95 = arith.constant 0 : index
    %74 = vector.load %arg20[%c0_94, %c0_95] : memref<20x84xf32, #tpu.memory_space<vmem>>, vector<10x84xf32>
    tpu.vector_store %arg20[%c0_94, %c0_95], %73 {strides = array<i32>} : memref<20x84xf32, #tpu.memory_space<vmem>>, vector<10x84xf32>,
    %c16 = arith.constant 16 : index
    %c0_96 = arith.constant 0 : index
    %75 = vector.load %arg19[%c16, %c0_96] : memref<28x84xf32, #tpu.memory_space<vmem>>, vector<10x84xf32>
    %c10_97 = arith.constant 10 : index
    %c0_98 = arith.constant 0 : index
    %76 = vector.load %arg20[%c10_97, %c0_98] : memref<20x84xf32, #tpu.memory_space<vmem>>, vector<10x84xf32>
    tpu.vector_store %arg20[%c10_97, %c0_98], %75 {strides = array<i32>} : memref<20x84xf32, #tpu.memory_space<vmem>>, vector<10x84xf32>,
    %c0_99 = arith.constant 0 : index
    %c0_100 = arith.constant 0 : index
    %77 = vector.load %arg18[%c0_99, %c0_100] : memref<20x160xf32, #tpu.memory_space<vmem>>, vector<20x160xf32>
    %c0_101 = arith.constant 0 : index
    %c0_102 = arith.constant 0 : index
    %78 = vector.load %arg20[%c0_101, %c0_102] : memref<20x84xf32, #tpu.memory_space<vmem>>, vector<20x84xf32>
    %c2_103 = arith.constant 2 : index
    %c0_104 = arith.constant 0 : index
    %c0_105 = arith.constant 0 : index
    %79 = vector.load %arg6[%c2_103, %c0_104, %c0_105] : memref<5x84x160xf32, #tpu.memory_space<vmem>>, vector<1x84x160xf32>
    %80 = vector.shape_cast %79 : vector<1x84x160xf32> to vector<84x160xf32>
    %cst_106 = arith.constant dense<0.000000e+00> : vector<20x160xf32>
    %81 = tpu.matmul %78, %80, %cst_106 {dimension_numbers = #tpu.dot_dimension_numbers<[1], [0], [0], [1], [0, 0, 1, 1], [], []>} : vector<20x84xf32>, vector<84x160xf32>, vector<20x160xf32> -> vector<20x160xf32>
    %82 = arith.addf %77, %81 : vector<20x160xf32>
    %c0_107 = arith.constant 0 : index
    %c0_108 = arith.constant 0 : index
    %83 = vector.load %arg18[%c0_107, %c0_108] : memref<20x160xf32, #tpu.memory_space<vmem>>, vector<20x160xf32>
    tpu.vector_store %arg18[%c0_107, %c0_108], %82 {strides = array<i32>} : memref<20x160xf32, #tpu.memory_space<vmem>>, vector<20x160xf32>,
    %c3_109 = arith.constant 3 : index
    %c0_110 = arith.constant 0 : index
    %84 = vector.load %arg19[%c3_109, %c0_110] : memref<28x84xf32, #tpu.memory_space<vmem>>, vector<10x84xf32>
    %c0_111 = arith.constant 0 : index
    %c0_112 = arith.constant 0 : index
    %85 = vector.load %arg20[%c0_111, %c0_112] : memref<20x84xf32, #tpu.memory_space<vmem>>, vector<10x84xf32>
    tpu.vector_store %arg20[%c0_111, %c0_112], %84 {strides = array<i32>} : memref<20x84xf32, #tpu.memory_space<vmem>>, vector<10x84xf32>,
    %c17 = arith.constant 17 : index
    %c0_113 = arith.constant 0 : index
    %86 = vector.load %arg19[%c17, %c0_113] : memref<28x84xf32, #tpu.memory_space<vmem>>, vector<10x84xf32>
    %c10_114 = arith.constant 10 : index
    %c0_115 = arith.constant 0 : index
    %87 = vector.load %arg20[%c10_114, %c0_115] : memref<20x84xf32, #tpu.memory_space<vmem>>, vector<10x84xf32>
    tpu.vector_store %arg20[%c10_114, %c0_115], %86 {strides = array<i32>} : memref<20x84xf32, #tpu.memory_space<vmem>>, vector<10x84xf32>,
    %c0_116 = arith.constant 0 : index
    %c0_117 = arith.constant 0 : index
    %88 = vector.load %arg18[%c0_116, %c0_117] : memref<20x160xf32, #tpu.memory_space<vmem>>, vector<20x160xf32>
    %c0_118 = arith.constant 0 : index
    %c0_119 = arith.constant 0 : index
    %89 = vector.load %arg20[%c0_118, %c0_119] : memref<20x84xf32, #tpu.memory_space<vmem>>, vector<20x84xf32>
    %c3_120 = arith.constant 3 : index
    %c0_121 = arith.constant 0 : index
    %c0_122 = arith.constant 0 : index
    %90 = vector.load %arg6[%c3_120, %c0_121, %c0_122] : memref<5x84x160xf32, #tpu.memory_space<vmem>>, vector<1x84x160xf32>
    %91 = vector.shape_cast %90 : vector<1x84x160xf32> to vector<84x160xf32>
    %cst_123 = arith.constant dense<0.000000e+00> : vector<20x160xf32>
    %92 = tpu.matmul %89, %91, %cst_123 {dimension_numbers = #tpu.dot_dimension_numbers<[1], [0], [0], [1], [0, 0, 1, 1], [], []>} : vector<20x84xf32>, vector<84x160xf32>, vector<20x160xf32> -> vector<20x160xf32>
    %93 = arith.addf %88, %92 : vector<20x160xf32>
    %c0_124 = arith.constant 0 : index
    %c0_125 = arith.constant 0 : index
    %94 = vector.load %arg18[%c0_124, %c0_125] : memref<20x160xf32, #tpu.memory_space<vmem>>, vector<20x160xf32>
    tpu.vector_store %arg18[%c0_124, %c0_125], %93 {strides = array<i32>} : memref<20x160xf32, #tpu.memory_space<vmem>>, vector<20x160xf32>,
    %c4_126 = arith.constant 4 : index
    %c0_127 = arith.constant 0 : index
    %95 = vector.load %arg19[%c4_126, %c0_127] : memref<28x84xf32, #tpu.memory_space<vmem>>, vector<10x84xf32>
    %c0_128 = arith.constant 0 : index
    %c0_129 = arith.constant 0 : index
    %96 = vector.load %arg20[%c0_128, %c0_129] : memref<20x84xf32, #tpu.memory_space<vmem>>, vector<10x84xf32>
    tpu.vector_store %arg20[%c0_128, %c0_129], %95 {strides = array<i32>} : memref<20x84xf32, #tpu.memory_space<vmem>>, vector<10x84xf32>,
    %c18 = arith.constant 18 : index
    %c0_130 = arith.constant 0 : index
    %97 = vector.load %arg19[%c18, %c0_130] : memref<28x84xf32, #tpu.memory_space<vmem>>, vector<10x84xf32>
    %c10_131 = arith.constant 10 : index
    %c0_132 = arith.constant 0 : index
    %98 = vector.load %arg20[%c10_131, %c0_132] : memref<20x84xf32, #tpu.memory_space<vmem>>, vector<10x84xf32>
    tpu.vector_store %arg20[%c10_131, %c0_132], %97 {strides = array<i32>} : memref<20x84xf32, #tpu.memory_space<vmem>>, vector<10x84xf32>,
    %c0_133 = arith.constant 0 : index
    %c0_134 = arith.constant 0 : index
    %99 = vector.load %arg18[%c0_133, %c0_134] : memref<20x160xf32, #tpu.memory_space<vmem>>, vector<20x160xf32>
    %c0_135 = arith.constant 0 : index
    %c0_136 = arith.constant 0 : index
    %100 = vector.load %arg20[%c0_135, %c0_136] : memref<20x84xf32, #tpu.memory_space<vmem>>, vector<20x84xf32>
    %c4_137 = arith.constant 4 : index
    %c0_138 = arith.constant 0 : index
    %c0_139 = arith.constant 0 : index
    %101 = vector.load %arg6[%c4_137, %c0_138, %c0_139] : memref<5x84x160xf32, #tpu.memory_space<vmem>>, vector<1x84x160xf32>
    %102 = vector.shape_cast %101 : vector<1x84x160xf32> to vector<84x160xf32>
    %cst_140 = arith.constant dense<0.000000e+00> : vector<20x160xf32>
    %103 = tpu.matmul %100, %102, %cst_140 {dimension_numbers = #tpu.dot_dimension_numbers<[1], [0], [0], [1], [0, 0, 1, 1], [], []>} : vector<20x84xf32>, vector<84x160xf32>, vector<20x160xf32> -> vector<20x160xf32>
    %104 = arith.addf %99, %103 : vector<20x160xf32>
    %c0_141 = arith.constant 0 : index
    %c0_142 = arith.constant 0 : index
    %105 = vector.load %arg18[%c0_141, %c0_142] : memref<20x160xf32, #tpu.memory_space<vmem>>, vector<20x160xf32>
    tpu.vector_store %arg18[%c0_141, %c0_142], %104 {strides = array<i32>} : memref<20x160xf32, #tpu.memory_space<vmem>>, vector<20x160xf32>,
    %c0_143 = arith.constant 0 : index
    %c0_144 = arith.constant 0 : index
    %106 = vector.load %arg18[%c0_143, %c0_144] : memref<20x160xf32, #tpu.memory_space<vmem>>, vector<20x160xf32>
    %c0_145 = arith.constant 0 : index
    %c0_146 = arith.constant 0 : index
    %107 = vector.load %arg7[%c0_145, %c0_146] : memref<1x160xf32, #tpu.memory_space<vmem>>, vector<1x160xf32>
    %108 = vector.broadcast %107 : vector<1x160xf32> to vector<20x160xf32>
    %109 = arith.addf %106, %108 : vector<20x160xf32>
    %cst_147 = arith.constant 0.000000e+00 : f32
    %110 = vector.broadcast %cst_147 : f32 to vector<20x160xf32>
    %111 = arith.subf %110, %109 : vector<20x160xf32>
    %112 = math.exp %111 : vector<20x160xf32>
    %cst_148 = arith.constant 1.000000e+00 : f32
    %113 = vector.broadcast %cst_148 : f32 to vector<20x160xf32>
    %114 = arith.addf %113, %112 : vector<20x160xf32>
    %115 = tpu.reciprocal %114 {approx = true} : vector<20x160xf32> -> vector<20x160xf32>
    %c0_149 = arith.constant 0 : index
    %c0_150 = arith.constant 0 : index
    %116 = vector.load %arg8[%c0_149, %c0_150] : memref<10x20xf32, #tpu.memory_space<vmem>>, vector<10x20xf32>
    %cst_151 = arith.constant dense<0.000000e+00> : vector<10x160xf32>
    %117 = tpu.matmul %116, %115, %cst_151 {dimension_numbers = #tpu.dot_dimension_numbers<[1], [0], [0], [1], [0, 0, 1, 1], [], []>} : vector<10x20xf32>, vector<20x160xf32>, vector<10x160xf32> -> vector<10x160xf32>
    %c0_152 = arith.constant 0 : index
    %c0_153 = arith.constant 0 : index
    %118 = vector.load %arg9[%c0_152, %c0_153] : memref<160x80xf32, #tpu.memory_space<vmem>>, vector<160x80xf32>
    %cst_154 = arith.constant dense<0.000000e+00> : vector<10x80xf32>
    %119 = tpu.matmul %117, %118, %cst_154 {dimension_numbers = #tpu.dot_dimension_numbers<[1], [0], [0], [1], [0, 0, 1, 1], [], []>} : vector<10x160xf32>, vector<160x80xf32>, vector<10x80xf32> -> vector<10x80xf32>
    %c0_155 = arith.constant 0 : index
    %c0_156 = arith.constant 0 : index
    %120 = vector.load %arg21[%c0_155, %c0_156] : memref<10x80xf32, #tpu.memory_space<vmem>>, vector<10x80xf32>
    tpu.vector_store %arg21[%c0_155, %c0_156], %119 {strides = array<i32>} : memref<10x80xf32, #tpu.memory_space<vmem>>, vector<10x80xf32>,
    %c0_157 = arith.constant 0 : index
    %c0_158 = arith.constant 0 : index
    %121 = vector.load %arg21[%c0_157, %c0_158] : memref<10x80xf32, #tpu.memory_space<vmem>>, vector<1x80xf32>
    %c0_159 = arith.constant 0 : index
    %c0_160 = arith.constant 0 : index
    %122 = vector.load %arg22[%c0_159, %c0_160] : memref<2x400xf32, #tpu.memory_space<vmem>>, vector<1x80xf32>
    tpu.vector_store %arg22[%c0_159, %c0_160], %121 {strides = array<i32>} : memref<2x400xf32, #tpu.memory_space<vmem>>, vector<1x80xf32>,
    %c1_161 = arith.constant 1 : index
    %c0_162 = arith.constant 0 : index
    %123 = vector.load %arg21[%c1_161, %c0_162] : memref<10x80xf32, #tpu.memory_space<vmem>>, vector<1x80xf32>
    %c0_163 = arith.constant 0 : index
    %c80 = arith.constant 80 : index
    %124 = vector.load %arg22[%c0_163, %c80] : memref<2x400xf32, #tpu.memory_space<vmem>>, vector<1x80xf32>
    tpu.vector_store %arg22[%c0_163, %c80], %123 {strides = array<i32>} : memref<2x400xf32, #tpu.memory_space<vmem>>, vector<1x80xf32>,
    %c2_164 = arith.constant 2 : index
    %c0_165 = arith.constant 0 : index
    %125 = vector.load %arg21[%c2_164, %c0_165] : memref<10x80xf32, #tpu.memory_space<vmem>>, vector<1x80xf32>
    %c0_166 = arith.constant 0 : index
    %c160 = arith.constant 160 : index
    %126 = vector.load %arg22[%c0_166, %c160] : memref<2x400xf32, #tpu.memory_space<vmem>>, vector<1x80xf32>
    tpu.vector_store %arg22[%c0_166, %c160], %125 {strides = array<i32>} : memref<2x400xf32, #tpu.memory_space<vmem>>, vector<1x80xf32>,
    %c3_167 = arith.constant 3 : index
    %c0_168 = arith.constant 0 : index
    %127 = vector.load %arg21[%c3_167, %c0_168] : memref<10x80xf32, #tpu.memory_space<vmem>>, vector<1x80xf32>
    %c0_169 = arith.constant 0 : index
    %c240 = arith.constant 240 : index
    %128 = vector.load %arg22[%c0_169, %c240] : memref<2x400xf32, #tpu.memory_space<vmem>>, vector<1x80xf32>
    tpu.vector_store %arg22[%c0_169, %c240], %127 {strides = array<i32>} : memref<2x400xf32, #tpu.memory_space<vmem>>, vector<1x80xf32>,
    %c4_170 = arith.constant 4 : index
    %c0_171 = arith.constant 0 : index
    %129 = vector.load %arg21[%c4_170, %c0_171] : memref<10x80xf32, #tpu.memory_space<vmem>>, vector<1x80xf32>
    %c0_172 = arith.constant 0 : index
    %c320 = arith.constant 320 : index
    %130 = vector.load %arg22[%c0_172, %c320] : memref<2x400xf32, #tpu.memory_space<vmem>>, vector<1x80xf32>
    tpu.vector_store %arg22[%c0_172, %c320], %129 {strides = array<i32>} : memref<2x400xf32, #tpu.memory_space<vmem>>, vector<1x80xf32>,
    %c5 = arith.constant 5 : index
    %c0_173 = arith.constant 0 : index
    %131 = vector.load %arg21[%c5, %c0_173] : memref<10x80xf32, #tpu.memory_space<vmem>>, vector<1x80xf32>
    %c1_174 = arith.constant 1 : index
    %c0_175 = arith.constant 0 : index
    %132 = vector.load %arg22[%c1_174, %c0_175] : memref<2x400xf32, #tpu.memory_space<vmem>>, vector<1x80xf32>
    tpu.vector_store %arg22[%c1_174, %c0_175], %131 {strides = array<i32>} : memref<2x400xf32, #tpu.memory_space<vmem>>, vector<1x80xf32>,
    %c6 = arith.constant 6 : index
    %c0_176 = arith.constant 0 : index
    %133 = vector.load %arg21[%c6, %c0_176] : memref<10x80xf32, #tpu.memory_space<vmem>>, vector<1x80xf32>
    %c1_177 = arith.constant 1 : index
    %c80_178 = arith.constant 80 : index
    %134 = vector.load %arg22[%c1_177, %c80_178] : memref<2x400xf32, #tpu.memory_space<vmem>>, vector<1x80xf32>
    tpu.vector_store %arg22[%c1_177, %c80_178], %133 {strides = array<i32>} : memref<2x400xf32, #tpu.memory_space<vmem>>, vector<1x80xf32>,
    %c7 = arith.constant 7 : index
    %c0_179 = arith.constant 0 : index
    %135 = vector.load %arg21[%c7, %c0_179] : memref<10x80xf32, #tpu.memory_space<vmem>>, vector<1x80xf32>
    %c1_180 = arith.constant 1 : index
    %c160_181 = arith.constant 160 : index
    %136 = vector.load %arg22[%c1_180, %c160_181] : memref<2x400xf32, #tpu.memory_space<vmem>>, vector<1x80xf32>
    tpu.vector_store %arg22[%c1_180, %c160_181], %135 {strides = array<i32>} : memref<2x400xf32, #tpu.memory_space<vmem>>, vector<1x80xf32>,
    %c8 = arith.constant 8 : index
    %c0_182 = arith.constant 0 : index
    %137 = vector.load %arg21[%c8, %c0_182] : memref<10x80xf32, #tpu.memory_space<vmem>>, vector<1x80xf32>
    %c1_183 = arith.constant 1 : index
    %c240_184 = arith.constant 240 : index
    %138 = vector.load %arg22[%c1_183, %c240_184] : memref<2x400xf32, #tpu.memory_space<vmem>>, vector<1x80xf32>
    tpu.vector_store %arg22[%c1_183, %c240_184], %137 {strides = array<i32>} : memref<2x400xf32, #tpu.memory_space<vmem>>, vector<1x80xf32>,
    %c9 = arith.constant 9 : index
    %c0_185 = arith.constant 0 : index
    %139 = vector.load %arg21[%c9, %c0_185] : memref<10x80xf32, #tpu.memory_space<vmem>>, vector<1x80xf32>
    %c1_186 = arith.constant 1 : index
    %c320_187 = arith.constant 320 : index
    %140 = vector.load %arg22[%c1_186, %c320_187] : memref<2x400xf32, #tpu.memory_space<vmem>>, vector<1x80xf32>
    tpu.vector_store %arg22[%c1_186, %c320_187], %139 {strides = array<i32>} : memref<2x400xf32, #tpu.memory_space<vmem>>, vector<1x80xf32>,
    %c0_188 = arith.constant 0 : index
    %c0_189 = arith.constant 0 : index
    %141 = vector.load %arg22[%c0_188, %c0_189] : memref<2x400xf32, #tpu.memory_space<vmem>>, vector<2x400xf32>
    %c0_190 = arith.constant 0 : index
    %c0_191 = arith.constant 0 : index
    %142 = vector.load %arg10[%c0_190, %c0_191] : memref<400x120xf32, #tpu.memory_space<vmem>>, vector<400x120xf32>
    %cst_192 = arith.constant dense<0.000000e+00> : vector<2x120xf32>
    %143 = tpu.matmul %141, %142, %cst_192 {dimension_numbers = #tpu.dot_dimension_numbers<[1], [0], [0], [1], [0, 0, 1, 1], [], []>} : vector<2x400xf32>, vector<400x120xf32>, vector<2x120xf32> -> vector<2x120xf32>
    %c0_193 = arith.constant 0 : index
    %c0_194 = arith.constant 0 : index
    %144 = vector.load %arg11[%c0_193, %c0_194] : memref<1x120xf32, #tpu.memory_space<vmem>>, vector<1x120xf32>
    %145 = vector.broadcast %144 : vector<1x120xf32> to vector<2x120xf32>
    %146 = arith.addf %143, %145 : vector<2x120xf32>
    %cst_195 = arith.constant 0.000000e+00 : f32
    %147 = vector.broadcast %cst_195 : f32 to vector<2x120xf32>
    %148 = arith.subf %147, %146 : vector<2x120xf32>
    %149 = math.exp %148 : vector<2x120xf32>
    %cst_196 = arith.constant 1.000000e+00 : f32
    %150 = vector.broadcast %cst_196 : f32 to vector<2x120xf32>
    %151 = arith.addf %150, %149 : vector<2x120xf32>
    %152 = tpu.reciprocal %151 {approx = true} : vector<2x120xf32> -> vector<2x120xf32>
    %c0_197 = arith.constant 0 : index
    %c0_198 = arith.constant 0 : index
    %153 = vector.load %arg12[%c0_197, %c0_198] : memref<120x84xf32, #tpu.memory_space<vmem>>, vector<120x84xf32>
    %cst_199 = arith.constant dense<0.000000e+00> : vector<2x84xf32>
    %154 = tpu.matmul %152, %153, %cst_199 {dimension_numbers = #tpu.dot_dimension_numbers<[1], [0], [0], [1], [0, 0, 1, 1], [], []>} : vector<2x120xf32>, vector<120x84xf32>, vector<2x84xf32> -> vector<2x84xf32>
    %c0_200 = arith.constant 0 : index
    %c0_201 = arith.constant 0 : index
    %155 = vector.load %arg13[%c0_200, %c0_201] : memref<1x84xf32, #tpu.memory_space<vmem>>, vector<1x84xf32>
    %156 = vector.broadcast %155 : vector<1x84xf32> to vector<2x84xf32>
    %157 = arith.addf %154, %156 : vector<2x84xf32>
    %cst_202 = arith.constant 0.000000e+00 : f32
    %158 = vector.broadcast %cst_202 : f32 to vector<2x84xf32>
    %159 = arith.subf %158, %157 : vector<2x84xf32>
    %160 = math.exp %159 : vector<2x84xf32>
    %cst_203 = arith.constant 1.000000e+00 : f32
    %161 = vector.broadcast %cst_203 : f32 to vector<2x84xf32>
    %162 = arith.addf %161, %160 : vector<2x84xf32>
    %163 = tpu.reciprocal %162 {approx = true} : vector<2x84xf32> -> vector<2x84xf32>
    %c0_204 = arith.constant 0 : index
    %c0_205 = arith.constant 0 : index
    %164 = vector.load %arg14[%c0_204, %c0_205] : memref<84x128xf32, #tpu.memory_space<vmem>>, vector<84x128xf32>
    %cst_206 = arith.constant dense<0.000000e+00> : vector<2x128xf32>
    %165 = tpu.matmul %163, %164, %cst_206 {dimension_numbers = #tpu.dot_dimension_numbers<[1], [0], [0], [1], [0, 0, 1, 1], [], []>} : vector<2x84xf32>, vector<84x128xf32>, vector<2x128xf32> -> vector<2x128xf32>
    %c0_207 = arith.constant 0 : index
    %c0_208 = arith.constant 0 : index
    %166 = vector.load %arg15[%c0_207, %c0_208] : memref<1x128xf32, #tpu.memory_space<vmem>>, vector<1x128xf32>
    %167 = vector.broadcast %166 : vector<1x128xf32> to vector<2x128xf32>
    %168 = arith.addf %165, %167 : vector<2x128xf32>
    %c0_209 = arith.constant 0 : index
    %c0_210 = arith.constant 0 : index
    %169 = vector.load %arg16[%c0_209, %c0_210] : memref<2x128xf32, #tpu.memory_space<vmem>>, vector<2x128xf32>
    tpu.vector_store %arg16[%c0_209, %c0_210], %168 {strides = array<i32>} : memref<2x128xf32, #tpu.memory_space<vmem>>, vector<2x128xf32>,
    return
  }
  func.func @transform_0(%arg0: i32) -> (i32, i32, i32) {
    %c0_i32 = arith.constant 0 : i32
    %c0_i32_0 = arith.constant 0 : i32
    %c0_i32_1 = arith.constant 0 : i32
    return %c0_i32, %arg0, %c0_i32_0 : i32, i32, i32
  }
  func.func @transform_1(%arg0: i32) -> (i32, i32, i32) {
    %c0_i32 = arith.constant 0 : i32
    %c0_i32_0 = arith.constant 0 : i32
    %c0_i32_1 = arith.constant 0 : i32
    %c0_i32_2 = arith.constant 0 : i32
    return %c0_i32, %c0_i32_0, %c0_i32_1 : i32, i32, i32
  }
  func.func @transform_2(%arg0: i32) -> (i32, i32) {
    %c0_i32 = arith.constant 0 : i32
    %c0_i32_0 = arith.constant 0 : i32
    %c0_i32_1 = arith.constant 0 : i32
    return %c0_i32, %c0_i32_0 : i32, i32
  }
  func.func @transform_3(%arg0: i32) -> (i32, i32) {
    %c0_i32 = arith.constant 0 : i32
    %c0_i32_0 = arith.constant 0 : i32
    %c0_i32_1 = arith.constant 0 : i32
    return %c0_i32, %c0_i32_0 : i32, i32
  }
  func.func @transform_4(%arg0: i32) -> (i32, i32) {
    %c0_i32 = arith.constant 0 : i32
    %c0_i32_0 = arith.constant 0 : i32
    %c0_i32_1 = arith.constant 0 : i32
    return %c0_i32, %c0_i32_0 : i32, i32
  }
  func.func @transform_5(%arg0: i32) -> (i32, i32, i32) {
    %c0_i32 = arith.constant 0 : i32
    %c0_i32_0 = arith.constant 0 : i32
    %c0_i32_1 = arith.constant 0 : i32
    %c0_i32_2 = arith.constant 0 : i32
    return %c0_i32, %c0_i32_0, %c0_i32_1 : i32, i32, i32
  }
  func.func @transform_6(%arg0: i32) -> (i32, i32) {
    %c0_i32 = arith.constant 0 : i32
    %c0_i32_0 = arith.constant 0 : i32
    %c0_i32_1 = arith.constant 0 : i32
    return %c0_i32, %c0_i32_0 : i32, i32
  }
  func.func @transform_7(%arg0: i32) -> (i32, i32) {
    %c0_i32 = arith.constant 0 : i32
    %c0_i32_0 = arith.constant 0 : i32
    %c0_i32_1 = arith.constant 0 : i32
    return %c0_i32, %c0_i32_0 : i32, i32
  }
  func.func @transform_8(%arg0: i32) -> (i32, i32) {
    %c0_i32 = arith.constant 0 : i32
    %c0_i32_0 = arith.constant 0 : i32
    %c0_i32_1 = arith.constant 0 : i32
    return %c0_i32, %c0_i32_0 : i32, i32
  }
  func.func @transform_9(%arg0: i32) -> (i32, i32) {
    %c0_i32 = arith.constant 0 : i32
    %c0_i32_0 = arith.constant 0 : i32
    %c0_i32_1 = arith.constant 0 : i32
    return %c0_i32, %c0_i32_0 : i32, i32
  }
  func.func @transform_10(%arg0: i32) -> (i32, i32) {
    %c0_i32 = arith.constant 0 : i32
    %c0_i32_0 = arith.constant 0 : i32
    %c0_i32_1 = arith.constant 0 : i32
    return %c0_i32, %c0_i32_0 : i32, i32
  }
  func.func @transform_11(%arg0: i32) -> (i32, i32) {
    %c0_i32 = arith.constant 0 : i32
    %c0_i32_0 = arith.constant 0 : i32
    %c0_i32_1 = arith.constant 0 : i32
    return %c0_i32, %c0_i32_0 : i32, i32
  }
  func.func @transform_12(%arg0: i32) -> (i32, i32) {
    %c0_i32 = arith.constant 0 : i32
    %c0_i32_0 = arith.constant 0 : i32
    %c0_i32_1 = arith.constant 0 : i32
    return %c0_i32, %c0_i32_0 : i32, i32
  }
  func.func @transform_13(%arg0: i32) -> (i32, i32) {
    %c0_i32 = arith.constant 0 : i32
    %c0_i32_0 = arith.constant 0 : i32
    %c0_i32_1 = arith.constant 0 : i32
    return %c0_i32, %c0_i32_0 : i32, i32
  }
  func.func @transform_14(%arg0: i32) -> (i32, i32) {
    %c0_i32 = arith.constant 0 : i32
    %c0_i32_0 = arith.constant 0 : i32
    %c0_i32_1 = arith.constant 0 : i32
    return %c0_i32, %c0_i32_0 : i32, i32
  }
  func.func @transform_15(%arg0: i32) -> (i32, i32) {
    %c0_i32 = arith.constant 0 : i32
    %c0_i32_0 = arith.constant 0 : i32
    return %arg0, %c0_i32 : i32, i32
  }
}

</mosaic_0001>

<llo_original>
// kernel: tile.13
$region0: #{tile.13}
  #allocation0 [shape = 's32[1]{0}', space=sflag, size = 0x4, scoped, tag = 'scoped memory for tile.13']
  %s0 = inlined_call_operand.vmem [shape: f32[6], index: 0, kind: input, shape index: {}]
  %s1 = inlined_call_operand.vmem [shape: f32[28,6], index: 1, kind: output, shape index: {}]
  // Predicated region
  $region2: #{tile.13} parent=0 // pred_check
    _
  $region3: #{tile.13} parent=0 // pred_check_branch
    %3 = sbr.rel (0) target = $region5
  $region4: #{tile.13} parent=0 // pred_region
    _
  $region5: #{tile.13} parent=0 // pred_fallthru
    _
  %v4 = vld [vmem:[%s0] ss:$0 sm:$0xff]
  %5 = vst [vmem:[%s1] sm:$0xff] %v4
  %s6 = scalar_lea.vmem %s1, 8
  %7 = vst [vmem:[%s6] sm:$0xff] %v4
  %s8 = scalar_lea.vmem %s1, 16
  %9 = vst [vmem:[%s8] sm:$0xff] %v4
  %s10 = scalar_lea.vmem %s1, 24
  %11 = vst [vmem:[%s10] sm:$0xff] %v4

// kernel: tile.14
$region0: #{tile.14}
  %s0 = inlined_call_operand.vmem [shape: f32[28,6], index: 0, kind: input, shape index: {}]
  %s1 = inlined_call_operand.vmem [shape: f32[1,168], index: 1, kind: output, shape index: {}]
  $region1: #{tile.14} parent=0
    #allocation0 [shape = 'u8[8192]{0}', space=vmem, size = 0x2000, scoped, tag = 'scoped mem for output reshape']
    %v2 = vld [vmem:[%s0] sm:$0x1]
    %vm3 = vcmask 48128
    %4 = vst.msk [vmem:[#allocation0] sm:$0x1] %vm3, %v2
    %s5 = scalar_lea.vmem %s0, 21
    %v6 = vld [vmem:[%s5] sm:$0x1]
    %s7 = scalar_lea.vmem %s0, 21
    %v8 = vld [vmem:[%s7] sm:$0x1]
    %vm9 = vcmask 15360
    %v10 = vsel %vm9, %v8, %v6
    %11 = vrot.lane.b32.xlu0 %v10, 126
    %v12 = vpop.permute.xlu0 %11
    %vm13 = vcmask 31744
    %s14 = scalar_lea.vmem [#allocation0], 8
    %15 = vst.msk [vmem:[%s14] sm:$0x1] %vm13, %v12
    %vm16 = vcmask 1048560
    %17 = vst.msk [vmem:[#allocation0] sm:$0x1] %vm16, %v12
    %s18 = scalar_lea.vmem %s0, 20
    %v19 = vld [vmem:[%s18] sm:$0x1]
    %20 = vrot.lane.b32.xlu0 %v19, 120
    %v21 = vpop.permute.xlu0 %20
    %vm22 = vcmask 1032128
    %23 = vst.msk [vmem:[#allocation0] sm:$0x1] %vm22, %v21
    %s24 = scalar_lea.vmem %s0, 19
    %v25 = vld [vmem:[%s24] sm:$0x1]
    %26 = vrot.lane.b32.xlu0 %v25, 114
    %v27 = vpop.permute.xlu0 %26
    %vm28 = vcmask 982928
    %29 = vst.msk [vmem:[#allocation0] sm:$0x1] %vm28, %v27
    %s30 = scalar_lea.vmem %s0, 18
    %v31 = vld [vmem:[%s30] sm:$0x1]
    %32 = vrot.lane.b32.xlu0 %v31, 108
    %v33 = vpop.permute.xlu0 %32
    %vm34 = vcmask 933728
    %35 = vst.msk [vmem:[#allocation0] sm:$0x1] %vm34, %v33
    %s36 = scalar_lea.vmem %s0, 17
    %v37 = vld [vmem:[%s36] sm:$0x1]
    %38 = vrot.lane.b32.xlu0 %v37, 102
    %v39 = vpop.permute.xlu0 %38
    %vm40 = vcmask 884528
    %41 = vst.msk [vmem:[#allocation0] sm:$0x1] %vm40, %v39
    %s42 = scalar_lea.vmem %s0, 16
    %v43 = vld [vmem:[%s42] sm:$0x1]
    %44 = vrot.lane.b32.xlu0 %v43, 96
    %v45 = vpop.permute.xlu0 %44
    %vm46 = vcmask 835328
    %47 = vst.msk [vmem:[#allocation0] sm:$0x1] %vm46, %v45
    %s48 = scalar_lea.vmem %s0, 15
    %v49 = vld [vmem:[%s48] sm:$0x1]
    %50 = vrot.lane.b32.xlu0 %v49, 90
    %v51 = vpop.permute.xlu0 %50
    %vm52 = vcmask 786128
    %53 = vst.msk [vmem:[#allocation0] sm:$0x1] %vm52, %v51
    %s54 = scalar_lea.vmem %s0, 14
    %v55 = vld [vmem:[%s54] sm:$0x1]
    %56 = vrot.lane.b32.xlu0 %v55, 84
    %v57 = vpop.permute.xlu0 %56
    %vm58 = vcmask 736928
    %59 = vst.msk [vmem:[#allocation0] sm:$0x1] %vm58, %v57
    %s60 = scalar_lea.vmem %s0, 13
    %v61 = vld [vmem:[%s60] sm:$0x1]
    %62 = vrot.lane.b32.xlu0 %v61, 78
    %v63 = vpop.permute.xlu0 %62
    %vm64 = vcmask 687728
    %65 = vst.msk [vmem:[#allocation0] sm:$0x1] %vm64, %v63
    %s66 = scalar_lea.vmem %s0, 12
    %v67 = vld [vmem:[%s66] sm:$0x1]
    %68 = vrot.lane.b32.xlu0 %v67, 72
    %v69 = vpop.permute.xlu0 %68
    %vm70 = vcmask 638528
    %71 = vst.msk [vmem:[#allocation0] sm:$0x1] %vm70, %v69
    %s72 = scalar_lea.vmem %s0, 11
    %v73 = vld [vmem:[%s72] sm:$0x1]
    %74 = vrot.lane.b32.xlu0 %v73, 66
    %v75 = vpop.permute.xlu0 %74
    %vm76 = vcmask 589328
    %77 = vst.msk [vmem:[#allocation0] sm:$0x1] %vm76, %v75
    %s78 = scalar_lea.vmem %s0, 10
    %v79 = vld [vmem:[%s78] sm:$0x1]
    %80 = vrot.lane.b32.xlu0 %v79, 60
    %v81 = vpop.permute.xlu0 %80
    %vm82 = vcmask 540128
    %83 = vst.msk [vmem:[#allocation0] sm:$0x1] %vm82, %v81
    %s84 = scalar_lea.vmem %s0, 9
    %v85 = vld [vmem:[%s84] sm:$0x1]
    %86 = vrot.lane.b32.xlu0 %v85, 54
    %v87 = vpop.permute.xlu0 %86
    %vm88 = vcmask 490928
    %89 = vst.msk [vmem:[#allocation0] sm:$0x1] %vm88, %v87
    %s90 = scalar_lea.vmem %s0, 8
    %v91 = vld [vmem:[%s90] sm:$0x1]
    %92 = vrot.lane.b32.xlu0 %v91, 48
    %v93 = vpop.permute.xlu0 %92
    %vm94 = vcmask 441728
    %95 = vst.msk [vmem:[#allocation0] sm:$0x1] %vm94, %v93
    %s96 = scalar_lea.vmem %s0, 7
    %v97 = vld [vmem:[%s96] sm:$0x1]
    %98 = vrot.lane.b32.xlu0 %v97, 42
    %v99 = vpop.permute.xlu0 %98
    %vm100 = vcmask 392528
    %101 = vst.msk [vmem:[#allocation0] sm:$0x1] %vm100, %v99
    %s102 = scalar_lea.vmem %s0, 6
    %v103 = vld [vmem:[%s102] sm:$0x1]
    %104 = vrot.lane.b32.xlu0 %v103, 36
    %v105 = vpop.permute.xlu0 %104
    %vm106 = vcmask 343328
    %107 = vst.msk [vmem:[#allocation0] sm:$0x1] %vm106, %v105
    %s108 = scalar_lea.vmem %s0, 27
    %v109 = vld [vmem:[%s108] sm:$0x1]
    %110 = vrot.lane.b32.xlu0 %v109, 34
    %v111 = vpop.permute.xlu0 %110
    %vm112 = vcmask 326928
    %s113 = scalar_lea.vmem [#allocation0], 8
    %114 = vst.msk [vmem:[%s113] sm:$0x1] %vm112, %v111
    %s115 = scalar_lea.vmem %s0, 5
    %v116 = vld [vmem:[%s115] sm:$0x1]
    %117 = vrot.lane.b32.xlu0 %v116, 30
    %v118 = vpop.permute.xlu0 %117
    %vm119 = vcmask 294128
    %120 = vst.msk [vmem:[#allocation0] sm:$0x1] %vm119, %v118
    %s121 = scalar_lea.vmem %s0, 26
    %v122 = vld [vmem:[%s121] sm:$0x1]
    %123 = vrot.lane.b32.xlu0 %v122, 28
    %v124 = vpop.permute.xlu0 %123
    %vm125 = vcmask 277728
    %s126 = scalar_lea.vmem [#allocation0], 8
    %127 = vst.msk [vmem:[%s126] sm:$0x1] %vm125, %v124
    %s128 = scalar_lea.vmem %s0, 4
    %v129 = vld [vmem:[%s128] sm:$0x1]
    %130 = vrot.lane.b32.xlu0 %v129, 24
    %v131 = vpop.permute.xlu0 %130
    %vm132 = vcmask 244928
    %133 = vst.msk [vmem:[#allocation0] sm:$0x1] %vm132, %v131
    %s134 = scalar_lea.vmem %s0, 25
    %v135 = vld [vmem:[%s134] sm:$0x1]
    %136 = vrot.lane.b32.xlu0 %v135, 22
    %v137 = vpop.permute.xlu0 %136
    %vm138 = vcmask 228528
    %s139 = scalar_lea.vmem [#allocation0], 8
    %140 = vst.msk [vmem:[%s139] sm:$0x1] %vm138, %v137
    %s141 = scalar_lea.vmem %s0, 3
    %v142 = vld [vmem:[%s141] sm:$0x1]
    %143 = vrot.lane.b32.xlu0 %v142, 18
    %v144 = vpop.permute.xlu0 %143
    %vm145 = vcmask 195728
    %146 = vst.msk [vmem:[#allocation0] sm:$0x1] %vm145, %v144
    %s147 = scalar_lea.vmem %s0, 24
    %v148 = vld [vmem:[%s147] sm:$0x1]
    %149 = vrot.lane.b32.xlu0 %v148, 16
    %v150 = vpop.permute.xlu0 %149
    %vm151 = vcmask 179328
    %s152 = scalar_lea.vmem [#allocation0], 8
    %153 = vst.msk [vmem:[%s152] sm:$0x1] %vm151, %v150
    %s154 = scalar_lea.vmem %s0, 2
    %v155 = vld [vmem:[%s154] sm:$0x1]
    %156 = vrot.lane.b32.xlu0 %v155, 12
    %v157 = vpop.permute.xlu0 %156
    %vm158 = vcmask 146528
    %159 = vst.msk [vmem:[#allocation0] sm:$0x1] %vm158, %v157
    %s160 = scalar_lea.vmem %s0, 23
    %v161 = vld [vmem:[%s160] sm:$0x1]
    %162 = vrot.lane.b32.xlu0 %v161, 10
    %v163 = vpop.permute.xlu0 %162
    %vm164 = vcmask 130128
    %s165 = scalar_lea.vmem [#allocation0], 8
    %166 = vst.msk [vmem:[%s165] sm:$0x1] %vm164, %v163
    %s167 = scalar_lea.vmem %s0, 1
    %v168 = vld [vmem:[%s167] sm:$0x1]
    %169 = vrot.lane.b32.xlu0 %v168, 6
    %v170 = vpop.permute.xlu0 %169
    %vm171 = vcmask 97328
    %172 = vst.msk [vmem:[#allocation0] sm:$0x1] %vm171, %v170
    %s173 = scalar_lea.vmem %s0, 22
    %v174 = vld [vmem:[%s173] sm:$0x1]
    %175 = vrot.lane.b32.xlu0 %v174, 4
    %v176 = vpop.permute.xlu0 %175
    %vm177 = vcmask 80928
    %s178 = scalar_lea.vmem [#allocation0], 8
    %179 = vst.msk [vmem:[%s178] sm:$0x1] %vm177, %v176
    %s181 = sshll.u32 1, 1
    %s182 = ssub.s32 %s181, 1
    %v184 = vld [vmem:[#allocation0] sm:%s182]
    %s185 = sshll.u32 1, 1
    %s186 = ssub.s32 %s185, 1
    %187 = vst [vmem:[%s1] sm:%s186] %v184
    %s188 = scalar_lea.vmem [#allocation0], 8
    %v189 = vld [vmem:[%s188] sm:%s182]
    %s190 = sshll.u32 1, 1
    %s191 = ssub.s32 %s190, 1
    %s192 = scalar_lea.vmem %s1, 1
    %193 = vst [vmem:[%s192] sm:%s191] %v189

// kernel: tile.18
$region0: #{tile.18}
  #allocation0 [shape = 's32[1]{0}', space=sflag, size = 0x4, scoped, tag = 'scoped memory for tile.18']
  %s0 = inlined_call_operand.vmem [shape: f32[16], index: 0, kind: input, shape index: {}]
  %s1 = inlined_call_operand.vmem [shape: f32[10,16], index: 1, kind: output, shape index: {}]
  // Predicated region
  $region2: #{tile.18} parent=0 // pred_check
    _
  $region3: #{tile.18} parent=0 // pred_check_branch
    %3 = sbr.rel (0) target = $region5
  $region4: #{tile.18} parent=0 // pred_region
    _
  $region5: #{tile.18} parent=0 // pred_fallthru
    _
  %v4 = vld [vmem:[%s0] ss:$0 sm:$0xff]
  %5 = vst [vmem:[%s1] sm:$0xff] %v4
  %s6 = scalar_lea.vmem %s1, 8
  %7 = vst [vmem:[%s6] sm:$0xff] %v4

// kernel: tile.19
$region0: #{tile.19}
  %s0 = inlined_call_operand.vmem [shape: f32[10,16], index: 0, kind: input, shape index: {}]
  %s1 = inlined_call_operand.vmem [shape: f32[1,160], index: 1, kind: output, shape index: {}]
  $region1: #{tile.19} parent=0
    #allocation0 [shape = 'u8[8192]{0}', space=vmem, size = 0x2000, scoped, tag = 'scoped mem for output reshape']
    %s2 = smov 3
    %v3 = vld [vmem:[%s0] ss:$8 sm:%s2]
    %vm4 = vcmask 130048
    %5 = vst.msk [vmem:[#allocation0] ss:$8 sm:$0x3] %vm4, %v3
    %s6 = scalar_lea.vmem %s0, 7
    %v7 = vld [vmem:[%s6] sm:$0x1]
    %8 = vrot.lane.b32.xlu0 %v7, 112
    %v9 = vpop.permute.xlu0 %8
    %vm10 = vcmask 1048448
    %11 = vst.msk [vmem:[#allocation0] sm:$0x1] %vm10, %v9
    %s12 = scalar_lea.vmem %s0, 6
    %v13 = vld [vmem:[%s12] sm:$0x1]
    %14 = vrot.lane.b32.xlu0 %v13, 96
    %v15 = vpop.permute.xlu0 %14
    %vm16 = vcmask 917248
    %17 = vst.msk [vmem:[#allocation0] sm:$0x1] %vm16, %v15
    %s18 = scalar_lea.vmem %s0, 5
    %v19 = vld [vmem:[%s18] sm:$0x1]
    %20 = vrot.lane.b32.xlu0 %v19, 80
    %v21 = vpop.permute.xlu0 %20
    %vm22 = vcmask 786048
    %23 = vst.msk [vmem:[#allocation0] sm:$0x1] %vm22, %v21
    %s24 = scalar_lea.vmem %s0, 4
    %v25 = vld [vmem:[%s24] sm:$0x1]
    %26 = vrot.lane.b32.xlu0 %v25, 64
    %v27 = vpop.permute.xlu0 %26
    %vm28 = vcmask 654848
    %29 = vst.msk [vmem:[#allocation0] sm:$0x1] %vm28, %v27
    %s30 = scalar_lea.vmem %s0, 3
    %v31 = vld [vmem:[%s30] sm:$0x1]
    %32 = vrot.lane.b32.xlu0 %v31, 48
    %v33 = vpop.permute.xlu0 %32
    %vm34 = vcmask 523648
    %35 = vst.msk [vmem:[#allocation0] sm:$0x1] %vm34, %v33
    %s36 = scalar_lea.vmem %s0, 2
    %v37 = vld [vmem:[%s36] sm:$0x1]
    %38 = vrot.lane.b32.xlu0 %v37, 32
    %v39 = vpop.permute.xlu0 %38
    %vm40 = vcmask 392448
    %41 = vst.msk [vmem:[#allocation0] sm:$0x1] %vm40, %v39
    %s42 = scalar_lea.vmem %s0, 1
    %s43 = smov 3
    %v44 = vld [vmem:[%s42] ss:$8 sm:%s43]
    %45 = vrot.lane.b32.xlu0 %v44, 16
    %v46 = vpop.permute.xlu0 %45
    %vm47 = vcmask 261248
    %48 = vst.msk [vmem:[#allocation0] ss:$8 sm:$0x3] %vm47, %v46
    %s50 = sshll.u32 1, 1
    %s51 = ssub.s32 %s50, 1
    %v53 = vld [vmem:[#allocation0] sm:%s51]
    %s54 = sshll.u32 1, 1
    %s55 = ssub.s32 %s54, 1
    %56 = vst [vmem:[%s1] sm:%s55] %v53
    %s57 = scalar_lea.vmem [#allocation0], 8
    %v58 = vld [vmem:[%s57] sm:%s51]
    %s59 = sshll.u32 1, 1
    %s60 = ssub.s32 %s59, 1
    %s61 = scalar_lea.vmem %s1, 1
    %62 = vst [vmem:[%s61] sm:%s60] %v58

// kernel: lenet_forward.1
$region0: #{lenet_forward.1}
  #allocation0 [shape = 'u32[]', space=smem, size = 0x4, offset = 0x4, fixed_abs, tag = 'smem constant byte address 0x4 - core index']
  #allocation1 [shape = 'u32[144,128]{1,0:T(1,128)}', space=vmem, size = 0x12000, scoped, tag = 'internal scratch']
  #allocation2 [shape = 'f32[56,168]{1,0:T(8,128)}', space=vmem, size = 0xe000, scoped, tag = 'scratch operand']
  #allocation3 [shape = 'f32[20,160]{1,0:T(8,128)}', space=vmem, size = 0x6000, scoped, tag = 'scratch operand']
  #allocation4 [shape = 'f32[28,84]{1,0:T(8,128)}', space=vmem, size = 0x4000, scoped, tag = 'scratch operand']
  #allocation5 [shape = 'f32[20,84]{1,0:T(8,128)}', space=vmem, size = 0x3000, scoped, tag = 'scratch operand']
  #allocation6 [shape = 'f32[10,80]{1,0:T(8,128)}', space=vmem, size = 0x2000, scoped, tag = 'scratch operand']
  #allocation7 [shape = 'f32[2,400]{1,0:T(2,128)}', space=vmem, size = 0x1000, scoped, tag = 'scratch operand']
  %s0 = inlined_call_operand.vmem [shape: f32[5,56,32], index: 0, kind: input, shape index: {}]
  %s1 = inlined_call_operand.vmem [shape: f32[5,32,168], index: 1, kind: input, shape index: {}]
  %s2 = inlined_call_operand.vmem [shape: f32[1,168], index: 2, kind: input, shape index: {}]
  %s3 = inlined_call_operand.vmem [shape: f32[28,56], index: 3, kind: input, shape index: {}]
  %s4 = inlined_call_operand.vmem [shape: f32[168,84], index: 4, kind: input, shape index: {}]
  %s5 = inlined_call_operand.vmem [shape: f32[5,84,160], index: 5, kind: input, shape index: {}]
  %s6 = inlined_call_operand.vmem [shape: f32[1,160], index: 6, kind: input, shape index: {}]
  %s7 = inlined_call_operand.vmem [shape: f32[10,20], index: 7, kind: input, shape index: {}]
  %s8 = inlined_call_operand.vmem [shape: f32[160,80], index: 8, kind: input, shape index: {}]
  %s9 = inlined_call_operand.vmem [shape: f32[400,120], index: 9, kind: input, shape index: {}]
  %s10 = inlined_call_operand.vmem [shape: f32[1,120], index: 10, kind: input, shape index: {}]
  %s11 = inlined_call_operand.vmem [shape: f32[120,84], index: 11, kind: input, shape index: {}]
  %s12 = inlined_call_operand.vmem [shape: f32[1,84], index: 12, kind: input, shape index: {}]
  %s13 = inlined_call_operand.vmem [shape: f32[84,128], index: 13, kind: input, shape index: {}]
  %s14 = inlined_call_operand.vmem [shape: f32[1,128], index: 14, kind: input, shape index: {}]
  %s15 = inlined_call_operand.hbm [shape: f32[2,128], index: 15, kind: output, shape index: {}]
  %s16 = sld [smem:[#allocation0]]
  $region70: #{lenet_forward.1} parent=0
    _
  %s18 = ssub.s32 1, %s16
  %s19 = scalar_select 0, %s18, %s16
  $region1: #{lenet_forward.1} parent=0
    #allocation8 [shape = 'u8[1024]{0}', space=vmem, size = 0x400, scoped, tag = 'output window, operand 0, single buffered']
    #allocation9 [shape = 's32[1]{0}', space=sflag, size = 0x4, scoped, tag = 'scoped memory for lenet_forward.1']
    %20 = vsyncpa [#allocation9], 0
    // Predicated region
    $region2: #{lenet_forward.1} parent=1 // pred_check
      _
    $region3: #{lenet_forward.1} parent=1 // pred_check_branch
      %22 = sbr.rel (0) target = $region5
    $region4: #{lenet_forward.1} parent=1 // pred_region
      _
    $region5: #{lenet_forward.1} parent=1 // pred_fallthru
      _
    // Predicated region
    $region6: #{lenet_forward.1} parent=1 // pred_check
      _
    $region7: #{lenet_forward.1} parent=1 // pred_check_branch
      %24 = sbr.rel (0) target = $region9
    $region8: #{lenet_forward.1} parent=1 // pred_region
      _
    $region9: #{lenet_forward.1} parent=1 // pred_fallthru
      _
    // Predicated region
    $region10: #{lenet_forward.1} parent=1 // pred_check
      _
    $region11: #{lenet_forward.1} parent=1 // pred_check_branch
      %26 = sbr.rel (0) target = $region13
    $region12: #{lenet_forward.1} parent=1 // pred_region
      _
    $region13: #{lenet_forward.1} parent=1 // pred_fallthru
      _
    // Predicated region
    $region14: #{lenet_forward.1} parent=1 // pred_check
      _
    $region15: #{lenet_forward.1} parent=1 // pred_check_branch
      %28 = sbr.rel (0) target = $region17
    $region16: #{lenet_forward.1} parent=1 // pred_region
      _
    $region17: #{lenet_forward.1} parent=1 // pred_fallthru
      _
    // Predicated region
    $region18: #{lenet_forward.1} parent=1 // pred_check
      _
    $region19: #{lenet_forward.1} parent=1 // pred_check_branch
      %30 = sbr.rel (0) target = $region21
    $region20: #{lenet_forward.1} parent=1 // pred_region
      _
    $region21: #{lenet_forward.1} parent=1 // pred_fallthru
      _
    // Predicated region
    $region22: #{lenet_forward.1} parent=1 // pred_check
      _
    $region23: #{lenet_forward.1} parent=1 // pred_check_branch
      %32 = sbr.rel (0) target = $region25
    $region24: #{lenet_forward.1} parent=1 // pred_region
      _
    $region25: #{lenet_forward.1} parent=1 // pred_fallthru
      _
    // Predicated region
    $region26: #{lenet_forward.1} parent=1 // pred_check
      _
    $region27: #{lenet_forward.1} parent=1 // pred_check_branch
      %34 = sbr.rel (0) target = $region29
    $region28: #{lenet_forward.1} parent=1 // pred_region
      _
    $region29: #{lenet_forward.1} parent=1 // pred_fallthru
      _
    // Predicated region
    $region30: #{lenet_forward.1} parent=1 // pred_check
      _
    $region31: #{lenet_forward.1} parent=1 // pred_check_branch
      %36 = sbr.rel (0) target = $region33
    $region32: #{lenet_forward.1} parent=1 // pred_region
      _
    $region33: #{lenet_forward.1} parent=1 // pred_fallthru
      _
    // Predicated region
    $region34: #{lenet_forward.1} parent=1 // pred_check
      _
    $region35: #{lenet_forward.1} parent=1 // pred_check_branch
      %38 = sbr.rel (0) target = $region37
    $region36: #{lenet_forward.1} parent=1 // pred_region
      _
    $region37: #{lenet_forward.1} parent=1 // pred_fallthru
      _
    // Predicated region
    $region38: #{lenet_forward.1} parent=1 // pred_check
      _
    $region39: #{lenet_forward.1} parent=1 // pred_check_branch
      %40 = sbr.rel (0) target = $region41
    $region40: #{lenet_forward.1} parent=1 // pred_region
      _
    $region41: #{lenet_forward.1} parent=1 // pred_fallthru
      _
    // Predicated region
    $region42: #{lenet_forward.1} parent=1 // pred_check
      _
    $region43: #{lenet_forward.1} parent=1 // pred_check_branch
      %42 = sbr.rel (0) target = $region45
    $region44: #{lenet_forward.1} parent=1 // pred_region
      _
    $region45: #{lenet_forward.1} parent=1 // pred_fallthru
      _
    // Predicated region
    $region46: #{lenet_forward.1} parent=1 // pred_check
      _
    $region47: #{lenet_forward.1} parent=1 // pred_check_branch
      %44 = sbr.rel (0) target = $region49
    $region48: #{lenet_forward.1} parent=1 // pred_region
      _
    $region49: #{lenet_forward.1} parent=1 // pred_fallthru
      _
    // Predicated region
    $region50: #{lenet_forward.1} parent=1 // pred_check
      _
    $region51: #{lenet_forward.1} parent=1 // pred_check_branch
      %46 = sbr.rel (0) target = $region53
    $region52: #{lenet_forward.1} parent=1 // pred_region
      _
    $region53: #{lenet_forward.1} parent=1 // pred_fallthru
      _
    // Predicated region
    $region54: #{lenet_forward.1} parent=1 // pred_check
      _
    $region55: #{lenet_forward.1} parent=1 // pred_check_branch
      %48 = sbr.rel (0) target = $region57
    $region56: #{lenet_forward.1} parent=1 // pred_region
      _
    $region57: #{lenet_forward.1} parent=1 // pred_fallthru
      _
    // Predicated region
    $region58: #{lenet_forward.1} parent=1 // pred_check
      _
    $region59: #{lenet_forward.1} parent=1 // pred_check_branch
      %50 = sbr.rel (0) target = $region61
    $region60: #{lenet_forward.1} parent=1 // pred_region
      _
    $region61: #{lenet_forward.1} parent=1 // pred_fallthru
      _
    %v51 = vld [vmem:[%s0] sm:$0xff]
    %v52 = vld [vmem:[%s0 + $0x8] sm:$0xff]
    %v53 = vld [vmem:[%s0 + $0x10] sm:$0xff]
    %v54 = vld [vmem:[%s0 + $0x18] sm:$0xff]
    %v55 = vld [vmem:[%s0 + $0x20] sm:$0xff]
    %v56 = vld [vmem:[%s0 + $0x28] sm:$0xff]
    %v57 = vld [vmem:[%s0 + $0x30] sm:$0xff]
    %v58 = vld [vmem:[%s1] sm:$0xff]
    %v59 = vld [vmem:[%s1 + $0x8] sm:$0xff]
    %v60 = vld [vmem:[%s1 + $0x10] sm:$0xff]
    %v61 = vld [vmem:[%s1 + $0x18] sm:$0xff]
    %v62 = vld [vmem:[%s1 + $0x20] sm:$0xff]
    %v63 = vld [vmem:[%s1 + $0x28] sm:$0xff]
    %v64 = vld [vmem:[%s1 + $0x30] sm:$0xff]
    %v65 = vld [vmem:[%s1 + $0x38] sm:$0xff]
    %vm66 = vcmask 261120
    %v68 = vsel %vm66, %v51, 0
    %v71 = vsel %vm66, %v52, 0
    %v74 = vsel %vm66, %v53, 0
    %v77 = vsel %vm66, %v54, 0
    %v80 = vsel %vm66, %v55, 0
    %v83 = vsel %vm66, %v56, 0
    %v86 = vsel %vm66, %v57, 0
    %88 = vmatprep.subr.mxu0 0.0
    %89 = vmatpush1.msra.mxu0 0.0
    %90 = vmatprep.subr.mxu0 0.0
    %91 = vmatpush1.msra.mxu0 0.0
    %92 = vmatprep.subr.mxu0 0.0
    %93 = vmatpush1.msra.mxu0 0.0
    %94 = vmatprep.subr.mxu0 0.0
    %95 = vmatpush1.msra.mxu0 0.0
    %96 = vmatprep.subr.mxu0 0.0
    %97 = vmatpush1.msra.mxu0 0.0
    %98 = vmatprep.subr.mxu0 0.0
    %99 = vmatpush1.msra.mxu0 0.0
    %100 = vmatprep.subr.mxu0 0.0
    %101 = vmatpush1.msra.mxu0 0.0
    %102 = vmatprep.subr.mxu0 0.0
    %103 = vmatpush1.msra.mxu0 0.0
    %104 = vmatprep.subr.mxu0 0.0
    %105 = vmatpush1.msra.mxu0 0.0
    %106 = vmatprep.subr.mxu0 0.0
    %107 = vmatpush1.msra.mxu0 0.0
    %108 = vmatprep.subr.mxu0 0.0
    %109 = vmatpush1.msra.mxu0 0.0
    %110 = vmatprep.subr.mxu0 0.0
    %111 = vmatpush1.msra.mxu0 0.0
    %112 = vmatprep.subr.mxu0 %v65
    %113 = vmatpush1.msra.mxu0 %v64
    %114 = vmatprep.subr.mxu0 %v63
    %115 = vmatpush1.msra.mxu0 %v62
    %116 = vmatprep.subr.mxu0 %v61
    %117 = vmatpush1.msra.mxu0 %v60
    %118 = vmatprep.subr.mxu0 %v59
    %119 = vmatpush1.msra.mxu0 %v58
    %120 = vmatprep.subr.mxu0 0.0
    %121 = vmatpush2.msra.mxu0 0.0
    %122 = vmatprep.subr.mxu0 0.0
    %123 = vmatpush2.msra.mxu0 0.0
    %124 = vmatprep.subr.mxu0 0.0
    %125 = vmatpush2.msra.mxu0 0.0
    %126 = vmatprep.subr.mxu0 0.0
    %127 = vmatpush2.msra.mxu0 0.0
    %128 = vmatprep.subr.mxu0 0.0
    %129 = vmatpush2.msra.mxu0 0.0
    %130 = vmatprep.subr.mxu0 0.0
    %131 = vmatpush2.msra.mxu0 0.0
    %132 = vmatprep.subr.mxu0 0.0
    %133 = vmatpush2.msra.mxu0 0.0
    %134 = vmatprep.subr.mxu0 0.0
    %135 = vmatpush2.msra.mxu0 0.0
    %136 = vmatprep.subr.mxu0 0.0
    %137 = vmatpush2.msra.mxu0 0.0
    %138 = vmatprep.subr.mxu0 0.0
    %139 = vmatpush2.msra.mxu0 0.0
    %140 = vmatprep.subr.mxu0 0.0
    %141 = vmatpush2.msra.mxu0 0.0
    %142 = vmatprep.subr.mxu0 0.0
    %143 = vmatpush2.msra.mxu0 0.0
    %144 = vmatprep.subr.mxu0 0.0
    %145 = vmatpush2.msra.mxu0 0.0
    %146 = vmatprep.subr.mxu0 0.0
    %147 = vmatpush2.msra.mxu0 0.0
    %148 = vmatprep.subr.mxu0 0.0
    %149 = vmatpush2.msra.mxu0 0.0
    %150 = vmatprep.subr.mxu0 0.0
    %151 = vmatpush2.msra.mxu0 0.0
    %152 = vmatprep.mubr.f32.mxu0 0.0
    %153 = vmatmul.mubr.f32.gmra.mxu0 %v68
    %v154 = vpop.f32.mrf.mxu0
    %v155 = vadd.f32 0.0, %v154
    %v156 = vpop.f32.mrf.mxu0
    %v157 = vadd.f32 0.0, %v156
    %158 = vmatprep.mubr.f32.mxu0 0.0
    %159 = vmatmul.mubr.f32.gmra.mxu0 %v71
    %v160 = vpop.f32.mrf.mxu0
    %v161 = vadd.f32 0.0, %v160
    %v162 = vpop.f32.mrf.mxu0
    %v163 = vadd.f32 0.0, %v162
    %164 = vmatprep.mubr.f32.mxu0 0.0
    %165 = vmatmul.mubr.f32.gmra.mxu0 %v74
    %v166 = vpop.f32.mrf.mxu0
    %v167 = vadd.f32 0.0, %v166
    %v168 = vpop.f32.mrf.mxu0
    %v169 = vadd.f32 0.0, %v168
    %170 = vmatprep.mubr.f32.mxu0 0.0
    %171 = vmatmul.mubr.f32.gmra.mxu0 %v77
    %v172 = vpop.f32.mrf.mxu0
    %v173 = vadd.f32 0.0, %v172
    %v174 = vpop.f32.mrf.mxu0
    %v175 = vadd.f32 0.0, %v174
    %176 = vmatprep.mubr.f32.mxu0 0.0
    %177 = vmatmul.mubr.f32.gmra.mxu0 %v80
    %v178 = vpop.f32.mrf.mxu0
    %v179 = vadd.f32 0.0, %v178
    %v180 = vpop.f32.mrf.mxu0
    %v181 = vadd.f32 0.0, %v180
    %182 = vmatprep.mubr.f32.mxu0 0.0
    %183 = vmatmul.mubr.f32.gmra.mxu0 %v83
    %v184 = vpop.f32.mrf.mxu0
    %v185 = vadd.f32 0.0, %v184
    %v186 = vpop.f32.mrf.mxu0
    %v187 = vadd.f32 0.0, %v186
    %188 = vmatprep.mubr.f32.mxu0 0.0
    %189 = vmatmul.mubr.f32.gmra.mxu0 %v86
    %v190 = vpop.f32.mrf.mxu0
    %v191 = vadd.f32 0.0, %v190
    %v192 = vpop.f32.mrf.mxu0
    %v193 = vadd.f32 0.0, %v192
    %194 = vdwg.mxu0
    %195 = vst [vmem:[#allocation2] sm:$0xff] %v155
    %vm196 = vcmask 326656
    %197 = vst.msk [vmem:[#allocation2 + $0x8] sm:$0xff] %vm196, %v157
    %198 = vst [vmem:[#allocation2 + $0x10] sm:$0xff] %v161
    %199 = vst.msk [vmem:[#allocation2 + $0x18] sm:$0xff] %vm196, %v163
    %200 = vst [vmem:[#allocation2 + $0x20] sm:$0xff] %v167
    %201 = vst.msk [vmem:[#allocation2 + $0x28] sm:$0xff] %vm196, %v169
    %202 = vst [vmem:[#allocation2 + $0x30] sm:$0xff] %v173
    %203 = vst.msk [vmem:[#allocation2 + $0x38] sm:$0xff] %vm196, %v175
    %204 = vst [vmem:[#allocation2 + $0x40] sm:$0xff] %v179
    %205 = vst.msk [vmem:[#allocation2 + $0x48] sm:$0xff] %vm196, %v181
    %206 = vst [vmem:[#allocation2 + $0x50] sm:$0xff] %v185
    %207 = vst.msk [vmem:[#allocation2 + $0x58] sm:$0xff] %vm196, %v187
    %208 = vst [vmem:[#allocation2 + $0x60] sm:$0xff] %v191
    %209 = vst.msk [vmem:[#allocation2 + $0x68] sm:$0xff] %vm196, %v193
    %v210 = vld [vmem:[#allocation2] sm:$0xff]
    %v211 = vld [vmem:[#allocation2 + $0x8] sm:$0xff]
    %v212 = vld [vmem:[#allocation2 + $0x10] sm:$0xff]
    %v213 = vld [vmem:[#allocation2 + $0x18] sm:$0xff]
    %v214 = vld [vmem:[#allocation2 + $0x20] sm:$0xff]
    %v215 = vld [vmem:[#allocation2 + $0x28] sm:$0xff]
    %v216 = vld [vmem:[#allocation2 + $0x30] sm:$0xff]
    %v217 = vld [vmem:[#allocation2 + $0x38] sm:$0xff]
    %v218 = vld [vmem:[#allocation2 + $0x40] sm:$0xff]
    %v219 = vld [vmem:[#allocation2 + $0x48] sm:$0xff]
    %v220 = vld [vmem:[#allocation2 + $0x50] sm:$0xff]
    %v221 = vld [vmem:[#allocation2 + $0x58] sm:$0xff]
    %v222 = vld [vmem:[#allocation2 + $0x60] sm:$0xff]
    %v223 = vld [vmem:[#allocation2 + $0x68] sm:$0xff]
    %s224 = scalar_lea.vmem %s0, 56
    %v225 = vld [vmem:[%s224] sm:$0xff]
    %v226 = vld [vmem:[%s224 + $0x8] sm:$0xff]
    %v227 = vld [vmem:[%s224 + $0x10] sm:$0xff]
    %v228 = vld [vmem:[%s224 + $0x18] sm:$0xff]
    %v229 = vld [vmem:[%s224 + $0x20] sm:$0xff]
    %v230 = vld [vmem:[%s224 + $0x28] sm:$0xff]
    %v231 = vld [vmem:[%s224 + $0x30] sm:$0xff]
    %s232 = scalar_lea.vmem %s1, 64
    %v233 = vld [vmem:[%s232] sm:$0xff]
    %v234 = vld [vmem:[%s232 + $0x8] sm:$0xff]
    %v235 = vld [vmem:[%s232 + $0x10] sm:$0xff]
    %v236 = vld [vmem:[%s232 + $0x18] sm:$0xff]
    %v237 = vld [vmem:[%s232 + $0x20] sm:$0xff]
    %v238 = vld [vmem:[%s232 + $0x28] sm:$0xff]
    %v239 = vld [vmem:[%s232 + $0x30] sm:$0xff]
    %v240 = vld [vmem:[%s232 + $0x38] sm:$0xff]
    %v242 = vsel %vm66, %v225, 0
    %v245 = vsel %vm66, %v226, 0
    %v248 = vsel %vm66, %v227, 0
    %v251 = vsel %vm66, %v228, 0
    %v254 = vsel %vm66, %v229, 0
    %v257 = vsel %vm66, %v230, 0
    %v260 = vsel %vm66, %v231, 0
    %262 = vmatprep.subr.mxu0 0.0
    %263 = vmatpush1.msra.mxu0 0.0
    %264 = vmatprep.subr.mxu0 0.0
    %265 = vmatpush1.msra.mxu0 0.0
    %266 = vmatprep.subr.mxu0 0.0
    %267 = vmatpush1.msra.mxu0 0.0
    %268 = vmatprep.subr.mxu0 0.0
    %269 = vmatpush1.msra.mxu0 0.0
    %270 = vmatprep.subr.mxu0 0.0
    %271 = vmatpush1.msra.mxu0 0.0
    %272 = vmatprep.subr.mxu0 0.0
    %273 = vmatpush1.msra.mxu0 0.0
    %274 = vmatprep.subr.mxu0 0.0
    %275 = vmatpush1.msra.mxu0 0.0
    %276 = vmatprep.subr.mxu0 0.0
    %277 = vmatpush1.msra.mxu0 0.0
    %278 = vmatprep.subr.mxu0 0.0
    %279 = vmatpush1.msra.mxu0 0.0
    %280 = vmatprep.subr.mxu0 0.0
    %281 = vmatpush1.msra.mxu0 0.0
    %282 = vmatprep.subr.mxu0 0.0
    %283 = vmatpush1.msra.mxu0 0.0
    %284 = vmatprep.subr.mxu0 0.0
    %285 = vmatpush1.msra.mxu0 0.0
    %286 = vmatprep.subr.mxu0 %v240
    %287 = vmatpush1.msra.mxu0 %v239
    %288 = vmatprep.subr.mxu0 %v238
    %289 = vmatpush1.msra.mxu0 %v237
    %290 = vmatprep.subr.mxu0 %v236
    %291 = vmatpush1.msra.mxu0 %v235
    %292 = vmatprep.subr.mxu0 %v234
    %293 = vmatpush1.msra.mxu0 %v233
    %294 = vmatprep.subr.mxu0 0.0
    %295 = vmatpush2.msra.mxu0 0.0
    %296 = vmatprep.subr.mxu0 0.0
    %297 = vmatpush2.msra.mxu0 0.0
    %298 = vmatprep.subr.mxu0 0.0
    %299 = vmatpush2.msra.mxu0 0.0
    %300 = vmatprep.subr.mxu0 0.0
    %301 = vmatpush2.msra.mxu0 0.0
    %302 = vmatprep.subr.mxu0 0.0
    %303 = vmatpush2.msra.mxu0 0.0
    %304 = vmatprep.subr.mxu0 0.0
    %305 = vmatpush2.msra.mxu0 0.0
    %306 = vmatprep.subr.mxu0 0.0
    %307 = vmatpush2.msra.mxu0 0.0
    %308 = vmatprep.subr.mxu0 0.0
    %309 = vmatpush2.msra.mxu0 0.0
    %310 = vmatprep.subr.mxu0 0.0
    %311 = vmatpush2.msra.mxu0 0.0
    %312 = vmatprep.subr.mxu0 0.0
    %313 = vmatpush2.msra.mxu0 0.0
    %314 = vmatprep.subr.mxu0 0.0
    %315 = vmatpush2.msra.mxu0 0.0
    %316 = vmatprep.subr.mxu0 0.0
    %317 = vmatpush2.msra.mxu0 0.0
    %318 = vmatprep.subr.mxu0 0.0
    %319 = vmatpush2.msra.mxu0 0.0
    %320 = vmatprep.subr.mxu0 0.0
    %321 = vmatpush2.msra.mxu0 0.0
    %322 = vmatprep.subr.mxu0 0.0
    %323 = vmatpush2.msra.mxu0 0.0
    %324 = vmatprep.subr.mxu0 0.0
    %325 = vmatpush2.msra.mxu0 0.0
    %326 = vmatprep.mubr.f32.mxu0 0.0
    %327 = vmatmul.mubr.f32.gmra.mxu0 %v242
    %v328 = vpop.f32.mrf.mxu0
    %v329 = vadd.f32 0.0, %v328
    %v330 = vpop.f32.mrf.mxu0
    %v331 = vadd.f32 0.0, %v330
    %332 = vmatprep.mubr.f32.mxu0 0.0
    %333 = vmatmul.mubr.f32.gmra.mxu0 %v245
    %v334 = vpop.f32.mrf.mxu0
    %v335 = vadd.f32 0.0, %v334
    %v336 = vpop.f32.mrf.mxu0
    %v337 = vadd.f32 0.0, %v336
    %338 = vmatprep.mubr.f32.mxu0 0.0
    %339 = vmatmul.mubr.f32.gmra.mxu0 %v248
    %v340 = vpop.f32.mrf.mxu0
    %v341 = vadd.f32 0.0, %v340
    %v342 = vpop.f32.mrf.mxu0
    %v343 = vadd.f32 0.0, %v342
    %344 = vmatprep.mubr.f32.mxu0 0.0
    %345 = vmatmul.mubr.f32.gmra.mxu0 %v251
    %v346 = vpop.f32.mrf.mxu0
    %v347 = vadd.f32 0.0, %v346
    %v348 = vpop.f32.mrf.mxu0
    %v349 = vadd.f32 0.0, %v348
    %350 = vmatprep.mubr.f32.mxu0 0.0
    %351 = vmatmul.mubr.f32.gmra.mxu0 %v254
    %v352 = vpop.f32.mrf.mxu0
    %v353 = vadd.f32 0.0, %v352
    %v354 = vpop.f32.mrf.mxu0
    %v355 = vadd.f32 0.0, %v354
    %356 = vmatprep.mubr.f32.mxu0 0.0
    %357 = vmatmul.mubr.f32.gmra.mxu0 %v257
    %v358 = vpop.f32.mrf.mxu0
    %v359 = vadd.f32 0.0, %v358
    %v360 = vpop.f32.mrf.mxu0
    %v361 = vadd.f32 0.0, %v360
    %362 = vmatprep.mubr.f32.mxu0 0.0
    %363 = vmatmul.mubr.f32.gmra.mxu0 %v260
    %v364 = vpop.f32.mrf.mxu0
    %v365 = vadd.f32 0.0, %v364
    %v366 = vpop.f32.mrf.mxu0
    %v367 = vadd.f32 0.0, %v366
    %368 = vdwg.mxu0
    %v369 = vadd.f32 %v210, %v329
    %v370 = vadd.f32 %v211, %v331
    %v371 = vadd.f32 %v212, %v335
    %v372 = vadd.f32 %v213, %v337
    %v373 = vadd.f32 %v214, %v341
    %v374 = vadd.f32 %v215, %v343
    %v375 = vadd.f32 %v216, %v347
    %v376 = vadd.f32 %v217, %v349
    %v377 = vadd.f32 %v218, %v353
    %v378 = vadd.f32 %v219, %v355
    %v379 = vadd.f32 %v220, %v359
    %v380 = vadd.f32 %v221, %v361
    %v381 = vadd.f32 %v222, %v365
    %v382 = vadd.f32 %v223, %v367
    %383 = vst [vmem:[#allocation2] sm:$0xff] %v369
    %384 = vst.msk [vmem:[#allocation2 + $0x8] sm:$0xff] %vm196, %v370
    %385 = vst [vmem:[#allocation2 + $0x10] sm:$0xff] %v371
    %386 = vst.msk [vmem:[#allocation2 + $0x18] sm:$0xff] %vm196, %v372
    %387 = vst [vmem:[#allocation2 + $0x20] sm:$0xff] %v373
    %388 = vst.msk [vmem:[#allocation2 + $0x28] sm:$0xff] %vm196, %v374
    %389 = vst [vmem:[#allocation2 + $0x30] sm:$0xff] %v375
    %390 = vst.msk [vmem:[#allocation2 + $0x38] sm:$0xff] %vm196, %v376
    %391 = vst [vmem:[#allocation2 + $0x40] sm:$0xff] %v377
    %392 = vst.msk [vmem:[#allocation2 + $0x48] sm:$0xff] %vm196, %v378
    %393 = vst [vmem:[#allocation2 + $0x50] sm:$0xff] %v379
    %394 = vst.msk [vmem:[#allocation2 + $0x58] sm:$0xff] %vm196, %v380
    %395 = vst [vmem:[#allocation2 + $0x60] sm:$0xff] %v381
    %396 = vst.msk [vmem:[#allocation2 + $0x68] sm:$0xff] %vm196, %v382
    %v397 = vld [vmem:[#allocation2] sm:$0xff]
    %v398 = vld [vmem:[#allocation2 + $0x8] sm:$0xff]
    %v399 = vld [vmem:[#allocation2 + $0x10] sm:$0xff]
    %v400 = vld [vmem:[#allocation2 + $0x18] sm:$0xff]
    %v401 = vld [vmem:[#allocation2 + $0x20] sm:$0xff]
    %v402 = vld [vmem:[#allocation2 + $0x28] sm:$0xff]
    %v403 = vld [vmem:[#allocation2 + $0x30] sm:$0xff]
    %v404 = vld [vmem:[#allocation2 + $0x38] sm:$0xff]
    %v405 = vld [vmem:[#allocation2 + $0x40] sm:$0xff]
    %v406 = vld [vmem:[#allocation2 + $0x48] sm:$0xff]
    %v407 = vld [vmem:[#allocation2 + $0x50] sm:$0xff]
    %v408 = vld [vmem:[#allocation2 + $0x58] sm:$0xff]
    %v409 = vld [vmem:[#allocation2 + $0x60] sm:$0xff]
    %v410 = vld [vmem:[#allocation2 + $0x68] sm:$0xff]
    %s411 = scalar_lea.vmem %s0, 112
    %v412 = vld [vmem:[%s411] sm:$0xff]
    %v413 = vld [vmem:[%s411 + $0x8] sm:$0xff]
    %v414 = vld [vmem:[%s411 + $0x10] sm:$0xff]
    %v415 = vld [vmem:[%s411 + $0x18] sm:$0xff]
    %v416 = vld [vmem:[%s411 + $0x20] sm:$0xff]
    %v417 = vld [vmem:[%s411 + $0x28] sm:$0xff]
    %v418 = vld [vmem:[%s411 + $0x30] sm:$0xff]
    %s419 = scalar_lea.vmem %s1, 128
    %v420 = vld [vmem:[%s419] sm:$0xff]
    %v421 = vld [vmem:[%s419 + $0x8] sm:$0xff]
    %v422 = vld [vmem:[%s419 + $0x10] sm:$0xff]
    %v423 = vld [vmem:[%s419 + $0x18] sm:$0xff]
    %v424 = vld [vmem:[%s419 + $0x20] sm:$0xff]
    %v425 = vld [vmem:[%s419 + $0x28] sm:$0xff]
    %v426 = vld [vmem:[%s419 + $0x30] sm:$0xff]
    %v427 = vld [vmem:[%s419 + $0x38] sm:$0xff]
    %v429 = vsel %vm66, %v412, 0
    %v432 = vsel %vm66, %v413, 0
    %v435 = vsel %vm66, %v414, 0
    %v438 = vsel %vm66, %v415, 0
    %v441 = vsel %vm66, %v416, 0
    %v444 = vsel %vm66, %v417, 0
    %v447 = vsel %vm66, %v418, 0
    %449 = vmatprep.subr.mxu0 0.0
    %450 = vmatpush1.msra.mxu0 0.0
    %451 = vmatprep.subr.mxu0 0.0
    %452 = vmatpush1.msra.mxu0 0.0
    %453 = vmatprep.subr.mxu0 0.0
    %454 = vmatpush1.msra.mxu0 0.0
    %455 = vmatprep.subr.mxu0 0.0
    %456 = vmatpush1.msra.mxu0 0.0
    %457 = vmatprep.subr.mxu0 0.0
    %458 = vmatpush1.msra.mxu0 0.0
    %459 = vmatprep.subr.mxu0 0.0
    %460 = vmatpush1.msra.mxu0 0.0
    %461 = vmatprep.subr.mxu0 0.0
    %462 = vmatpush1.msra.mxu0 0.0
    %463 = vmatprep.subr.mxu0 0.0
    %464 = vmatpush1.msra.mxu0 0.0
    %465 = vmatprep.subr.mxu0 0.0
    %466 = vmatpush1.msra.mxu0 0.0
    %467 = vmatprep.subr.mxu0 0.0
    %468 = vmatpush1.msra.mxu0 0.0
    %469 = vmatprep.subr.mxu0 0.0
    %470 = vmatpush1.msra.mxu0 0.0
    %471 = vmatprep.subr.mxu0 0.0
    %472 = vmatpush1.msra.mxu0 0.0
    %473 = vmatprep.subr.mxu0 %v427
    %474 = vmatpush1.msra.mxu0 %v426
    %475 = vmatprep.subr.mxu0 %v425
    %476 = vmatpush1.msra.mxu0 %v424
    %477 = vmatprep.subr.mxu0 %v423
    %478 = vmatpush1.msra.mxu0 %v422
    %479 = vmatprep.subr.mxu0 %v421
    %480 = vmatpush1.msra.mxu0 %v420
    %481 = vmatprep.subr.mxu0 0.0
    %482 = vmatpush2.msra.mxu0 0.0
    %483 = vmatprep.subr.mxu0 0.0
    %484 = vmatpush2.msra.mxu0 0.0
    %485 = vmatprep.subr.mxu0 0.0
    %486 = vmatpush2.msra.mxu0 0.0
    %487 = vmatprep.subr.mxu0 0.0
    %488 = vmatpush2.msra.mxu0 0.0
    %489 = vmatprep.subr.mxu0 0.0
    %490 = vmatpush2.msra.mxu0 0.0
    %491 = vmatprep.subr.mxu0 0.0
    %492 = vmatpush2.msra.mxu0 0.0
    %493 = vmatprep.subr.mxu0 0.0
    %494 = vmatpush2.msra.mxu0 0.0
    %495 = vmatprep.subr.mxu0 0.0
    %496 = vmatpush2.msra.mxu0 0.0
    %497 = vmatprep.subr.mxu0 0.0
    %498 = vmatpush2.msra.mxu0 0.0
    %499 = vmatprep.subr.mxu0 0.0
    %500 = vmatpush2.msra.mxu0 0.0
    %501 = vmatprep.subr.mxu0 0.0
    %502 = vmatpush2.msra.mxu0 0.0
    %503 = vmatprep.subr.mxu0 0.0
    %504 = vmatpush2.msra.mxu0 0.0
    %505 = vmatprep.subr.mxu0 0.0
    %506 = vmatpush2.msra.mxu0 0.0
    %507 = vmatprep.subr.mxu0 0.0
    %508 = vmatpush2.msra.mxu0 0.0
    %509 = vmatprep.subr.mxu0 0.0
    %510 = vmatpush2.msra.mxu0 0.0
    %511 = vmatprep.subr.mxu0 0.0
    %512 = vmatpush2.msra.mxu0 0.0
    %513 = vmatprep.mubr.f32.mxu0 0.0
    %514 = vmatmul.mubr.f32.gmra.mxu0 %v429
    %v515 = vpop.f32.mrf.mxu0
    %v516 = vadd.f32 0.0, %v515
    %v517 = vpop.f32.mrf.mxu0
    %v518 = vadd.f32 0.0, %v517
    %519 = vmatprep.mubr.f32.mxu0 0.0
    %520 = vmatmul.mubr.f32.gmra.mxu0 %v432
    %v521 = vpop.f32.mrf.mxu0
    %v522 = vadd.f32 0.0, %v521
    %v523 = vpop.f32.mrf.mxu0
    %v524 = vadd.f32 0.0, %v523
    %525 = vmatprep.mubr.f32.mxu0 0.0
    %526 = vmatmul.mubr.f32.gmra.mxu0 %v435
    %v527 = vpop.f32.mrf.mxu0
    %v528 = vadd.f32 0.0, %v527
    %v529 = vpop.f32.mrf.mxu0
    %v530 = vadd.f32 0.0, %v529
    %531 = vmatprep.mubr.f32.mxu0 0.0
    %532 = vmatmul.mubr.f32.gmra.mxu0 %v438
    %v533 = vpop.f32.mrf.mxu0
    %v534 = vadd.f32 0.0, %v533
    %v535 = vpop.f32.mrf.mxu0
    %v536 = vadd.f32 0.0, %v535
    %537 = vmatprep.mubr.f32.mxu0 0.0
    %538 = vmatmul.mubr.f32.gmra.mxu0 %v441
    %v539 = vpop.f32.mrf.mxu0
    %v540 = vadd.f32 0.0, %v539
    %v541 = vpop.f32.mrf.mxu0
    %v542 = vadd.f32 0.0, %v541
    %543 = vmatprep.mubr.f32.mxu0 0.0
    %544 = vmatmul.mubr.f32.gmra.mxu0 %v444
    %v545 = vpop.f32.mrf.mxu0
    %v546 = vadd.f32 0.0, %v545
    %v547 = vpop.f32.mrf.mxu0
    %v548 = vadd.f32 0.0, %v547
    %549 = vmatprep.mubr.f32.mxu0 0.0
    %550 = vmatmul.mubr.f32.gmra.mxu0 %v447
    %v551 = vpop.f32.mrf.mxu0
    %v552 = vadd.f32 0.0, %v551
    %v553 = vpop.f32.mrf.mxu0
    %v554 = vadd.f32 0.0, %v553
    %555 = vdwg.mxu0
    %v556 = vadd.f32 %v397, %v516
    %v557 = vadd.f32 %v398, %v518
    %v558 = vadd.f32 %v399, %v522
    %v559 = vadd.f32 %v400, %v524
    %v560 = vadd.f32 %v401, %v528
    %v561 = vadd.f32 %v402, %v530
    %v562 = vadd.f32 %v403, %v534
    %v563 = vadd.f32 %v404, %v536
    %v564 = vadd.f32 %v405, %v540
    %v565 = vadd.f32 %v406, %v542
    %v566 = vadd.f32 %v407, %v546
    %v567 = vadd.f32 %v408, %v548
    %v568 = vadd.f32 %v409, %v552
    %v569 = vadd.f32 %v410, %v554
    %570 = vst [vmem:[#allocation2] sm:$0xff] %v556
    %571 = vst.msk [vmem:[#allocation2 + $0x8] sm:$0xff] %vm196, %v557
    %572 = vst [vmem:[#allocation2 + $0x10] sm:$0xff] %v558
    %573 = vst.msk [vmem:[#allocation2 + $0x18] sm:$0xff] %vm196, %v559
    %574 = vst [vmem:[#allocation2 + $0x20] sm:$0xff] %v560
    %575 = vst.msk [vmem:[#allocation2 + $0x28] sm:$0xff] %vm196, %v561
    %576 = vst [vmem:[#allocation2 + $0x30] sm:$0xff] %v562
    %577 = vst.msk [vmem:[#allocation2 + $0x38] sm:$0xff] %vm196, %v563
    %578 = vst [vmem:[#allocation2 + $0x40] sm:$0xff] %v564
    %579 = vst.msk [vmem:[#allocation2 + $0x48] sm:$0xff] %vm196, %v565
    %580 = vst [vmem:[#allocation2 + $0x50] sm:$0xff] %v566
    %581 = vst.msk [vmem:[#allocation2 + $0x58] sm:$0xff] %vm196, %v567
    %582 = vst [vmem:[#allocation2 + $0x60] sm:$0xff] %v568
    %583 = vst.msk [vmem:[#allocation2 + $0x68] sm:$0xff] %vm196, %v569
    %v584 = vld [vmem:[#allocation2] sm:$0xff]
    %v585 = vld [vmem:[#allocation2 + $0x8] sm:$0xff]
    %v586 = vld [vmem:[#allocation2 + $0x10] sm:$0xff]
    %v587 = vld [vmem:[#allocation2 + $0x18] sm:$0xff]
    %v588 = vld [vmem:[#allocation2 + $0x20] sm:$0xff]
    %v589 = vld [vmem:[#allocation2 + $0x28] sm:$0xff]
    %v590 = vld [vmem:[#allocation2 + $0x30] sm:$0xff]
    %v591 = vld [vmem:[#allocation2 + $0x38] sm:$0xff]
    %v592 = vld [vmem:[#allocation2 + $0x40] sm:$0xff]
    %v593 = vld [vmem:[#allocation2 + $0x48] sm:$0xff]
    %v594 = vld [vmem:[#allocation2 + $0x50] sm:$0xff]
    %v595 = vld [vmem:[#allocation2 + $0x58] sm:$0xff]
    %v596 = vld [vmem:[#allocation2 + $0x60] sm:$0xff]
    %v597 = vld [vmem:[#allocation2 + $0x68] sm:$0xff]
    %s598 = scalar_lea.vmem %s0, 168
    %v599 = vld [vmem:[%s598] sm:$0xff]
    %v600 = vld [vmem:[%s598 + $0x8] sm:$0xff]
    %v601 = vld [vmem:[%s598 + $0x10] sm:$0xff]
    %v602 = vld [vmem:[%s598 + $0x18] sm:$0xff]
    %v603 = vld [vmem:[%s598 + $0x20] sm:$0xff]
    %v604 = vld [vmem:[%s598 + $0x28] sm:$0xff]
    %v605 = vld [vmem:[%s598 + $0x30] sm:$0xff]
    %s606 = scalar_lea.vmem %s1, 192
    %v607 = vld [vmem:[%s606] sm:$0xff]
    %v608 = vld [vmem:[%s606 + $0x8] sm:$0xff]
    %v609 = vld [vmem:[%s606 + $0x10] sm:$0xff]
    %v610 = vld [vmem:[%s606 + $0x18] sm:$0xff]
    %v611 = vld [vmem:[%s606 + $0x20] sm:$0xff]
    %v612 = vld [vmem:[%s606 + $0x28] sm:$0xff]
    %v613 = vld [vmem:[%s606 + $0x30] sm:$0xff]
    %v614 = vld [vmem:[%s606 + $0x38] sm:$0xff]
    %v616 = vsel %vm66, %v599, 0
    %v619 = vsel %vm66, %v600, 0
    %v622 = vsel %vm66, %v601, 0
    %v625 = vsel %vm66, %v602, 0
    %v628 = vsel %vm66, %v603, 0
    %v631 = vsel %vm66, %v604, 0
    %v634 = vsel %vm66, %v605, 0
    %636 = vmatprep.subr.mxu0 0.0
    %637 = vmatpush1.msra.mxu0 0.0
    %638 = vmatprep.subr.mxu0 0.0
    %639 = vmatpush1.msra.mxu0 0.0
    %640 = vmatprep.subr.mxu0 0.0
    %641 = vmatpush1.msra.mxu0 0.0
    %642 = vmatprep.subr.mxu0 0.0
    %643 = vmatpush1.msra.mxu0 0.0
    %644 = vmatprep.subr.mxu0 0.0
    %645 = vmatpush1.msra.mxu0 0.0
    %646 = vmatprep.subr.mxu0 0.0
    %647 = vmatpush1.msra.mxu0 0.0
    %648 = vmatprep.subr.mxu0 0.0
    %649 = vmatpush1.msra.mxu0 0.0
    %650 = vmatprep.subr.mxu0 0.0
    %651 = vmatpush1.msra.mxu0 0.0
    %652 = vmatprep.subr.mxu0 0.0
    %653 = vmatpush1.msra.mxu0 0.0
    %654 = vmatprep.subr.mxu0 0.0
    %655 = vmatpush1.msra.mxu0 0.0
    %656 = vmatprep.subr.mxu0 0.0
    %657 = vmatpush1.msra.mxu0 0.0
    %658 = vmatprep.subr.mxu0 0.0
    %659 = vmatpush1.msra.mxu0 0.0
    %660 = vmatprep.subr.mxu0 %v614
    %661 = vmatpush1.msra.mxu0 %v613
    %662 = vmatprep.subr.mxu0 %v612
    %663 = vmatpush1.msra.mxu0 %v611
    %664 = vmatprep.subr.mxu0 %v610
    %665 = vmatpush1.msra.mxu0 %v609
    %666 = vmatprep.subr.mxu0 %v608
    %667 = vmatpush1.msra.mxu0 %v607
    %668 = vmatprep.subr.mxu0 0.0
    %669 = vmatpush2.msra.mxu0 0.0
    %670 = vmatprep.subr.mxu0 0.0
    %671 = vmatpush2.msra.mxu0 0.0
    %672 = vmatprep.subr.mxu0 0.0
    %673 = vmatpush2.msra.mxu0 0.0
    %674 = vmatprep.subr.mxu0 0.0
    %675 = vmatpush2.msra.mxu0 0.0
    %676 = vmatprep.subr.mxu0 0.0
    %677 = vmatpush2.msra.mxu0 0.0
    %678 = vmatprep.subr.mxu0 0.0
    %679 = vmatpush2.msra.mxu0 0.0
    %680 = vmatprep.subr.mxu0 0.0
    %681 = vmatpush2.msra.mxu0 0.0
    %682 = vmatprep.subr.mxu0 0.0
    %683 = vmatpush2.msra.mxu0 0.0
    %684 = vmatprep.subr.mxu0 0.0
    %685 = vmatpush2.msra.mxu0 0.0
    %686 = vmatprep.subr.mxu0 0.0
    %687 = vmatpush2.msra.mxu0 0.0
    %688 = vmatprep.subr.mxu0 0.0
    %689 = vmatpush2.msra.mxu0 0.0
    %690 = vmatprep.subr.mxu0 0.0
    %691 = vmatpush2.msra.mxu0 0.0
    %692 = vmatprep.subr.mxu0 0.0
    %693 = vmatpush2.msra.mxu0 0.0
    %694 = vmatprep.subr.mxu0 0.0
    %695 = vmatpush2.msra.mxu0 0.0
    %696 = vmatprep.subr.mxu0 0.0
    %697 = vmatpush2.msra.mxu0 0.0
    %698 = vmatprep.subr.mxu0 0.0
    %699 = vmatpush2.msra.mxu0 0.0
    %700 = vmatprep.mubr.f32.mxu0 0.0
    %701 = vmatmul.mubr.f32.gmra.mxu0 %v616
    %v702 = vpop.f32.mrf.mxu0
    %v703 = vadd.f32 0.0, %v702
    %v704 = vpop.f32.mrf.mxu0
    %v705 = vadd.f32 0.0, %v704
    %706 = vmatprep.mubr.f32.mxu0 0.0
    %707 = vmatmul.mubr.f32.gmra.mxu0 %v619
    %v708 = vpop.f32.mrf.mxu0
    %v709 = vadd.f32 0.0, %v708
    %v710 = vpop.f32.mrf.mxu0
    %v711 = vadd.f32 0.0, %v710
    %712 = vmatprep.mubr.f32.mxu0 0.0
    %713 = vmatmul.mubr.f32.gmra.mxu0 %v622
    %v714 = vpop.f32.mrf.mxu0
    %v715 = vadd.f32 0.0, %v714
    %v716 = vpop.f32.mrf.mxu0
    %v717 = vadd.f32 0.0, %v716
    %718 = vmatprep.mubr.f32.mxu0 0.0
    %719 = vmatmul.mubr.f32.gmra.mxu0 %v625
    %v720 = vpop.f32.mrf.mxu0
    %v721 = vadd.f32 0.0, %v720
    %v722 = vpop.f32.mrf.mxu0
    %v723 = vadd.f32 0.0, %v722
    %724 = vmatprep.mubr.f32.mxu0 0.0
    %725 = vmatmul.mubr.f32.gmra.mxu0 %v628
    %v726 = vpop.f32.mrf.mxu0
    %v727 = vadd.f32 0.0, %v726
    %v728 = vpop.f32.mrf.mxu0
    %v729 = vadd.f32 0.0, %v728
    %730 = vmatprep.mubr.f32.mxu0 0.0
    %731 = vmatmul.mubr.f32.gmra.mxu0 %v631
    %v732 = vpop.f32.mrf.mxu0
    %v733 = vadd.f32 0.0, %v732
    %v734 = vpop.f32.mrf.mxu0
    %v735 = vadd.f32 0.0, %v734
    %736 = vmatprep.mubr.f32.mxu0 0.0
    %737 = vmatmul.mubr.f32.gmra.mxu0 %v634
    %v738 = vpop.f32.mrf.mxu0
    %v739 = vadd.f32 0.0, %v738
    %v740 = vpop.f32.mrf.mxu0
    %v741 = vadd.f32 0.0, %v740
    %742 = vdwg.mxu0
    %v743 = vadd.f32 %v584, %v703
    %v744 = vadd.f32 %v585, %v705
    %v745 = vadd.f32 %v586, %v709
    %v746 = vadd.f32 %v587, %v711
    %v747 = vadd.f32 %v588, %v715
    %v748 = vadd.f32 %v589, %v717
    %v749 = vadd.f32 %v590, %v721
    %v750 = vadd.f32 %v591, %v723
    %v751 = vadd.f32 %v592, %v727
    %v752 = vadd.f32 %v593, %v729
    %v753 = vadd.f32 %v594, %v733
    %v754 = vadd.f32 %v595, %v735
    %v755 = vadd.f32 %v596, %v739
    %v756 = vadd.f32 %v597, %v741
    %757 = vst [vmem:[#allocation2] sm:$0xff] %v743
    %758 = vst.msk [vmem:[#allocation2 + $0x8] sm:$0xff] %vm196, %v744
    %759 = vst [vmem:[#allocation2 + $0x10] sm:$0xff] %v745
    %760 = vst.msk [vmem:[#allocation2 + $0x18] sm:$0xff] %vm196, %v746
    %761 = vst [vmem:[#allocation2 + $0x20] sm:$0xff] %v747
    %762 = vst.msk [vmem:[#allocation2 + $0x28] sm:$0xff] %vm196, %v748
    %763 = vst [vmem:[#allocation2 + $0x30] sm:$0xff] %v749
    %764 = vst.msk [vmem:[#allocation2 + $0x38] sm:$0xff] %vm196, %v750
    %765 = vst [vmem:[#allocation2 + $0x40] sm:$0xff] %v751
    %766 = vst.msk [vmem:[#allocation2 + $0x48] sm:$0xff] %vm196, %v752
    %767 = vst [vmem:[#allocation2 + $0x50] sm:$0xff] %v753
    %768 = vst.msk [vmem:[#allocation2 + $0x58] sm:$0xff] %vm196, %v754
    %769 = vst [vmem:[#allocation2 + $0x60] sm:$0xff] %v755
    %770 = vst.msk [vmem:[#allocation2 + $0x68] sm:$0xff] %vm196, %v756
    %v771 = vld [vmem:[#allocation2] sm:$0xff]
    %v772 = vld [vmem:[#allocation2 + $0x8] sm:$0xff]
    %v773 = vld [vmem:[#allocation2 + $0x10] sm:$0xff]
    %v774 = vld [vmem:[#allocation2 + $0x18] sm:$0xff]
    %v775 = vld [vmem:[#allocation2 + $0x20] sm:$0xff]
    %v776 = vld [vmem:[#allocation2 + $0x28] sm:$0xff]
    %v777 = vld [vmem:[#allocation2 + $0x30] sm:$0xff]
    %v778 = vld [vmem:[#allocation2 + $0x38] sm:$0xff]
    %v779 = vld [vmem:[#allocation2 + $0x40] sm:$0xff]
    %v780 = vld [vmem:[#allocation2 + $0x48] sm:$0xff]
    %v781 = vld [vmem:[#allocation2 + $0x50] sm:$0xff]
    %v782 = vld [vmem:[#allocation2 + $0x58] sm:$0xff]
    %v783 = vld [vmem:[#allocation2 + $0x60] sm:$0xff]
    %v784 = vld [vmem:[#allocation2 + $0x68] sm:$0xff]
    %s785 = scalar_lea.vmem %s0, 224
    %v786 = vld [vmem:[%s785] sm:$0xff]
    %v787 = vld [vmem:[%s785 + $0x8] sm:$0xff]
    %v788 = vld [vmem:[%s785 + $0x10] sm:$0xff]
    %v789 = vld [vmem:[%s785 + $0x18] sm:$0xff]
    %v790 = vld [vmem:[%s785 + $0x20] sm:$0xff]
    %v791 = vld [vmem:[%s785 + $0x28] sm:$0xff]
    %v792 = vld [vmem:[%s785 + $0x30] sm:$0xff]
    %s793 = scalar_lea.vmem %s1, 256
    %v794 = vld [vmem:[%s793] sm:$0xff]
    %v795 = vld [vmem:[%s793 + $0x8] sm:$0xff]
    %v796 = vld [vmem:[%s793 + $0x10] sm:$0xff]
    %v797 = vld [vmem:[%s793 + $0x18] sm:$0xff]
    %v798 = vld [vmem:[%s793 + $0x20] sm:$0xff]
    %v799 = vld [vmem:[%s793 + $0x28] sm:$0xff]
    %v800 = vld [vmem:[%s793 + $0x30] sm:$0xff]
    %v801 = vld [vmem:[%s793 + $0x38] sm:$0xff]
    %v803 = vsel %vm66, %v786, 0
    %v806 = vsel %vm66, %v787, 0
    %v809 = vsel %vm66, %v788, 0
    %v812 = vsel %vm66, %v789, 0
    %v815 = vsel %vm66, %v790, 0
    %v818 = vsel %vm66, %v791, 0
    %v821 = vsel %vm66, %v792, 0
    %823 = vmatprep.subr.mxu0 0.0
    %824 = vmatpush1.msra.mxu0 0.0
    %825 = vmatprep.subr.mxu0 0.0
    %826 = vmatpush1.msra.mxu0 0.0
    %827 = vmatprep.subr.mxu0 0.0
    %828 = vmatpush1.msra.mxu0 0.0
    %829 = vmatprep.subr.mxu0 0.0
    %830 = vmatpush1.msra.mxu0 0.0
    %831 = vmatprep.subr.mxu0 0.0
    %832 = vmatpush1.msra.mxu0 0.0
    %833 = vmatprep.subr.mxu0 0.0
    %834 = vmatpush1.msra.mxu0 0.0
    %835 = vmatprep.subr.mxu0 0.0
    %836 = vmatpush1.msra.mxu0 0.0
    %837 = vmatprep.subr.mxu0 0.0
    %838 = vmatpush1.msra.mxu0 0.0
    %839 = vmatprep.subr.mxu0 0.0
    %840 = vmatpush1.msra.mxu0 0.0
    %841 = vmatprep.subr.mxu0 0.0
    %842 = vmatpush1.msra.mxu0 0.0
    %843 = vmatprep.subr.mxu0 0.0
    %844 = vmatpush1.msra.mxu0 0.0
    %845 = vmatprep.subr.mxu0 0.0
    %846 = vmatpush1.msra.mxu0 0.0
    %847 = vmatprep.subr.mxu0 %v801
    %848 = vmatpush1.msra.mxu0 %v800
    %849 = vmatprep.subr.mxu0 %v799
    %850 = vmatpush1.msra.mxu0 %v798
    %851 = vmatprep.subr.mxu0 %v797
    %852 = vmatpush1.msra.mxu0 %v796
    %853 = vmatprep.subr.mxu0 %v795
    %854 = vmatpush1.msra.mxu0 %v794
    %855 = vmatprep.subr.mxu0 0.0
    %856 = vmatpush2.msra.mxu0 0.0
    %857 = vmatprep.subr.mxu0 0.0
    %858 = vmatpush2.msra.mxu0 0.0
    %859 = vmatprep.subr.mxu0 0.0
    %860 = vmatpush2.msra.mxu0 0.0
    %861 = vmatprep.subr.mxu0 0.0
    %862 = vmatpush2.msra.mxu0 0.0
    %863 = vmatprep.subr.mxu0 0.0
    %864 = vmatpush2.msra.mxu0 0.0
    %865 = vmatprep.subr.mxu0 0.0
    %866 = vmatpush2.msra.mxu0 0.0
    %867 = vmatprep.subr.mxu0 0.0
    %868 = vmatpush2.msra.mxu0 0.0
    %869 = vmatprep.subr.mxu0 0.0
    %870 = vmatpush2.msra.mxu0 0.0
    %871 = vmatprep.subr.mxu0 0.0
    %872 = vmatpush2.msra.mxu0 0.0
    %873 = vmatprep.subr.mxu0 0.0
    %874 = vmatpush2.msra.mxu0 0.0
    %875 = vmatprep.subr.mxu0 0.0
    %876 = vmatpush2.msra.mxu0 0.0
    %877 = vmatprep.subr.mxu0 0.0
    %878 = vmatpush2.msra.mxu0 0.0
    %879 = vmatprep.subr.mxu0 0.0
    %880 = vmatpush2.msra.mxu0 0.0
    %881 = vmatprep.subr.mxu0 0.0
    %882 = vmatpush2.msra.mxu0 0.0
    %883 = vmatprep.subr.mxu0 0.0
    %884 = vmatpush2.msra.mxu0 0.0
    %885 = vmatprep.subr.mxu0 0.0
    %886 = vmatpush2.msra.mxu0 0.0
    %887 = vmatprep.mubr.f32.mxu0 0.0
    %888 = vmatmul.mubr.f32.gmra.mxu0 %v803
    %v889 = vpop.f32.mrf.mxu0
    %v890 = vadd.f32 0.0, %v889
    %v891 = vpop.f32.mrf.mxu0
    %v892 = vadd.f32 0.0, %v891
    %893 = vmatprep.mubr.f32.mxu0 0.0
    %894 = vmatmul.mubr.f32.gmra.mxu0 %v806
    %v895 = vpop.f32.mrf.mxu0
    %v896 = vadd.f32 0.0, %v895
    %v897 = vpop.f32.mrf.mxu0
    %v898 = vadd.f32 0.0, %v897
    %899 = vmatprep.mubr.f32.mxu0 0.0
    %900 = vmatmul.mubr.f32.gmra.mxu0 %v809
    %v901 = vpop.f32.mrf.mxu0
    %v902 = vadd.f32 0.0, %v901
    %v903 = vpop.f32.mrf.mxu0
    %v904 = vadd.f32 0.0, %v903
    %905 = vmatprep.mubr.f32.mxu0 0.0
    %906 = vmatmul.mubr.f32.gmra.mxu0 %v812
    %v907 = vpop.f32.mrf.mxu0
    %v908 = vadd.f32 0.0, %v907
    %v909 = vpop.f32.mrf.mxu0
    %v910 = vadd.f32 0.0, %v909
    %911 = vmatprep.mubr.f32.mxu0 0.0
    %912 = vmatmul.mubr.f32.gmra.mxu0 %v815
    %v913 = vpop.f32.mrf.mxu0
    %v914 = vadd.f32 0.0, %v913
    %v915 = vpop.f32.mrf.mxu0
    %v916 = vadd.f32 0.0, %v915
    %917 = vmatprep.mubr.f32.mxu0 0.0
    %918 = vmatmul.mubr.f32.gmra.mxu0 %v818
    %v919 = vpop.f32.mrf.mxu0
    %v920 = vadd.f32 0.0, %v919
    %v921 = vpop.f32.mrf.mxu0
    %v922 = vadd.f32 0.0, %v921
    %923 = vmatprep.mubr.f32.mxu0 0.0
    %924 = vmatmul.mubr.f32.gmra.mxu0 %v821
    %v925 = vpop.f32.mrf.mxu0
    %v926 = vadd.f32 0.0, %v925
    %v927 = vpop.f32.mrf.mxu0
    %v928 = vadd.f32 0.0, %v927
    %929 = vdwg.mxu0
    %v930 = vadd.f32 %v771, %v890
    %v931 = vadd.f32 %v772, %v892
    %v932 = vadd.f32 %v773, %v896
    %v933 = vadd.f32 %v774, %v898
    %v934 = vadd.f32 %v775, %v902
    %v935 = vadd.f32 %v776, %v904
    %v936 = vadd.f32 %v777, %v908
    %v937 = vadd.f32 %v778, %v910
    %v938 = vadd.f32 %v779, %v914
    %v939 = vadd.f32 %v780, %v916
    %v940 = vadd.f32 %v781, %v920
    %v941 = vadd.f32 %v782, %v922
    %v942 = vadd.f32 %v783, %v926
    %v943 = vadd.f32 %v784, %v928
    %944 = vst [vmem:[#allocation2] sm:$0xff] %v930
    %945 = vst.msk [vmem:[#allocation2 + $0x8] sm:$0xff] %vm196, %v931
    %946 = vst [vmem:[#allocation2 + $0x10] sm:$0xff] %v932
    %947 = vst.msk [vmem:[#allocation2 + $0x18] sm:$0xff] %vm196, %v933
    %948 = vst [vmem:[#allocation2 + $0x20] sm:$0xff] %v934
    %949 = vst.msk [vmem:[#allocation2 + $0x28] sm:$0xff] %vm196, %v935
    %950 = vst [vmem:[#allocation2 + $0x30] sm:$0xff] %v936
    %951 = vst.msk [vmem:[#allocation2 + $0x38] sm:$0xff] %vm196, %v937
    %952 = vst [vmem:[#allocation2 + $0x40] sm:$0xff] %v938
    %953 = vst.msk [vmem:[#allocation2 + $0x48] sm:$0xff] %vm196, %v939
    %954 = vst [vmem:[#allocation2 + $0x50] sm:$0xff] %v940
    %955 = vst.msk [vmem:[#allocation2 + $0x58] sm:$0xff] %vm196, %v941
    %956 = vst [vmem:[#allocation2 + $0x60] sm:$0xff] %v942
    %957 = vst.msk [vmem:[#allocation2 + $0x68] sm:$0xff] %vm196, %v943
    %v958 = vld [vmem:[#allocation2] sm:$0xff]
    %v959 = vld [vmem:[#allocation2 + $0x8] sm:$0xff]
    %v960 = vld [vmem:[#allocation2 + $0x10] sm:$0xff]
    %v961 = vld [vmem:[#allocation2 + $0x18] sm:$0xff]
    %v962 = vld [vmem:[#allocation2 + $0x20] sm:$0xff]
    %v963 = vld [vmem:[#allocation2 + $0x28] sm:$0xff]
    %v964 = vld [vmem:[#allocation2 + $0x30] sm:$0xff]
    %v965 = vld [vmem:[#allocation2 + $0x38] sm:$0xff]
    %v966 = vld [vmem:[#allocation2 + $0x40] sm:$0xff]
    %v967 = vld [vmem:[#allocation2 + $0x48] sm:$0xff]
    %v968 = vld [vmem:[#allocation2 + $0x50] sm:$0xff]
    %v969 = vld [vmem:[#allocation2 + $0x58] sm:$0xff]
    %v970 = vld [vmem:[#allocation2 + $0x60] sm:$0xff]
    %v971 = vld [vmem:[#allocation2 + $0x68] sm:$0xff]
    %v972 = vld [vmem:[%s2] sm:$0x3]
    %v974 = vlaneseq
    %v975 = vshrl.u32 %v974, 7
    %v976 = vsub.s32 0, %v975
    %v977 = vrot.slane %v972, %v976
    %v978 = vlaneseq
    %v979 = vshrl.u32 %v978, 7
    %v980 = vsub.s32 1, %v979
    %v981 = vrot.slane %v972, %v980
    %v984 = vadd.f32 %v958, %v977
    %v985 = vadd.f32 %v959, %v981
    %v986 = vadd.f32 %v960, %v977
    %v987 = vadd.f32 %v961, %v981
    %v988 = vadd.f32 %v962, %v977
    %v989 = vadd.f32 %v963, %v981
    %v990 = vadd.f32 %v964, %v977
    %v991 = vadd.f32 %v965, %v981
    %v992 = vadd.f32 %v966, %v977
    %v993 = vadd.f32 %v967, %v981
    %v994 = vadd.f32 %v968, %v977
    %v995 = vadd.f32 %v969, %v981
    %v996 = vadd.f32 %v970, %v977
    %v997 = vadd.f32 %v971, %v981
    %v998 = vsub.f32 0.0, %v984
    %v999 = vsub.f32 0.0, %v985
    %v1000 = vsub.f32 0.0, %v986
    %v1001 = vsub.f32 0.0, %v987
    %v1002 = vsub.f32 0.0, %v988
    %v1003 = vsub.f32 0.0, %v989
    %v1004 = vsub.f32 0.0, %v990
    %v1005 = vsub.f32 0.0, %v991
    %v1006 = vsub.f32 0.0, %v992
    %v1007 = vsub.f32 0.0, %v993
    %v1008 = vsub.f32 0.0, %v994
    %v1009 = vsub.f32 0.0, %v995
    %v1010 = vsub.f32 0.0, %v996
    %v1011 = vsub.f32 0.0, %v997
    %v1012 = vmul.f32 %v998, 1.442695
    %v1013 = vpow.pop %v1012
    %v1014 = vmul.f32 %v999, 1.442695
    %v1015 = vpow.pop %v1014
    %v1016 = vmul.f32 %v1000, 1.442695
    %v1017 = vpow.pop %v1016
    %v1018 = vmul.f32 %v1001, 1.442695
    %v1019 = vpow.pop %v1018
    %v1020 = vmul.f32 %v1002, 1.442695
    %v1021 = vpow.pop %v1020
    %v1022 = vmul.f32 %v1003, 1.442695
    %v1023 = vpow.pop %v1022
    %v1024 = vmul.f32 %v1004, 1.442695
    %v1025 = vpow.pop %v1024
    %v1026 = vmul.f32 %v1005, 1.442695
    %v1027 = vpow.pop %v1026
    %v1028 = vmul.f32 %v1006, 1.442695
    %v1029 = vpow.pop %v1028
    %v1030 = vmul.f32 %v1007, 1.442695
    %v1031 = vpow.pop %v1030
    %v1032 = vmul.f32 %v1008, 1.442695
    %v1033 = vpow.pop %v1032
    %v1034 = vmul.f32 %v1009, 1.442695
    %v1035 = vpow.pop %v1034
    %v1036 = vmul.f32 %v1010, 1.442695
    %v1037 = vpow.pop %v1036
    %v1038 = vmul.f32 %v1011, 1.442695
    %v1039 = vpow.pop %v1038
    %v1040 = vadd.f32 %v1013, 1.0
    %v1041 = vadd.f32 %v1015, 1.0
    %v1042 = vadd.f32 %v1017, 1.0
    %v1043 = vadd.f32 %v1019, 1.0
    %v1044 = vadd.f32 %v1021, 1.0
    %v1045 = vadd.f32 %v1023, 1.0
    %v1046 = vadd.f32 %v1025, 1.0
    %v1047 = vadd.f32 %v1027, 1.0
    %v1048 = vadd.f32 %v1029, 1.0
    %v1049 = vadd.f32 %v1031, 1.0
    %v1050 = vadd.f32 %v1033, 1.0
    %v1051 = vadd.f32 %v1035, 1.0
    %v1052 = vadd.f32 %v1037, 1.0
    %v1053 = vadd.f32 %v1039, 1.0
    %v1054 = vrcp.pop %v1040
    %v1055 = vrcp.pop %v1041
    %v1056 = vrcp.pop %v1042
    %v1057 = vrcp.pop %v1043
    %v1058 = vrcp.pop %v1044
    %v1059 = vrcp.pop %v1045
    %v1060 = vrcp.pop %v1046
    %v1061 = vrcp.pop %v1047
    %v1062 = vrcp.pop %v1048
    %v1063 = vrcp.pop %v1049
    %v1064 = vrcp.pop %v1050
    %v1065 = vrcp.pop %v1051
    %v1066 = vrcp.pop %v1052
    %v1067 = vrcp.pop %v1053
    %v1068 = vld [vmem:[%s3] sm:$0xff]
    %v1069 = vld [vmem:[%s3 + $0x8] sm:$0xff]
    %v1070 = vld [vmem:[%s3 + $0x10] sm:$0xff]
    %v1071 = vld [vmem:[%s3 + $0x18] sm:$0xf]
    %vm1072 = vcmask 457728
    %v1074 = vsel %vm1072, %v1068, 0
    %v1077 = vsel %vm1072, %v1069, 0
    %v1080 = vsel %vm1072, %v1070, 0
    %v1083 = vsel %vm1072, %v1071, 0
    %1085 = vmatprep.subr.mxu0 0.0
    %1086 = vmatpush1.msra.mxu0 0.0
    %1087 = vmatprep.subr.mxu0 0.0
    %1088 = vmatpush1.msra.mxu0 0.0
    %1089 = vmatprep.subr.mxu0 0.0
    %1090 = vmatpush1.msra.mxu0 0.0
    %1091 = vmatprep.subr.mxu0 0.0
    %1092 = vmatpush1.msra.mxu0 0.0
    %1093 = vmatprep.subr.mxu0 0.0
    %1094 = vmatpush1.msra.mxu0 0.0
    %1095 = vmatprep.subr.mxu0 0.0
    %1096 = vmatpush1.msra.mxu0 0.0
    %1097 = vmatprep.subr.mxu0 0.0
    %1098 = vmatpush1.msra.mxu0 0.0
    %1099 = vmatprep.subr.mxu0 0.0
    %1100 = vmatpush1.msra.mxu0 0.0
    %1101 = vmatprep.subr.mxu0 0.0
    %1102 = vmatpush1.msra.mxu0 0.0
    %1103 = vmatprep.subr.mxu0 %v1067
    %1104 = vmatpush1.msra.mxu0 %v1066
    %1105 = vmatprep.subr.mxu0 %v1065
    %1106 = vmatpush1.msra.mxu0 %v1064
    %1107 = vmatprep.subr.mxu0 %v1063
    %1108 = vmatpush1.msra.mxu0 %v1062
    %1109 = vmatprep.subr.mxu0 %v1061
    %1110 = vmatpush1.msra.mxu0 %v1060
    %1111 = vmatprep.subr.mxu0 %v1059
    %1112 = vmatpush1.msra.mxu0 %v1058
    %1113 = vmatprep.subr.mxu0 %v1057
    %1114 = vmatpush1.msra.mxu0 %v1056
    %1115 = vmatprep.subr.mxu0 %v1055
    %1116 = vmatpush1.msra.mxu0 %v1054
    %1117 = vmatprep.subr.mxu0 0.0
    %1118 = vmatpush2.msra.mxu0 0.0
    %1119 = vmatprep.subr.mxu0 0.0
    %1120 = vmatpush2.msra.mxu0 0.0
    %1121 = vmatprep.subr.mxu0 0.0
    %1122 = vmatpush2.msra.mxu0 0.0
    %1123 = vmatprep.subr.mxu0 0.0
    %1124 = vmatpush2.msra.mxu0 0.0
    %1125 = vmatprep.subr.mxu0 0.0
    %1126 = vmatpush2.msra.mxu0 0.0
    %1127 = vmatprep.subr.mxu0 0.0
    %1128 = vmatpush2.msra.mxu0 0.0
    %1129 = vmatprep.subr.mxu0 0.0
    %1130 = vmatpush2.msra.mxu0 0.0
    %1131 = vmatprep.subr.mxu0 0.0
    %1132 = vmatpush2.msra.mxu0 0.0
    %1133 = vmatprep.subr.mxu0 0.0
    %1134 = vmatpush2.msra.mxu0 0.0
    %1135 = vmatprep.subr.mxu0 0.0
    %1136 = vmatpush2.msra.mxu0 0.0
    %1137 = vmatprep.subr.mxu0 0.0
    %1138 = vmatpush2.msra.mxu0 0.0
    %1139 = vmatprep.subr.mxu0 0.0
    %1140 = vmatpush2.msra.mxu0 0.0
    %1141 = vmatprep.subr.mxu0 0.0
    %1142 = vmatpush2.msra.mxu0 0.0
    %1143 = vmatprep.subr.mxu0 0.0
    %1144 = vmatpush2.msra.mxu0 0.0
    %1145 = vmatprep.subr.mxu0 0.0
    %1146 = vmatpush2.msra.mxu0 0.0
    %1147 = vmatprep.subr.mxu0 0.0
    %1148 = vmatpush2.msra.mxu0 0.0
    %1149 = vmatprep.mubr.f32.mxu0 0.0
    %1150 = vmatmul.mubr.f32.gmra.mxu0 %v1074
    %v1151 = vpop.f32.mrf.mxu0
    %v1152 = vadd.f32 0.0, %v1151
    %v1153 = vpop.f32.mrf.mxu0
    %v1154 = vadd.f32 0.0, %v1153
    %1155 = vmatprep.mubr.f32.mxu0 0.0
    %1156 = vmatmul.mubr.f32.gmra.mxu0 %v1077
    %v1157 = vpop.f32.mrf.mxu0
    %v1158 = vadd.f32 0.0, %v1157
    %v1159 = vpop.f32.mrf.mxu0
    %v1160 = vadd.f32 0.0, %v1159
    %1161 = vmatprep.mubr.f32.mxu0 0.0
    %1162 = vmatmul.mubr.f32.gmra.mxu0 %v1080
    %v1163 = vpop.f32.mrf.mxu0
    %v1164 = vadd.f32 0.0, %v1163
    %v1165 = vpop.f32.mrf.mxu0
    %v1166 = vadd.f32 0.0, %v1165
    %1167 = vmatprep.mubr.f32.mxu0 0.0
    %1168 = vmatmul.mubr.f32.gmra.mxu0 %v1083
    %v1169 = vpop.f32.mrf.mxu0
    %v1170 = vadd.f32 0.0, %v1169
    %v1171 = vpop.f32.mrf.mxu0
    %v1172 = vadd.f32 0.0, %v1171
    %1173 = vdwg.mxu0
    %v1174 = vld [vmem:[%s4] sm:$0xff]
    %v1175 = vld [vmem:[%s4 + $0x8] sm:$0xff]
    %v1176 = vld [vmem:[%s4 + $0x10] sm:$0xff]
    %v1177 = vld [vmem:[%s4 + $0x18] sm:$0xff]
    %v1178 = vld [vmem:[%s4 + $0x20] sm:$0xff]
    %v1179 = vld [vmem:[%s4 + $0x28] sm:$0xff]
    %v1180 = vld [vmem:[%s4 + $0x30] sm:$0xff]
    %v1181 = vld [vmem:[%s4 + $0x38] sm:$0xff]
    %v1182 = vld [vmem:[%s4 + $0x40] sm:$0xff]
    %v1183 = vld [vmem:[%s4 + $0x48] sm:$0xff]
    %v1184 = vld [vmem:[%s4 + $0x50] sm:$0xff]
    %v1185 = vld [vmem:[%s4 + $0x58] sm:$0xff]
    %v1186 = vld [vmem:[%s4 + $0x60] sm:$0xff]
    %v1187 = vld [vmem:[%s4 + $0x68] sm:$0xff]
    %v1188 = vld [vmem:[%s4 + $0x70] sm:$0xff]
    %v1189 = vld [vmem:[%s4 + $0x78] sm:$0xff]
    %v1190 = vld [vmem:[%s4 + $0x80] sm:$0xff]
    %v1191 = vld [vmem:[%s4 + $0x88] sm:$0xff]
    %v1192 = vld [vmem:[%s4 + $0x90] sm:$0xff]
    %v1193 = vld [vmem:[%s4 + $0x98] sm:$0xff]
    %v1194 = vld [vmem:[%s4 + $0xa0] sm:$0xff]
    %v1196 = vsel %vm196, %v1154, 0
    %v1199 = vsel %vm196, %v1160, 0
    %v1202 = vsel %vm196, %v1166, 0
    %v1205 = vsel %vm196, %v1172, 0
    %1207 = vmatprep.subr.mxu0 0.0
    %1208 = vmatpush1.msra.mxu0 %v1189
    %1209 = vmatprep.subr.mxu0 0.0
    %1210 = vmatpush1.msra.mxu0 %v1188
    %1211 = vmatprep.subr.mxu0 0.0
    %1212 = vmatpush1.msra.mxu0 %v1187
    %1213 = vmatprep.subr.mxu0 0.0
    %1214 = vmatpush1.msra.mxu0 %v1186
    %1215 = vmatprep.subr.mxu0 0.0
    %1216 = vmatpush1.msra.mxu0 %v1185
    %1217 = vmatprep.subr.mxu0 0.0
    %1218 = vmatpush1.msra.mxu0 %v1184
    %1219 = vmatprep.subr.mxu0 0.0
    %1220 = vmatpush1.msra.mxu0 %v1183
    %1221 = vmatprep.subr.mxu0 0.0
    %1222 = vmatpush1.msra.mxu0 %v1182
    %1223 = vmatprep.subr.mxu0 0.0
    %1224 = vmatpush1.msra.mxu0 %v1181
    %1225 = vmatprep.subr.mxu0 0.0
    %1226 = vmatpush1.msra.mxu0 %v1180
    %1227 = vmatprep.subr.mxu0 0.0
    %1228 = vmatpush1.msra.mxu0 %v1179
    %1229 = vmatprep.subr.mxu0 0.0
    %1230 = vmatpush1.msra.mxu0 %v1178
    %1231 = vmatprep.subr.mxu0 0.0
    %1232 = vmatpush1.msra.mxu0 %v1177
    %1233 = vmatprep.subr.mxu0 0.0
    %1234 = vmatpush1.msra.mxu0 %v1176
    %1235 = vmatprep.subr.mxu0 0.0
    %1236 = vmatpush1.msra.mxu0 %v1175
    %1237 = vmatprep.subr.mxu0 0.0
    %1238 = vmatpush1.msra.mxu0 %v1174
    %1239 = vmatprep.subr.mxu0 0.0
    %1240 = vmatpush2.msra.mxu0 0.0
    %1241 = vmatprep.subr.mxu0 0.0
    %1242 = vmatpush2.msra.mxu0 0.0
    %1243 = vmatprep.subr.mxu0 0.0
    %1244 = vmatpush2.msra.mxu0 0.0
    %1245 = vmatprep.subr.mxu0 0.0
    %1246 = vmatpush2.msra.mxu0 0.0
    %1247 = vmatprep.subr.mxu0 0.0
    %1248 = vmatpush2.msra.mxu0 0.0
    %1249 = vmatprep.subr.mxu0 0.0
    %1250 = vmatpush2.msra.mxu0 0.0
    %1251 = vmatprep.subr.mxu0 0.0
    %1252 = vmatpush2.msra.mxu0 0.0
    %1253 = vmatprep.subr.mxu0 0.0
    %1254 = vmatpush2.msra.mxu0 0.0
    %1255 = vmatprep.subr.mxu0 0.0
    %1256 = vmatpush2.msra.mxu0 0.0
    %1257 = vmatprep.subr.mxu0 0.0
    %1258 = vmatpush2.msra.mxu0 0.0
    %1259 = vmatprep.subr.mxu0 0.0
    %1260 = vmatpush2.msra.mxu0 0.0
    %1261 = vmatprep.subr.mxu0 0.0
    %1262 = vmatpush2.msra.mxu0 %v1194
    %1263 = vmatprep.subr.mxu0 0.0
    %1264 = vmatpush2.msra.mxu0 %v1193
    %1265 = vmatprep.subr.mxu0 0.0
    %1266 = vmatpush2.msra.mxu0 %v1192
    %1267 = vmatprep.subr.mxu0 0.0
    %1268 = vmatpush2.msra.mxu0 %v1191
    %1269 = vmatprep.subr.mxu0 0.0
    %1270 = vmatpush2.msra.mxu0 %v1190
    %1271 = vmatprep.mubr.f32.mxu0 %v1196
    %1272 = vmatmul.mubr.f32.gmra.mxu0 %v1152
    %v1273 = vpop.f32.mrf.mxu0
    %v1274 = vadd.f32 0.0, %v1273
    %v1275 = vpop.f32.mrf.mxu0
    %1276 = vmatprep.mubr.f32.mxu0 %v1199
    %1277 = vmatmul.mubr.f32.gmra.mxu0 %v1158
    %v1278 = vpop.f32.mrf.mxu0
    %v1279 = vadd.f32 0.0, %v1278
    %v1280 = vpop.f32.mrf.mxu0
    %1281 = vmatprep.mubr.f32.mxu0 %v1202
    %1282 = vmatmul.mubr.f32.gmra.mxu0 %v1164
    %v1283 = vpop.f32.mrf.mxu0
    %v1284 = vadd.f32 0.0, %v1283
    %v1285 = vpop.f32.mrf.mxu0
    %1286 = vmatprep.mubr.f32.mxu0 %v1205
    %1287 = vmatmul.mubr.f32.gmra.mxu0 %v1170
    %v1288 = vpop.f32.mrf.mxu0
    %v1289 = vadd.f32 0.0, %v1288
    %v1290 = vpop.f32.mrf.mxu0
    %1291 = vdwg.mxu0
    %vm1292 = vcmask 687104
    %1293 = vst.msk [vmem:[#allocation4] sm:$0xff] %vm1292, %v1274
    %1294 = vst.msk [vmem:[#allocation4 + $0x8] sm:$0xff] %vm1292, %v1279
    %1295 = vst.msk [vmem:[#allocation4 + $0x10] sm:$0xff] %vm1292, %v1284
    %vm1296 = vcmask 683008
    %1297 = vst.msk [vmem:[#allocation4 + $0x18] sm:$0xf] %vm1296, %v1289
    %v1298 = vld [vmem:[#allocation4] sm:$0xff]
    %v1299 = vld [vmem:[#allocation4 + $0x8] sm:$0x3]
    %1300 = vst.msk [vmem:[#allocation5] sm:$0xff] %vm1292, %v1298
    %vm1301 = vcmask 680960
    %1302 = vst.msk [vmem:[#allocation5 + $0x8] sm:$0x3] %vm1301, %v1299
    %v1303 = vld [vmem:[#allocation4 + $0xe] sm:$0xff]
    %v1304 = vld [vmem:[#allocation4 + $0x16] sm:$0x3]
    %1305 = vst.msk [vmem:[#allocation5 + $0xa] sm:$0xff] %vm1292, %v1303
    %1306 = vst.msk [vmem:[#allocation5 + $0x12] sm:$0x3] %vm1301, %v1304
    %v1307 = vld [vmem:[#allocation5] sm:$0xff]
    %v1308 = vld [vmem:[#allocation5 + $0x8] sm:$0xff]
    %v1309 = vld [vmem:[#allocation5 + $0x10] sm:$0xf]
    %v1310 = vld [vmem:[%s5] sm:$0xff]
    %v1311 = vld [vmem:[%s5 + $0x8] sm:$0xff]
    %v1312 = vld [vmem:[%s5 + $0x10] sm:$0xff]
    %v1313 = vld [vmem:[%s5 + $0x18] sm:$0xff]
    %v1314 = vld [vmem:[%s5 + $0x20] sm:$0xff]
    %v1315 = vld [vmem:[%s5 + $0x28] sm:$0xff]
    %v1316 = vld [vmem:[%s5 + $0x30] sm:$0xff]
    %v1317 = vld [vmem:[%s5 + $0x38] sm:$0xff]
    %v1318 = vld [vmem:[%s5 + $0x40] sm:$0xff]
    %v1319 = vld [vmem:[%s5 + $0x48] sm:$0xff]
    %v1320 = vld [vmem:[%s5 + $0x50] sm:$0xff]
    %v1321 = vld [vmem:[%s5 + $0x58] sm:$0xff]
    %v1322 = vld [vmem:[%s5 + $0x60] sm:$0xff]
    %v1323 = vld [vmem:[%s5 + $0x68] sm:$0xff]
    %v1324 = vld [vmem:[%s5 + $0x70] sm:$0xff]
    %v1325 = vld [vmem:[%s5 + $0x78] sm:$0xff]
    %v1326 = vld [vmem:[%s5 + $0x80] sm:$0xff]
    %v1327 = vld [vmem:[%s5 + $0x88] sm:$0xff]
    %v1328 = vld [vmem:[%s5 + $0x90] sm:$0xff]
    %v1329 = vld [vmem:[%s5 + $0x98] sm:$0xff]
    %v1330 = vld [vmem:[%s5 + $0xa0] sm:$0xf]
    %v1331 = vld [vmem:[%s5 + $0xa8] sm:$0xf]
    %v1333 = vsel %vm1292, %v1307, 0
    %v1336 = vsel %vm1292, %v1308, 0
    %v1339 = vsel %vm1292, %v1309, 0
    %vm1341 = vcmask 1043456
    %v1343 = vsel %vm1341, %v1330, 0
    %v1346 = vsel %vm1341, %v1331, 0
    %1348 = vmatprep.subr.mxu0 0.0
    %1349 = vmatpush1.msra.mxu0 0.0
    %1350 = vmatprep.subr.mxu0 0.0
    %1351 = vmatpush1.msra.mxu0 0.0
    %1352 = vmatprep.subr.mxu0 0.0
    %1353 = vmatpush1.msra.mxu0 0.0
    %1354 = vmatprep.subr.mxu0 0.0
    %1355 = vmatpush1.msra.mxu0 0.0
    %1356 = vmatprep.subr.mxu0 0.0
    %1357 = vmatpush1.msra.mxu0 0.0
    %1358 = vmatprep.subr.mxu0 %v1346
    %1359 = vmatpush1.msra.mxu0 %v1343
    %1360 = vmatprep.subr.mxu0 %v1329
    %1361 = vmatpush1.msra.mxu0 %v1328
    %1362 = vmatprep.subr.mxu0 %v1327
    %1363 = vmatpush1.msra.mxu0 %v1326
    %1364 = vmatprep.subr.mxu0 %v1325
    %1365 = vmatpush1.msra.mxu0 %v1324
    %1366 = vmatprep.subr.mxu0 %v1323
    %1367 = vmatpush1.msra.mxu0 %v1322
    %1368 = vmatprep.subr.mxu0 %v1321
    %1369 = vmatpush1.msra.mxu0 %v1320
    %1370 = vmatprep.subr.mxu0 %v1319
    %1371 = vmatpush1.msra.mxu0 %v1318
    %1372 = vmatprep.subr.mxu0 %v1317
    %1373 = vmatpush1.msra.mxu0 %v1316
    %1374 = vmatprep.subr.mxu0 %v1315
    %1375 = vmatpush1.msra.mxu0 %v1314
    %1376 = vmatprep.subr.mxu0 %v1313
    %1377 = vmatpush1.msra.mxu0 %v1312
    %1378 = vmatprep.subr.mxu0 %v1311
    %1379 = vmatpush1.msra.mxu0 %v1310
    %1380 = vmatprep.subr.mxu0 0.0
    %1381 = vmatpush2.msra.mxu0 0.0
    %1382 = vmatprep.subr.mxu0 0.0
    %1383 = vmatpush2.msra.mxu0 0.0
    %1384 = vmatprep.subr.mxu0 0.0
    %1385 = vmatpush2.msra.mxu0 0.0
    %1386 = vmatprep.subr.mxu0 0.0
    %1387 = vmatpush2.msra.mxu0 0.0
    %1388 = vmatprep.subr.mxu0 0.0
    %1389 = vmatpush2.msra.mxu0 0.0
    %1390 = vmatprep.subr.mxu0 0.0
    %1391 = vmatpush2.msra.mxu0 0.0
    %1392 = vmatprep.subr.mxu0 0.0
    %1393 = vmatpush2.msra.mxu0 0.0
    %1394 = vmatprep.subr.mxu0 0.0
    %1395 = vmatpush2.msra.mxu0 0.0
    %1396 = vmatprep.subr.mxu0 0.0
    %1397 = vmatpush2.msra.mxu0 0.0
    %1398 = vmatprep.subr.mxu0 0.0
    %1399 = vmatpush2.msra.mxu0 0.0
    %1400 = vmatprep.subr.mxu0 0.0
    %1401 = vmatpush2.msra.mxu0 0.0
    %1402 = vmatprep.subr.mxu0 0.0
    %1403 = vmatpush2.msra.mxu0 0.0
    %1404 = vmatprep.subr.mxu0 0.0
    %1405 = vmatpush2.msra.mxu0 0.0
    %1406 = vmatprep.subr.mxu0 0.0
    %1407 = vmatpush2.msra.mxu0 0.0
    %1408 = vmatprep.subr.mxu0 0.0
    %1409 = vmatpush2.msra.mxu0 0.0
    %1410 = vmatprep.subr.mxu0 0.0
    %1411 = vmatpush2.msra.mxu0 0.0
    %1412 = vmatprep.mubr.f32.mxu0 0.0
    %1413 = vmatmul.mubr.f32.gmra.mxu0 %v1333
    %v1414 = vpop.f32.mrf.mxu0
    %v1415 = vadd.f32 0.0, %v1414
    %v1416 = vpop.f32.mrf.mxu0
    %v1417 = vadd.f32 0.0, %v1416
    %1418 = vmatprep.mubr.f32.mxu0 0.0
    %1419 = vmatmul.mubr.f32.gmra.mxu0 %v1336
    %v1420 = vpop.f32.mrf.mxu0
    %v1421 = vadd.f32 0.0, %v1420
    %v1422 = vpop.f32.mrf.mxu0
    %v1423 = vadd.f32 0.0, %v1422
    %1424 = vmatprep.mubr.f32.mxu0 0.0
    %1425 = vmatmul.mubr.f32.gmra.mxu0 %v1339
    %v1426 = vpop.f32.mrf.mxu0
    %v1427 = vadd.f32 0.0, %v1426
    %v1428 = vpop.f32.mrf.mxu0
    %v1429 = vadd.f32 0.0, %v1428
    %1430 = vdwg.mxu0
    %1431 = vst [vmem:[#allocation3] sm:$0xff] %v1415
    %1432 = vst.msk [vmem:[#allocation3 + $0x8] sm:$0xff] %vm66, %v1417
    %1433 = vst [vmem:[#allocation3 + $0x10] sm:$0xff] %v1421
    %1434 = vst.msk [vmem:[#allocation3 + $0x18] sm:$0xff] %vm66, %v1423
    %1435 = vst [vmem:[#allocation3 + $0x20] sm:$0xf] %v1427
    %vm1436 = vcmask 257024
    %1437 = vst.msk [vmem:[#allocation3 + $0x28] sm:$0xf] %vm1436, %v1429
    %v1438 = vld [vmem:[#allocation4 + $0x1] sm:$0xff]
    %v1439 = vld [vmem:[#allocation4 + $0x9] sm:$0x3]
    %1440 = vst.msk [vmem:[#allocation5] sm:$0xff] %vm1292, %v1438
    %1441 = vst.msk [vmem:[#allocation5 + $0x8] sm:$0x3] %vm1301, %v1439
    %v1442 = vld [vmem:[#allocation4 + $0xf] sm:$0xff]
    %v1443 = vld [vmem:[#allocation4 + $0x17] sm:$0x3]
    %1444 = vst.msk [vmem:[#allocation5 + $0xa] sm:$0xff] %vm1292, %v1442
    %1445 = vst.msk [vmem:[#allocation5 + $0x12] sm:$0x3] %vm1301, %v1443
    %v1446 = vld [vmem:[#allocation3] sm:$0xff]
    %v1447 = vld [vmem:[#allocation3 + $0x8] sm:$0xff]
    %v1448 = vld [vmem:[#allocation3 + $0x10] sm:$0xff]
    %v1449 = vld [vmem:[#allocation3 + $0x18] sm:$0xff]
    %v1450 = vld [vmem:[#allocation3 + $0x20] sm:$0xf]
    %v1451 = vld [vmem:[#allocation3 + $0x28] sm:$0xf]
    %v1452 = vld [vmem:[#allocation5] sm:$0xff]
    %v1453 = vld [vmem:[#allocation5 + $0x8] sm:$0xff]
    %v1454 = vld [vmem:[#allocation5 + $0x10] sm:$0xf]
    %s1455 = scalar_lea.vmem %s5, 176
    %v1456 = vld [vmem:[%s1455] sm:$0xff]
    %v1457 = vld [vmem:[%s1455 + $0x8] sm:$0xff]
    %v1458 = vld [vmem:[%s1455 + $0x10] sm:$0xff]
    %v1459 = vld [vmem:[%s1455 + $0x18] sm:$0xff]
    %v1460 = vld [vmem:[%s1455 + $0x20] sm:$0xff]
    %v1461 = vld [vmem:[%s1455 + $0x28] sm:$0xff]
    %v1462 = vld [vmem:[%s1455 + $0x30] sm:$0xff]
    %v1463 = vld [vmem:[%s1455 + $0x38] sm:$0xff]
    %v1464 = vld [vmem:[%s1455 + $0x40] sm:$0xff]
    %v1465 = vld [vmem:[%s1455 + $0x48] sm:$0xff]
    %v1466 = vld [vmem:[%s1455 + $0x50] sm:$0xff]
    %v1467 = vld [vmem:[%s1455 + $0x58] sm:$0xff]
    %v1468 = vld [vmem:[%s1455 + $0x60] sm:$0xff]
    %v1469 = vld [vmem:[%s1455 + $0x68] sm:$0xff]
    %v1470 = vld [vmem:[%s1455 + $0x70] sm:$0xff]
    %v1471 = vld [vmem:[%s1455 + $0x78] sm:$0xff]
    %v1472 = vld [vmem:[%s1455 + $0x80] sm:$0xff]
    %v1473 = vld [vmem:[%s1455 + $0x88] sm:$0xff]
    %v1474 = vld [vmem:[%s1455 + $0x90] sm:$0xff]
    %v1475 = vld [vmem:[%s1455 + $0x98] sm:$0xff]
    %v1476 = vld [vmem:[%s1455 + $0xa0] sm:$0xf]
    %v1477 = vld [vmem:[%s1455 + $0xa8] sm:$0xf]
    %v1479 = vsel %vm1292, %v1452, 0
    %v1482 = vsel %vm1292, %v1453, 0
    %v1485 = vsel %vm1292, %v1454, 0
    %v1488 = vsel %vm1341, %v1476, 0
    %v1491 = vsel %vm1341, %v1477, 0
    %1493 = vmatprep.subr.mxu0 0.0
    %1494 = vmatpush1.msra.mxu0 0.0
    %1495 = vmatprep.subr.mxu0 0.0
    %1496 = vmatpush1.msra.mxu0 0.0
    %1497 = vmatprep.subr.mxu0 0.0
    %1498 = vmatpush1.msra.mxu0 0.0
    %1499 = vmatprep.subr.mxu0 0.0
    %1500 = vmatpush1.msra.mxu0 0.0
    %1501 = vmatprep.subr.mxu0 0.0
    %1502 = vmatpush1.msra.mxu0 0.0
    %1503 = vmatprep.subr.mxu0 %v1491
    %1504 = vmatpush1.msra.mxu0 %v1488
    %1505 = vmatprep.subr.mxu0 %v1475
    %1506 = vmatpush1.msra.mxu0 %v1474
    %1507 = vmatprep.subr.mxu0 %v1473
    %1508 = vmatpush1.msra.mxu0 %v1472
    %1509 = vmatprep.subr.mxu0 %v1471
    %1510 = vmatpush1.msra.mxu0 %v1470
    %1511 = vmatprep.subr.mxu0 %v1469
    %1512 = vmatpush1.msra.mxu0 %v1468
    %1513 = vmatprep.subr.mxu0 %v1467
    %1514 = vmatpush1.msra.mxu0 %v1466
    %1515 = vmatprep.subr.mxu0 %v1465
    %1516 = vmatpush1.msra.mxu0 %v1464
    %1517 = vmatprep.subr.mxu0 %v1463
    %1518 = vmatpush1.msra.mxu0 %v1462
    %1519 = vmatprep.subr.mxu0 %v1461
    %1520 = vmatpush1.msra.mxu0 %v1460
    %1521 = vmatprep.subr.mxu0 %v1459
    %1522 = vmatpush1.msra.mxu0 %v1458
    %1523 = vmatprep.subr.mxu0 %v1457
    %1524 = vmatpush1.msra.mxu0 %v1456
    %1525 = vmatprep.subr.mxu0 0.0
    %1526 = vmatpush2.msra.mxu0 0.0
    %1527 = vmatprep.subr.mxu0 0.0
    %1528 = vmatpush2.msra.mxu0 0.0
    %1529 = vmatprep.subr.mxu0 0.0
    %1530 = vmatpush2.msra.mxu0 0.0
    %1531 = vmatprep.subr.mxu0 0.0
    %1532 = vmatpush2.msra.mxu0 0.0
    %1533 = vmatprep.subr.mxu0 0.0
    %1534 = vmatpush2.msra.mxu0 0.0
    %1535 = vmatprep.subr.mxu0 0.0
    %1536 = vmatpush2.msra.mxu0 0.0
    %1537 = vmatprep.subr.mxu0 0.0
    %1538 = vmatpush2.msra.mxu0 0.0
    %1539 = vmatprep.subr.mxu0 0.0
    %1540 = vmatpush2.msra.mxu0 0.0
    %1541 = vmatprep.subr.mxu0 0.0
    %1542 = vmatpush2.msra.mxu0 0.0
    %1543 = vmatprep.subr.mxu0 0.0
    %1544 = vmatpush2.msra.mxu0 0.0
    %1545 = vmatprep.subr.mxu0 0.0
    %1546 = vmatpush2.msra.mxu0 0.0
    %1547 = vmatprep.subr.mxu0 0.0
    %1548 = vmatpush2.msra.mxu0 0.0
    %1549 = vmatprep.subr.mxu0 0.0
    %1550 = vmatpush2.msra.mxu0 0.0
    %1551 = vmatprep.subr.mxu0 0.0
    %1552 = vmatpush2.msra.mxu0 0.0
    %1553 = vmatprep.subr.mxu0 0.0
    %1554 = vmatpush2.msra.mxu0 0.0
    %1555 = vmatprep.subr.mxu0 0.0
    %1556 = vmatpush2.msra.mxu0 0.0
    %1557 = vmatprep.mubr.f32.mxu0 0.0
    %1558 = vmatmul.mubr.f32.gmra.mxu0 %v1479
    %v1559 = vpop.f32.mrf.mxu0
    %v1560 = vadd.f32 0.0, %v1559
    %v1561 = vpop.f32.mrf.mxu0
    %v1562 = vadd.f32 0.0, %v1561
    %1563 = vmatprep.mubr.f32.mxu0 0.0
    %1564 = vmatmul.mubr.f32.gmra.mxu0 %v1482
    %v1565 = vpop.f32.mrf.mxu0
    %v1566 = vadd.f32 0.0, %v1565
    %v1567 = vpop.f32.mrf.mxu0
    %v1568 = vadd.f32 0.0, %v1567
    %1569 = vmatprep.mubr.f32.mxu0 0.0
    %1570 = vmatmul.mubr.f32.gmra.mxu0 %v1485
    %v1571 = vpop.f32.mrf.mxu0
    %v1572 = vadd.f32 0.0, %v1571
    %v1573 = vpop.f32.mrf.mxu0
    %v1574 = vadd.f32 0.0, %v1573
    %1575 = vdwg.mxu0
    %v1576 = vadd.f32 %v1446, %v1560
    %v1577 = vadd.f32 %v1447, %v1562
    %v1578 = vadd.f32 %v1448, %v1566
    %v1579 = vadd.f32 %v1449, %v1568
    %v1580 = vadd.f32 %v1450, %v1572
    %v1581 = vadd.f32 %v1451, %v1574
    %1582 = vst [vmem:[#allocation3] sm:$0xff] %v1576
    %1583 = vst.msk [vmem:[#allocation3 + $0x8] sm:$0xff] %vm66, %v1577
    %1584 = vst [vmem:[#allocation3 + $0x10] sm:$0xff] %v1578
    %1585 = vst.msk [vmem:[#allocation3 + $0x18] sm:$0xff] %vm66, %v1579
    %1586 = vst [vmem:[#allocation3 + $0x20] sm:$0xf] %v1580
    %1587 = vst.msk [vmem:[#allocation3 + $0x28] sm:$0xf] %vm1436, %v1581
    %v1588 = vld [vmem:[#allocation4 + $0x2] sm:$0xff]
    %v1589 = vld [vmem:[#allocation4 + $0xa] sm:$0x3]
    %1590 = vst.msk [vmem:[#allocation5] sm:$0xff] %vm1292, %v1588
    %1591 = vst.msk [vmem:[#allocation5 + $0x8] sm:$0x3] %vm1301, %v1589
    %v1592 = vld [vmem:[#allocation4 + $0x10] sm:$0xff]
    %v1593 = vld [vmem:[#allocation4 + $0x18] sm:$0x3]
    %1594 = vst.msk [vmem:[#allocation5 + $0xa] sm:$0xff] %vm1292, %v1592
    %1595 = vst.msk [vmem:[#allocation5 + $0x12] sm:$0x3] %vm1301, %v1593
    %v1596 = vld [vmem:[#allocation3] sm:$0xff]
    %v1597 = vld [vmem:[#allocation3 + $0x8] sm:$0xff]
    %v1598 = vld [vmem:[#allocation3 + $0x10] sm:$0xff]
    %v1599 = vld [vmem:[#allocation3 + $0x18] sm:$0xff]
    %v1600 = vld [vmem:[#allocation3 + $0x20] sm:$0xf]
    %v1601 = vld [vmem:[#allocation3 + $0x28] sm:$0xf]
    %v1602 = vld [vmem:[#allocation5] sm:$0xff]
    %v1603 = vld [vmem:[#allocation5 + $0x8] sm:$0xff]
    %v1604 = vld [vmem:[#allocation5 + $0x10] sm:$0xf]
    %s1605 = scalar_lea.vmem %s5, 352
    %v1606 = vld [vmem:[%s1605] sm:$0xff]
    %v1607 = vld [vmem:[%s1605 + $0x8] sm:$0xff]
    %v1608 = vld [vmem:[%s1605 + $0x10] sm:$0xff]
    %v1609 = vld [vmem:[%s1605 + $0x18] sm:$0xff]
    %v1610 = vld [vmem:[%s1605 + $0x20] sm:$0xff]
    %v1611 = vld [vmem:[%s1605 + $0x28] sm:$0xff]
    %v1612 = vld [vmem:[%s1605 + $0x30] sm:$0xff]
    %v1613 = vld [vmem:[%s1605 + $0x38] sm:$0xff]
    %v1614 = vld [vmem:[%s1605 + $0x40] sm:$0xff]
    %v1615 = vld [vmem:[%s1605 + $0x48] sm:$0xff]
    %v1616 = vld [vmem:[%s1605 + $0x50] sm:$0xff]
    %v1617 = vld [vmem:[%s1605 + $0x58] sm:$0xff]
    %v1618 = vld [vmem:[%s1605 + $0x60] sm:$0xff]
    %v1619 = vld [vmem:[%s1605 + $0x68] sm:$0xff]
    %v1620 = vld [vmem:[%s1605 + $0x70] sm:$0xff]
    %v1621 = vld [vmem:[%s1605 + $0x78] sm:$0xff]
    %v1622 = vld [vmem:[%s1605 + $0x80] sm:$0xff]
    %v1623 = vld [vmem:[%s1605 + $0x88] sm:$0xff]
    %v1624 = vld [vmem:[%s1605 + $0x90] sm:$0xff]
    %v1625 = vld [vmem:[%s1605 + $0x98] sm:$0xff]
    %v1626 = vld [vmem:[%s1605 + $0xa0] sm:$0xf]
    %v1627 = vld [vmem:[%s1605 + $0xa8] sm:$0xf]
    %v1629 = vsel %vm1292, %v1602, 0
    %v1632 = vsel %vm1292, %v1603, 0
    %v1635 = vsel %vm1292, %v1604, 0
    %v1638 = vsel %vm1341, %v1626, 0
    %v1641 = vsel %vm1341, %v1627, 0
    %1643 = vmatprep.subr.mxu0 0.0
    %1644 = vmatpush1.msra.mxu0 0.0
    %1645 = vmatprep.subr.mxu0 0.0
    %1646 = vmatpush1.msra.mxu0 0.0
    %1647 = vmatprep.subr.mxu0 0.0
    %1648 = vmatpush1.msra.mxu0 0.0
    %1649 = vmatprep.subr.mxu0 0.0
    %1650 = vmatpush1.msra.mxu0 0.0
    %1651 = vmatprep.subr.mxu0 0.0
    %1652 = vmatpush1.msra.mxu0 0.0
    %1653 = vmatprep.subr.mxu0 %v1641
    %1654 = vmatpush1.msra.mxu0 %v1638
    %1655 = vmatprep.subr.mxu0 %v1625
    %1656 = vmatpush1.msra.mxu0 %v1624
    %1657 = vmatprep.subr.mxu0 %v1623
    %1658 = vmatpush1.msra.mxu0 %v1622
    %1659 = vmatprep.subr.mxu0 %v1621
    %1660 = vmatpush1.msra.mxu0 %v1620
    %1661 = vmatprep.subr.mxu0 %v1619
    %1662 = vmatpush1.msra.mxu0 %v1618
    %1663 = vmatprep.subr.mxu0 %v1617
    %1664 = vmatpush1.msra.mxu0 %v1616
    %1665 = vmatprep.subr.mxu0 %v1615
    %1666 = vmatpush1.msra.mxu0 %v1614
    %1667 = vmatprep.subr.mxu0 %v1613
    %1668 = vmatpush1.msra.mxu0 %v1612
    %1669 = vmatprep.subr.mxu0 %v1611
    %1670 = vmatpush1.msra.mxu0 %v1610
    %1671 = vmatprep.subr.mxu0 %v1609
    %1672 = vmatpush1.msra.mxu0 %v1608
    %1673 = vmatprep.subr.mxu0 %v1607
    %1674 = vmatpush1.msra.mxu0 %v1606
    %1675 = vmatprep.subr.mxu0 0.0
    %1676 = vmatpush2.msra.mxu0 0.0
    %1677 = vmatprep.subr.mxu0 0.0
    %1678 = vmatpush2.msra.mxu0 0.0
    %1679 = vmatprep.subr.mxu0 0.0
    %1680 = vmatpush2.msra.mxu0 0.0
    %1681 = vmatprep.subr.mxu0 0.0
    %1682 = vmatpush2.msra.mxu0 0.0
    %1683 = vmatprep.subr.mxu0 0.0
    %1684 = vmatpush2.msra.mxu0 0.0
    %1685 = vmatprep.subr.mxu0 0.0
    %1686 = vmatpush2.msra.mxu0 0.0
    %1687 = vmatprep.subr.mxu0 0.0
    %1688 = vmatpush2.msra.mxu0 0.0
    %1689 = vmatprep.subr.mxu0 0.0
    %1690 = vmatpush2.msra.mxu0 0.0
    %1691 = vmatprep.subr.mxu0 0.0
    %1692 = vmatpush2.msra.mxu0 0.0
    %1693 = vmatprep.subr.mxu0 0.0
    %1694 = vmatpush2.msra.mxu0 0.0
    %1695 = vmatprep.subr.mxu0 0.0
    %1696 = vmatpush2.msra.mxu0 0.0
    %1697 = vmatprep.subr.mxu0 0.0
    %1698 = vmatpush2.msra.mxu0 0.0
    %1699 = vmatprep.subr.mxu0 0.0
    %1700 = vmatpush2.msra.mxu0 0.0
    %1701 = vmatprep.subr.mxu0 0.0
    %1702 = vmatpush2.msra.mxu0 0.0
    %1703 = vmatprep.subr.mxu0 0.0
    %1704 = vmatpush2.msra.mxu0 0.0
    %1705 = vmatprep.subr.mxu0 0.0
    %1706 = vmatpush2.msra.mxu0 0.0
    %1707 = vmatprep.mubr.f32.mxu0 0.0
    %1708 = vmatmul.mubr.f32.gmra.mxu0 %v1629
    %v1709 = vpop.f32.mrf.mxu0
    %v1710 = vadd.f32 0.0, %v1709
    %v1711 = vpop.f32.mrf.mxu0
    %v1712 = vadd.f32 0.0, %v1711
    %1713 = vmatprep.mubr.f32.mxu0 0.0
    %1714 = vmatmul.mubr.f32.gmra.mxu0 %v1632
    %v1715 = vpop.f32.mrf.mxu0
    %v1716 = vadd.f32 0.0, %v1715
    %v1717 = vpop.f32.mrf.mxu0
    %v1718 = vadd.f32 0.0, %v1717
    %1719 = vmatprep.mubr.f32.mxu0 0.0
    %1720 = vmatmul.mubr.f32.gmra.mxu0 %v1635
    %v1721 = vpop.f32.mrf.mxu0
    %v1722 = vadd.f32 0.0, %v1721
    %v1723 = vpop.f32.mrf.mxu0
    %v1724 = vadd.f32 0.0, %v1723
    %1725 = vdwg.mxu0
    %v1726 = vadd.f32 %v1596, %v1710
    %v1727 = vadd.f32 %v1597, %v1712
    %v1728 = vadd.f32 %v1598, %v1716
    %v1729 = vadd.f32 %v1599, %v1718
    %v1730 = vadd.f32 %v1600, %v1722
    %v1731 = vadd.f32 %v1601, %v1724
    %1732 = vst [vmem:[#allocation3] sm:$0xff] %v1726
    %1733 = vst.msk [vmem:[#allocation3 + $0x8] sm:$0xff] %vm66, %v1727
    %1734 = vst [vmem:[#allocation3 + $0x10] sm:$0xff] %v1728
    %1735 = vst.msk [vmem:[#allocation3 + $0x18] sm:$0xff] %vm66, %v1729
    %1736 = vst [vmem:[#allocation3 + $0x20] sm:$0xf] %v1730
    %1737 = vst.msk [vmem:[#allocation3 + $0x28] sm:$0xf] %vm1436, %v1731
    %v1738 = vld [vmem:[#allocation4 + $0x3] sm:$0xff]
    %v1739 = vld [vmem:[#allocation4 + $0xb] sm:$0x3]
    %1740 = vst.msk [vmem:[#allocation5] sm:$0xff] %vm1292, %v1738
    %1741 = vst.msk [vmem:[#allocation5 + $0x8] sm:$0x3] %vm1301, %v1739
    %v1742 = vld [vmem:[#allocation4 + $0x11] sm:$0xff]
    %v1743 = vld [vmem:[#allocation4 + $0x19] sm:$0x3]
    %1744 = vst.msk [vmem:[#allocation5 + $0xa] sm:$0xff] %vm1292, %v1742
    %1745 = vst.msk [vmem:[#allocation5 + $0x12] sm:$0x3] %vm1301, %v1743
    %v1746 = vld [vmem:[#allocation3] sm:$0xff]
    %v1747 = vld [vmem:[#allocation3 + $0x8] sm:$0xff]
    %v1748 = vld [vmem:[#allocation3 + $0x10] sm:$0xff]
    %v1749 = vld [vmem:[#allocation3 + $0x18] sm:$0xff]
    %v1750 = vld [vmem:[#allocation3 + $0x20] sm:$0xf]
    %v1751 = vld [vmem:[#allocation3 + $0x28] sm:$0xf]
    %v1752 = vld [vmem:[#allocation5] sm:$0xff]
    %v1753 = vld [vmem:[#allocation5 + $0x8] sm:$0xff]
    %v1754 = vld [vmem:[#allocation5 + $0x10] sm:$0xf]
    %s1755 = scalar_lea.vmem %s5, 528
    %v1756 = vld [vmem:[%s1755] sm:$0xff]
    %v1757 = vld [vmem:[%s1755 + $0x8] sm:$0xff]
    %v1758 = vld [vmem:[%s1755 + $0x10] sm:$0xff]
    %v1759 = vld [vmem:[%s1755 + $0x18] sm:$0xff]
    %v1760 = vld [vmem:[%s1755 + $0x20] sm:$0xff]
    %v1761 = vld [vmem:[%s1755 + $0x28] sm:$0xff]
    %v1762 = vld [vmem:[%s1755 + $0x30] sm:$0xff]
    %v1763 = vld [vmem:[%s1755 + $0x38] sm:$0xff]
    %v1764 = vld [vmem:[%s1755 + $0x40] sm:$0xff]
    %v1765 = vld [vmem:[%s1755 + $0x48] sm:$0xff]
    %v1766 = vld [vmem:[%s1755 + $0x50] sm:$0xff]
    %v1767 = vld [vmem:[%s1755 + $0x58] sm:$0xff]
    %v1768 = vld [vmem:[%s1755 + $0x60] sm:$0xff]
    %v1769 = vld [vmem:[%s1755 + $0x68] sm:$0xff]
    %v1770 = vld [vmem:[%s1755 + $0x70] sm:$0xff]
    %v1771 = vld [vmem:[%s1755 + $0x78] sm:$0xff]
    %v1772 = vld [vmem:[%s1755 + $0x80] sm:$0xff]
    %v1773 = vld [vmem:[%s1755 + $0x88] sm:$0xff]
    %v1774 = vld [vmem:[%s1755 + $0x90] sm:$0xff]
    %v1775 = vld [vmem:[%s1755 + $0x98] sm:$0xff]
    %v1776 = vld [vmem:[%s1755 + $0xa0] sm:$0xf]
    %v1777 = vld [vmem:[%s1755 + $0xa8] sm:$0xf]
    %v1779 = vsel %vm1292, %v1752, 0
    %v1782 = vsel %vm1292, %v1753, 0
    %v1785 = vsel %vm1292, %v1754, 0
    %v1788 = vsel %vm1341, %v1776, 0
    %v1791 = vsel %vm1341, %v1777, 0
    %1793 = vmatprep.subr.mxu0 0.0
    %1794 = vmatpush1.msra.mxu0 0.0
    %1795 = vmatprep.subr.mxu0 0.0
    %1796 = vmatpush1.msra.mxu0 0.0
    %1797 = vmatprep.subr.mxu0 0.0
    %1798 = vmatpush1.msra.mxu0 0.0
    %1799 = vmatprep.subr.mxu0 0.0
    %1800 = vmatpush1.msra.mxu0 0.0
    %1801 = vmatprep.subr.mxu0 0.0
    %1802 = vmatpush1.msra.mxu0 0.0
    %1803 = vmatprep.subr.mxu0 %v1791
    %1804 = vmatpush1.msra.mxu0 %v1788
    %1805 = vmatprep.subr.mxu0 %v1775
    %1806 = vmatpush1.msra.mxu0 %v1774
    %1807 = vmatprep.subr.mxu0 %v1773
    %1808 = vmatpush1.msra.mxu0 %v1772
    %1809 = vmatprep.subr.mxu0 %v1771
    %1810 = vmatpush1.msra.mxu0 %v1770
    %1811 = vmatprep.subr.mxu0 %v1769
    %1812 = vmatpush1.msra.mxu0 %v1768
    %1813 = vmatprep.subr.mxu0 %v1767
    %1814 = vmatpush1.msra.mxu0 %v1766
    %1815 = vmatprep.subr.mxu0 %v1765
    %1816 = vmatpush1.msra.mxu0 %v1764
    %1817 = vmatprep.subr.mxu0 %v1763
    %1818 = vmatpush1.msra.mxu0 %v1762
    %1819 = vmatprep.subr.mxu0 %v1761
    %1820 = vmatpush1.msra.mxu0 %v1760
    %1821 = vmatprep.subr.mxu0 %v1759
    %1822 = vmatpush1.msra.mxu0 %v1758
    %1823 = vmatprep.subr.mxu0 %v1757
    %1824 = vmatpush1.msra.mxu0 %v1756
    %1825 = vmatprep.subr.mxu0 0.0
    %1826 = vmatpush2.msra.mxu0 0.0
    %1827 = vmatprep.subr.mxu0 0.0
    %1828 = vmatpush2.msra.mxu0 0.0
    %1829 = vmatprep.subr.mxu0 0.0
    %1830 = vmatpush2.msra.mxu0 0.0
    %1831 = vmatprep.subr.mxu0 0.0
    %1832 = vmatpush2.msra.mxu0 0.0
    %1833 = vmatprep.subr.mxu0 0.0
    %1834 = vmatpush2.msra.mxu0 0.0
    %1835 = vmatprep.subr.mxu0 0.0
    %1836 = vmatpush2.msra.mxu0 0.0
    %1837 = vmatprep.subr.mxu0 0.0
    %1838 = vmatpush2.msra.mxu0 0.0
    %1839 = vmatprep.subr.mxu0 0.0
    %1840 = vmatpush2.msra.mxu0 0.0
    %1841 = vmatprep.subr.mxu0 0.0
    %1842 = vmatpush2.msra.mxu0 0.0
    %1843 = vmatprep.subr.mxu0 0.0
    %1844 = vmatpush2.msra.mxu0 0.0
    %1845 = vmatprep.subr.mxu0 0.0
    %1846 = vmatpush2.msra.mxu0 0.0
    %1847 = vmatprep.subr.mxu0 0.0
    %1848 = vmatpush2.msra.mxu0 0.0
    %1849 = vmatprep.subr.mxu0 0.0
    %1850 = vmatpush2.msra.mxu0 0.0
    %1851 = vmatprep.subr.mxu0 0.0
    %1852 = vmatpush2.msra.mxu0 0.0
    %1853 = vmatprep.subr.mxu0 0.0
    %1854 = vmatpush2.msra.mxu0 0.0
    %1855 = vmatprep.subr.mxu0 0.0
    %1856 = vmatpush2.msra.mxu0 0.0
    %1857 = vmatprep.mubr.f32.mxu0 0.0
    %1858 = vmatmul.mubr.f32.gmra.mxu0 %v1779
    %v1859 = vpop.f32.mrf.mxu0
    %v1860 = vadd.f32 0.0, %v1859
    %v1861 = vpop.f32.mrf.mxu0
    %v1862 = vadd.f32 0.0, %v1861
    %1863 = vmatprep.mubr.f32.mxu0 0.0
    %1864 = vmatmul.mubr.f32.gmra.mxu0 %v1782
    %v1865 = vpop.f32.mrf.mxu0
    %v1866 = vadd.f32 0.0, %v1865
    %v1867 = vpop.f32.mrf.mxu0
    %v1868 = vadd.f32 0.0, %v1867
    %1869 = vmatprep.mubr.f32.mxu0 0.0
    %1870 = vmatmul.mubr.f32.gmra.mxu0 %v1785
    %v1871 = vpop.f32.mrf.mxu0
    %v1872 = vadd.f32 0.0, %v1871
    %v1873 = vpop.f32.mrf.mxu0
    %v1874 = vadd.f32 0.0, %v1873
    %1875 = vdwg.mxu0
    %v1876 = vadd.f32 %v1746, %v1860
    %v1877 = vadd.f32 %v1747, %v1862
    %v1878 = vadd.f32 %v1748, %v1866
    %v1879 = vadd.f32 %v1749, %v1868
    %v1880 = vadd.f32 %v1750, %v1872
    %v1881 = vadd.f32 %v1751, %v1874
    %1882 = vst [vmem:[#allocation3] sm:$0xff] %v1876
    %1883 = vst.msk [vmem:[#allocation3 + $0x8] sm:$0xff] %vm66, %v1877
    %1884 = vst [vmem:[#allocation3 + $0x10] sm:$0xff] %v1878
    %1885 = vst.msk [vmem:[#allocation3 + $0x18] sm:$0xff] %vm66, %v1879
    %1886 = vst [vmem:[#allocation3 + $0x20] sm:$0xf] %v1880
    %1887 = vst.msk [vmem:[#allocation3 + $0x28] sm:$0xf] %vm1436, %v1881
    %v1888 = vld [vmem:[#allocation4 + $0x4] sm:$0xff]
    %v1889 = vld [vmem:[#allocation4 + $0xc] sm:$0x3]
    %1890 = vst.msk [vmem:[#allocation5] sm:$0xff] %vm1292, %v1888
    %1891 = vst.msk [vmem:[#allocation5 + $0x8] sm:$0x3] %vm1301, %v1889
    %v1892 = vld [vmem:[#allocation4 + $0x12] sm:$0xff]
    %v1893 = vld [vmem:[#allocation4 + $0x1a] sm:$0x3]
    %1894 = vst.msk [vmem:[#allocation5 + $0xa] sm:$0xff] %vm1292, %v1892
    %1895 = vst.msk [vmem:[#allocation5 + $0x12] sm:$0x3] %vm1301, %v1893
    %v1896 = vld [vmem:[#allocation3] sm:$0xff]
    %v1897 = vld [vmem:[#allocation3 + $0x8] sm:$0xff]
    %v1898 = vld [vmem:[#allocation3 + $0x10] sm:$0xff]
    %v1899 = vld [vmem:[#allocation3 + $0x18] sm:$0xff]
    %v1900 = vld [vmem:[#allocation3 + $0x20] sm:$0xf]
    %v1901 = vld [vmem:[#allocation3 + $0x28] sm:$0xf]
    %v1902 = vld [vmem:[#allocation5] sm:$0xff]
    %v1903 = vld [vmem:[#allocation5 + $0x8] sm:$0xff]
    %v1904 = vld [vmem:[#allocation5 + $0x10] sm:$0xf]
    %s1905 = scalar_lea.vmem %s5, 704
    %v1906 = vld [vmem:[%s1905] sm:$0xff]
    %v1907 = vld [vmem:[%s1905 + $0x8] sm:$0xff]
    %v1908 = vld [vmem:[%s1905 + $0x10] sm:$0xff]
    %v1909 = vld [vmem:[%s1905 + $0x18] sm:$0xff]
    %v1910 = vld [vmem:[%s1905 + $0x20] sm:$0xff]
    %v1911 = vld [vmem:[%s1905 + $0x28] sm:$0xff]
    %v1912 = vld [vmem:[%s1905 + $0x30] sm:$0xff]
    %v1913 = vld [vmem:[%s1905 + $0x38] sm:$0xff]
    %v1914 = vld [vmem:[%s1905 + $0x40] sm:$0xff]
    %v1915 = vld [vmem:[%s1905 + $0x48] sm:$0xff]
    %v1916 = vld [vmem:[%s1905 + $0x50] sm:$0xff]
    %v1917 = vld [vmem:[%s1905 + $0x58] sm:$0xff]
    %v1918 = vld [vmem:[%s1905 + $0x60] sm:$0xff]
    %v1919 = vld [vmem:[%s1905 + $0x68] sm:$0xff]
    %v1920 = vld [vmem:[%s1905 + $0x70] sm:$0xff]
    %v1921 = vld [vmem:[%s1905 + $0x78] sm:$0xff]
    %v1922 = vld [vmem:[%s1905 + $0x80] sm:$0xff]
    %v1923 = vld [vmem:[%s1905 + $0x88] sm:$0xff]
    %v1924 = vld [vmem:[%s1905 + $0x90] sm:$0xff]
    %v1925 = vld [vmem:[%s1905 + $0x98] sm:$0xff]
    %v1926 = vld [vmem:[%s1905 + $0xa0] sm:$0xf]
    %v1927 = vld [vmem:[%s1905 + $0xa8] sm:$0xf]
    %v1929 = vsel %vm1292, %v1902, 0
    %v1932 = vsel %vm1292, %v1903, 0
    %v1935 = vsel %vm1292, %v1904, 0
    %v1938 = vsel %vm1341, %v1926, 0
    %v1941 = vsel %vm1341, %v1927, 0
    %1943 = vmatprep.subr.mxu0 0.0
    %1944 = vmatpush1.msra.mxu0 0.0
    %1945 = vmatprep.subr.mxu0 0.0
    %1946 = vmatpush1.msra.mxu0 0.0
    %1947 = vmatprep.subr.mxu0 0.0
    %1948 = vmatpush1.msra.mxu0 0.0
    %1949 = vmatprep.subr.mxu0 0.0
    %1950 = vmatpush1.msra.mxu0 0.0
    %1951 = vmatprep.subr.mxu0 0.0
    %1952 = vmatpush1.msra.mxu0 0.0
    %1953 = vmatprep.subr.mxu0 %v1941
    %1954 = vmatpush1.msra.mxu0 %v1938
    %1955 = vmatprep.subr.mxu0 %v1925
    %1956 = vmatpush1.msra.mxu0 %v1924
    %1957 = vmatprep.subr.mxu0 %v1923
    %1958 = vmatpush1.msra.mxu0 %v1922
    %1959 = vmatprep.subr.mxu0 %v1921
    %1960 = vmatpush1.msra.mxu0 %v1920
    %1961 = vmatprep.subr.mxu0 %v1919
    %1962 = vmatpush1.msra.mxu0 %v1918
    %1963 = vmatprep.subr.mxu0 %v1917
    %1964 = vmatpush1.msra.mxu0 %v1916
    %1965 = vmatprep.subr.mxu0 %v1915
    %1966 = vmatpush1.msra.mxu0 %v1914
    %1967 = vmatprep.subr.mxu0 %v1913
    %1968 = vmatpush1.msra.mxu0 %v1912
    %1969 = vmatprep.subr.mxu0 %v1911
    %1970 = vmatpush1.msra.mxu0 %v1910
    %1971 = vmatprep.subr.mxu0 %v1909
    %1972 = vmatpush1.msra.mxu0 %v1908
    %1973 = vmatprep.subr.mxu0 %v1907
    %1974 = vmatpush1.msra.mxu0 %v1906
    %1975 = vmatprep.subr.mxu0 0.0
    %1976 = vmatpush2.msra.mxu0 0.0
    %1977 = vmatprep.subr.mxu0 0.0
    %1978 = vmatpush2.msra.mxu0 0.0
    %1979 = vmatprep.subr.mxu0 0.0
    %1980 = vmatpush2.msra.mxu0 0.0
    %1981 = vmatprep.subr.mxu0 0.0
    %1982 = vmatpush2.msra.mxu0 0.0
    %1983 = vmatprep.subr.mxu0 0.0
    %1984 = vmatpush2.msra.mxu0 0.0
    %1985 = vmatprep.subr.mxu0 0.0
    %1986 = vmatpush2.msra.mxu0 0.0
    %1987 = vmatprep.subr.mxu0 0.0
    %1988 = vmatpush2.msra.mxu0 0.0
    %1989 = vmatprep.subr.mxu0 0.0
    %1990 = vmatpush2.msra.mxu0 0.0
    %1991 = vmatprep.subr.mxu0 0.0
    %1992 = vmatpush2.msra.mxu0 0.0
    %1993 = vmatprep.subr.mxu0 0.0
    %1994 = vmatpush2.msra.mxu0 0.0
    %1995 = vmatprep.subr.mxu0 0.0
    %1996 = vmatpush2.msra.mxu0 0.0
    %1997 = vmatprep.subr.mxu0 0.0
    %1998 = vmatpush2.msra.mxu0 0.0
    %1999 = vmatprep.subr.mxu0 0.0
    %2000 = vmatpush2.msra.mxu0 0.0
    %2001 = vmatprep.subr.mxu0 0.0
    %2002 = vmatpush2.msra.mxu0 0.0
    %2003 = vmatprep.subr.mxu0 0.0
    %2004 = vmatpush2.msra.mxu0 0.0
    %2005 = vmatprep.subr.mxu0 0.0
    %2006 = vmatpush2.msra.mxu0 0.0
    %2007 = vmatprep.mubr.f32.mxu0 0.0
    %2008 = vmatmul.mubr.f32.gmra.mxu0 %v1929
    %v2009 = vpop.f32.mrf.mxu0
    %v2010 = vadd.f32 0.0, %v2009
    %v2011 = vpop.f32.mrf.mxu0
    %v2012 = vadd.f32 0.0, %v2011
    %2013 = vmatprep.mubr.f32.mxu0 0.0
    %2014 = vmatmul.mubr.f32.gmra.mxu0 %v1932
    %v2015 = vpop.f32.mrf.mxu0
    %v2016 = vadd.f32 0.0, %v2015
    %v2017 = vpop.f32.mrf.mxu0
    %v2018 = vadd.f32 0.0, %v2017
    %2019 = vmatprep.mubr.f32.mxu0 0.0
    %2020 = vmatmul.mubr.f32.gmra.mxu0 %v1935
    %v2021 = vpop.f32.mrf.mxu0
    %v2022 = vadd.f32 0.0, %v2021
    %v2023 = vpop.f32.mrf.mxu0
    %v2024 = vadd.f32 0.0, %v2023
    %2025 = vdwg.mxu0
    %v2026 = vadd.f32 %v1896, %v2010
    %v2027 = vadd.f32 %v1897, %v2012
    %v2028 = vadd.f32 %v1898, %v2016
    %v2029 = vadd.f32 %v1899, %v2018
    %v2030 = vadd.f32 %v1900, %v2022
    %v2031 = vadd.f32 %v1901, %v2024
    %2032 = vst [vmem:[#allocation3] sm:$0xff] %v2026
    %2033 = vst.msk [vmem:[#allocation3 + $0x8] sm:$0xff] %vm66, %v2027
    %2034 = vst [vmem:[#allocation3 + $0x10] sm:$0xff] %v2028
    %2035 = vst.msk [vmem:[#allocation3 + $0x18] sm:$0xff] %vm66, %v2029
    %2036 = vst [vmem:[#allocation3 + $0x20] sm:$0xf] %v2030
    %2037 = vst.msk [vmem:[#allocation3 + $0x28] sm:$0xf] %vm1436, %v2031
    %v2038 = vld [vmem:[#allocation3] sm:$0xff]
    %v2039 = vld [vmem:[#allocation3 + $0x8] sm:$0xff]
    %v2040 = vld [vmem:[#allocation3 + $0x10] sm:$0xff]
    %v2041 = vld [vmem:[#allocation3 + $0x18] sm:$0xff]
    %v2042 = vld [vmem:[#allocation3 + $0x20] sm:$0xf]
    %v2043 = vld [vmem:[#allocation3 + $0x28] sm:$0xf]
    %v2044 = vld [vmem:[%s6] sm:$0x3]
    %v2046 = vlaneseq
    %v2047 = vshrl.u32 %v2046, 7
    %v2048 = vsub.s32 0, %v2047
    %v2049 = vrot.slane %v2044, %v2048
    %v2050 = vlaneseq
    %v2051 = vshrl.u32 %v2050, 7
    %v2052 = vsub.s32 1, %v2051
    %v2053 = vrot.slane %v2044, %v2052
    %v2056 = vadd.f32 %v2038, %v2049
    %v2057 = vadd.f32 %v2039, %v2053
    %v2058 = vadd.f32 %v2040, %v2049
    %v2059 = vadd.f32 %v2041, %v2053
    %v2060 = vadd.f32 %v2042, %v2049
    %v2061 = vadd.f32 %v2043, %v2053
    %v2062 = vsub.f32 0.0, %v2056
    %v2063 = vsub.f32 0.0, %v2057
    %v2064 = vsub.f32 0.0, %v2058
    %v2065 = vsub.f32 0.0, %v2059
    %v2066 = vsub.f32 0.0, %v2060
    %v2067 = vsub.f32 0.0, %v2061
    %v2068 = vmul.f32 %v2062, 1.442695
    %v2069 = vpow.pop %v2068
    %v2070 = vmul.f32 %v2063, 1.442695
    %v2071 = vpow.pop %v2070
    %v2072 = vmul.f32 %v2064, 1.442695
    %v2073 = vpow.pop %v2072
    %v2074 = vmul.f32 %v2065, 1.442695
    %v2075 = vpow.pop %v2074
    %v2076 = vmul.f32 %v2066, 1.442695
    %v2077 = vpow.pop %v2076
    %v2078 = vmul.f32 %v2067, 1.442695
    %v2079 = vpow.pop %v2078
    %v2080 = vadd.f32 %v2069, 1.0
    %v2081 = vadd.f32 %v2071, 1.0
    %v2082 = vadd.f32 %v2073, 1.0
    %v2083 = vadd.f32 %v2075, 1.0
    %v2084 = vadd.f32 %v2077, 1.0
    %v2085 = vadd.f32 %v2079, 1.0
    %v2086 = vrcp.pop %v2080
    %v2087 = vrcp.pop %v2081
    %v2088 = vrcp.pop %v2082
    %v2089 = vrcp.pop %v2083
    %v2090 = vrcp.pop %v2084
    %v2091 = vrcp.pop %v2085
    %v2092 = vld [vmem:[%s7] sm:$0xff]
    %v2093 = vld [vmem:[%s7 + $0x8] sm:$0x3]
    %vm2094 = vcmask 162816
    %v2096 = vsel %vm2094, %v2092, 0
    %v2099 = vsel %vm2094, %v2093, 0
    %v2102 = vsel %vm1341, %v2090, 0
    %v2105 = vsel %vm1341, %v2091, 0
    %2107 = vmatprep.subr.mxu0 0.0
    %2108 = vmatpush1.msra.mxu0 0.0
    %2109 = vmatprep.subr.mxu0 0.0
    %2110 = vmatpush1.msra.mxu0 0.0
    %2111 = vmatprep.subr.mxu0 0.0
    %2112 = vmatpush1.msra.mxu0 0.0
    %2113 = vmatprep.subr.mxu0 0.0
    %2114 = vmatpush1.msra.mxu0 0.0
    %2115 = vmatprep.subr.mxu0 0.0
    %2116 = vmatpush1.msra.mxu0 0.0
    %2117 = vmatprep.subr.mxu0 0.0
    %2118 = vmatpush1.msra.mxu0 0.0
    %2119 = vmatprep.subr.mxu0 0.0
    %2120 = vmatpush1.msra.mxu0 0.0
    %2121 = vmatprep.subr.mxu0 0.0
    %2122 = vmatpush1.msra.mxu0 0.0
    %2123 = vmatprep.subr.mxu0 0.0
    %2124 = vmatpush1.msra.mxu0 0.0
    %2125 = vmatprep.subr.mxu0 0.0
    %2126 = vmatpush1.msra.mxu0 0.0
    %2127 = vmatprep.subr.mxu0 0.0
    %2128 = vmatpush1.msra.mxu0 0.0
    %2129 = vmatprep.subr.mxu0 0.0
    %2130 = vmatpush1.msra.mxu0 0.0
    %2131 = vmatprep.subr.mxu0 0.0
    %2132 = vmatpush1.msra.mxu0 0.0
    %2133 = vmatprep.subr.mxu0 %v2105
    %2134 = vmatpush1.msra.mxu0 %v2102
    %2135 = vmatprep.subr.mxu0 %v2089
    %2136 = vmatpush1.msra.mxu0 %v2088
    %2137 = vmatprep.subr.mxu0 %v2087
    %2138 = vmatpush1.msra.mxu0 %v2086
    %2139 = vmatprep.subr.mxu0 0.0
    %2140 = vmatpush2.msra.mxu0 0.0
    %2141 = vmatprep.subr.mxu0 0.0
    %2142 = vmatpush2.msra.mxu0 0.0
    %2143 = vmatprep.subr.mxu0 0.0
    %2144 = vmatpush2.msra.mxu0 0.0
    %2145 = vmatprep.subr.mxu0 0.0
    %2146 = vmatpush2.msra.mxu0 0.0
    %2147 = vmatprep.subr.mxu0 0.0
    %2148 = vmatpush2.msra.mxu0 0.0
    %2149 = vmatprep.subr.mxu0 0.0
    %2150 = vmatpush2.msra.mxu0 0.0
    %2151 = vmatprep.subr.mxu0 0.0
    %2152 = vmatpush2.msra.mxu0 0.0
    %2153 = vmatprep.subr.mxu0 0.0
    %2154 = vmatpush2.msra.mxu0 0.0
    %2155 = vmatprep.subr.mxu0 0.0
    %2156 = vmatpush2.msra.mxu0 0.0
    %2157 = vmatprep.subr.mxu0 0.0
    %2158 = vmatpush2.msra.mxu0 0.0
    %2159 = vmatprep.subr.mxu0 0.0
    %2160 = vmatpush2.msra.mxu0 0.0
    %2161 = vmatprep.subr.mxu0 0.0
    %2162 = vmatpush2.msra.mxu0 0.0
    %2163 = vmatprep.subr.mxu0 0.0
    %2164 = vmatpush2.msra.mxu0 0.0
    %2165 = vmatprep.subr.mxu0 0.0
    %2166 = vmatpush2.msra.mxu0 0.0
    %2167 = vmatprep.subr.mxu0 0.0
    %2168 = vmatpush2.msra.mxu0 0.0
    %2169 = vmatprep.subr.mxu0 0.0
    %2170 = vmatpush2.msra.mxu0 0.0
    %2171 = vmatprep.mubr.f32.mxu0 0.0
    %2172 = vmatmul.mubr.f32.gmra.mxu0 %v2096
    %v2173 = vpop.f32.mrf.mxu0
    %v2174 = vadd.f32 0.0, %v2173
    %v2175 = vpop.f32.mrf.mxu0
    %v2176 = vadd.f32 0.0, %v2175
    %2177 = vmatprep.mubr.f32.mxu0 0.0
    %2178 = vmatmul.mubr.f32.gmra.mxu0 %v2099
    %v2179 = vpop.f32.mrf.mxu0
    %v2180 = vadd.f32 0.0, %v2179
    %v2181 = vpop.f32.mrf.mxu0
    %v2182 = vadd.f32 0.0, %v2181
    %2183 = vdwg.mxu0
    %v2184 = vld [vmem:[%s8] sm:$0xff]
    %v2185 = vld [vmem:[%s8 + $0x8] sm:$0xff]
    %v2186 = vld [vmem:[%s8 + $0x10] sm:$0xff]
    %v2187 = vld [vmem:[%s8 + $0x18] sm:$0xff]
    %v2188 = vld [vmem:[%s8 + $0x20] sm:$0xff]
    %v2189 = vld [vmem:[%s8 + $0x28] sm:$0xff]
    %v2190 = vld [vmem:[%s8 + $0x30] sm:$0xff]
    %v2191 = vld [vmem:[%s8 + $0x38] sm:$0xff]
    %v2192 = vld [vmem:[%s8 + $0x40] sm:$0xff]
    %v2193 = vld [vmem:[%s8 + $0x48] sm:$0xff]
    %v2194 = vld [vmem:[%s8 + $0x50] sm:$0xff]
    %v2195 = vld [vmem:[%s8 + $0x58] sm:$0xff]
    %v2196 = vld [vmem:[%s8 + $0x60] sm:$0xff]
    %v2197 = vld [vmem:[%s8 + $0x68] sm:$0xff]
    %v2198 = vld [vmem:[%s8 + $0x70] sm:$0xff]
    %v2199 = vld [vmem:[%s8 + $0x78] sm:$0xff]
    %v2200 = vld [vmem:[%s8 + $0x80] sm:$0xff]
    %v2201 = vld [vmem:[%s8 + $0x88] sm:$0xff]
    %v2202 = vld [vmem:[%s8 + $0x90] sm:$0xff]
    %v2203 = vld [vmem:[%s8 + $0x98] sm:$0xff]
    %v2205 = vsel %vm66, %v2176, 0
    %v2208 = vsel %vm66, %v2182, 0
    %2210 = vmatprep.subr.mxu0 0.0
    %2211 = vmatpush1.msra.mxu0 %v2199
    %2212 = vmatprep.subr.mxu0 0.0
    %2213 = vmatpush1.msra.mxu0 %v2198
    %2214 = vmatprep.subr.mxu0 0.0
    %2215 = vmatpush1.msra.mxu0 %v2197
    %2216 = vmatprep.subr.mxu0 0.0
    %2217 = vmatpush1.msra.mxu0 %v2196
    %2218 = vmatprep.subr.mxu0 0.0
    %2219 = vmatpush1.msra.mxu0 %v2195
    %2220 = vmatprep.subr.mxu0 0.0
    %2221 = vmatpush1.msra.mxu0 %v2194
    %2222 = vmatprep.subr.mxu0 0.0
    %2223 = vmatpush1.msra.mxu0 %v2193
    %2224 = vmatprep.subr.mxu0 0.0
    %2225 = vmatpush1.msra.mxu0 %v2192
    %2226 = vmatprep.subr.mxu0 0.0
    %2227 = vmatpush1.msra.mxu0 %v2191
    %2228 = vmatprep.subr.mxu0 0.0
    %2229 = vmatpush1.msra.mxu0 %v2190
    %2230 = vmatprep.subr.mxu0 0.0
    %2231 = vmatpush1.msra.mxu0 %v2189
    %2232 = vmatprep.subr.mxu0 0.0
    %2233 = vmatpush1.msra.mxu0 %v2188
    %2234 = vmatprep.subr.mxu0 0.0
    %2235 = vmatpush1.msra.mxu0 %v2187
    %2236 = vmatprep.subr.mxu0 0.0
    %2237 = vmatpush1.msra.mxu0 %v2186
    %2238 = vmatprep.subr.mxu0 0.0
    %2239 = vmatpush1.msra.mxu0 %v2185
    %2240 = vmatprep.subr.mxu0 0.0
    %2241 = vmatpush1.msra.mxu0 %v2184
    %2242 = vmatprep.subr.mxu0 0.0
    %2243 = vmatpush2.msra.mxu0 0.0
    %2244 = vmatprep.subr.mxu0 0.0
    %2245 = vmatpush2.msra.mxu0 0.0
    %2246 = vmatprep.subr.mxu0 0.0
    %2247 = vmatpush2.msra.mxu0 0.0
    %2248 = vmatprep.subr.mxu0 0.0
    %2249 = vmatpush2.msra.mxu0 0.0
    %2250 = vmatprep.subr.mxu0 0.0
    %2251 = vmatpush2.msra.mxu0 0.0
    %2252 = vmatprep.subr.mxu0 0.0
    %2253 = vmatpush2.msra.mxu0 0.0
    %2254 = vmatprep.subr.mxu0 0.0
    %2255 = vmatpush2.msra.mxu0 0.0
    %2256 = vmatprep.subr.mxu0 0.0
    %2257 = vmatpush2.msra.mxu0 0.0
    %2258 = vmatprep.subr.mxu0 0.0
    %2259 = vmatpush2.msra.mxu0 0.0
    %2260 = vmatprep.subr.mxu0 0.0
    %2261 = vmatpush2.msra.mxu0 0.0
    %2262 = vmatprep.subr.mxu0 0.0
    %2263 = vmatpush2.msra.mxu0 0.0
    %2264 = vmatprep.subr.mxu0 0.0
    %2265 = vmatpush2.msra.mxu0 0.0
    %2266 = vmatprep.subr.mxu0 0.0
    %2267 = vmatpush2.msra.mxu0 %v2203
    %2268 = vmatprep.subr.mxu0 0.0
    %2269 = vmatpush2.msra.mxu0 %v2202
    %2270 = vmatprep.subr.mxu0 0.0
    %2271 = vmatpush2.msra.mxu0 %v2201
    %2272 = vmatprep.subr.mxu0 0.0
    %2273 = vmatpush2.msra.mxu0 %v2200
    %2274 = vmatprep.mubr.f32.mxu0 %v2205
    %2275 = vmatmul.mubr.f32.gmra.mxu0 %v2174
    %v2276 = vpop.f32.mrf.mxu0
    %v2277 = vadd.f32 0.0, %v2276
    %v2278 = vpop.f32.mrf.mxu0
    %2279 = vmatprep.mubr.f32.mxu0 %v2208
    %2280 = vmatmul.mubr.f32.gmra.mxu0 %v2180
    %v2281 = vpop.f32.mrf.mxu0
    %v2282 = vadd.f32 0.0, %v2281
    %v2283 = vpop.f32.mrf.mxu0
    %2284 = vdwg.mxu0
    %vm2285 = vcmask 654336
    %2286 = vst.msk [vmem:[#allocation6] sm:$0xff] %vm2285, %v2277
    %vm2287 = vcmask 648192
    %2288 = vst.msk [vmem:[#allocation6 + $0x8] sm:$0x3] %vm2287, %v2282
    %v2289 = vld [vmem:[#allocation6] sm:$0x1]
    %vm2290 = vcmask 647168
    %2291 = vst.msk [vmem:[#allocation7] sm:$0x1] %vm2290, %v2289
    %v2292 = vld [vmem:[#allocation6 + $0x1] sm:$0x1]
    %v2295 = vunpack.c.l.s4 1983009808
    %v2296 = vunpack.c.0.s8 %v2295
    %v2297 = vlaneseq
    %v2298 = vshrl.u32 %v2297, 7
    %v2299 = vsub.s32 %v2296, %v2298
    %v2300 = vrot.slane %v2292, %v2299
    %2301 = vrot.lane.b32.xlu0 %v2300, 80
    %v2302 = vpop.permute.xlu0 %2301
    %v2303 = vrot.slane %v2302, 6
    %v2304 = vsel %vm2285, %v2303, %v2302
    %vm2306 = vcmask 1041024
    %vm2307 = vcmask 256002
    %vm2308 = vmor %vm2307, %vm2306
    %2309 = vst.msk [vmem:[#allocation7] sm:$0x5] %vm2308, %v2304
    %v2310 = vld [vmem:[#allocation6 + $0x2] sm:$0x1]
    %v2313 = vunpack.c.l.s4 1983009808
    %v2314 = vunpack.c.0.s8 %v2313
    %v2315 = vlaneseq
    %v2316 = vshrl.u32 %v2315, 7
    %v2317 = vsub.s32 %v2314, %v2316
    %v2318 = vrot.slane %v2310, %v2317
    %2319 = vrot.lane.b32.xlu0 %v2318, 32
    %v2320 = vpop.permute.xlu0 %2319
    %vm2322 = vcmask 909568
    %2323 = vst.msk [vmem:[#allocation7 + $0x2] sm:$0x1] %vm2322, %v2320
    %v2324 = vld [vmem:[#allocation6 + $0x3] sm:$0x1]
    %v2327 = vunpack.c.l.s4 1983009808
    %v2328 = vunpack.c.0.s8 %v2327
    %v2329 = vlaneseq
    %v2330 = vshrl.u32 %v2329, 7
    %v2331 = vsub.s32 %v2328, %v2330
    %v2332 = vrot.slane %v2324, %v2331
    %2333 = vrot.lane.b32.xlu0 %v2332, 112
    %v2334 = vpop.permute.xlu0 %2333
    %v2335 = vrot.slane %v2334, 6
    %vm2336 = vcmask 916480
    %v2337 = vsel %vm2336, %v2335, %v2334
    %vm2339 = vcmask 1041280
    %vm2340 = vcmask 518146
    %vm2341 = vmor %vm2340, %vm2339
    %2342 = vst.msk [vmem:[#allocation7 + $0x2] sm:$0x5] %vm2341, %v2337
    %v2343 = vld [vmem:[#allocation6 + $0x4] sm:$0x1]
    %v2346 = vunpack.c.l.s4 1983009808
    %v2347 = vunpack.c.0.s8 %v2346
    %v2348 = vlaneseq
    %v2349 = vshrl.u32 %v2348, 7
    %v2350 = vsub.s32 %v2347, %v2349
    %v2351 = vrot.slane %v2343, %v2350
    %2352 = vrot.lane.b32.xlu0 %v2351, 64
    %v2353 = vpop.permute.xlu0 %2352
    %v2354 = vrot.slane %v2353, 6
    %vm2355 = vcmask 523264
    %v2356 = vsel %vm2355, %v2354, %v2353
    %vm2358 = vcmask 1040896
    %vm2359 = vcmask 124930
    %vm2360 = vmor %vm2359, %vm2358
    %2361 = vst.msk [vmem:[#allocation7 + $0x4] sm:$0x5] %vm2360, %v2356
    %v2362 = vld [vmem:[#allocation6 + $0x5] sm:$0x1]
    %2363 = vst.msk [vmem:[#allocation7 + $0x1] sm:$0x1] %vm2290, %v2362
    %v2364 = vld [vmem:[#allocation6 + $0x6] sm:$0x1]
    %v2367 = vunpack.c.l.s4 1983009808
    %v2368 = vunpack.c.0.s8 %v2367
    %v2369 = vlaneseq
    %v2370 = vshrl.u32 %v2369, 7
    %v2371 = vsub.s32 %v2368, %v2370
    %v2372 = vrot.slane %v2364, %v2371
    %2373 = vrot.lane.b32.xlu0 %v2372, 80
    %v2374 = vpop.permute.xlu0 %2373
    %v2375 = vrot.slane %v2374, 6
    %v2376 = vsel %vm2285, %v2375, %v2374
    %2378 = vst.msk [vmem:[#allocation7 + $0x1] sm:$0x5] %vm2308, %v2376
    %v2379 = vld [vmem:[#allocation6 + $0x7] sm:$0x1]
    %v2382 = vunpack.c.l.s4 1983009808
    %v2383 = vunpack.c.0.s8 %v2382
    %v2384 = vlaneseq
    %v2385 = vshrl.u32 %v2384, 7
    %v2386 = vsub.s32 %v2383, %v2385
    %v2387 = vrot.slane %v2379, %v2386
    %2388 = vrot.lane.b32.xlu0 %v2387, 32
    %v2389 = vpop.permute.xlu0 %2388
    %2391 = vst.msk [vmem:[#allocation7 + $0x3] sm:$0x1] %vm2322, %v2389
    %v2392 = vld [vmem:[#allocation6 + $0x8] sm:$0x1]
    %v2395 = vunpack.c.l.s4 1983009808
    %v2396 = vunpack.c.0.s8 %v2395
    %v2397 = vlaneseq
    %v2398 = vshrl.u32 %v2397, 7
    %v2399 = vsub.s32 %v2396, %v2398
    %v2400 = vrot.slane %v2392, %v2399
    %2401 = vrot.lane.b32.xlu0 %v2400, 112
    %v2402 = vpop.permute.xlu0 %2401
    %v2403 = vrot.slane %v2402, 6
    %v2404 = vsel %vm2336, %v2403, %v2402
    %2406 = vst.msk [vmem:[#allocation7 + $0x3] sm:$0x5] %vm2341, %v2404
    %v2407 = vld [vmem:[#allocation6 + $0x9] sm:$0x1]
    %v2410 = vunpack.c.l.s4 1983009808
    %v2411 = vunpack.c.0.s8 %v2410
    %v2412 = vlaneseq
    %v2413 = vshrl.u32 %v2412, 7
    %v2414 = vsub.s32 %v2411, %v2413
    %v2415 = vrot.slane %v2407, %v2414
    %2416 = vrot.lane.b32.xlu0 %v2415, 64
    %v2417 = vpop.permute.xlu0 %2416
    %v2418 = vrot.slane %v2417, 6
    %v2419 = vsel %vm2355, %v2418, %v2417
    %2421 = vst.msk [vmem:[#allocation7 + $0x5] sm:$0x5] %vm2360, %v2419
    %v2422 = vld [vmem:[#allocation7] sm:$0xff]
    %v2423 = vld [vmem:[%s9] sm:$0xff]
    %v2424 = vld [vmem:[%s9 + $0x8] sm:$0xff]
    %v2425 = vld [vmem:[%s9 + $0x10] sm:$0xff]
    %v2426 = vld [vmem:[%s9 + $0x18] sm:$0xff]
    %v2427 = vld [vmem:[%s9 + $0x20] sm:$0xff]
    %v2428 = vld [vmem:[%s9 + $0x28] sm:$0xff]
    %v2429 = vld [vmem:[%s9 + $0x30] sm:$0xff]
    %v2430 = vld [vmem:[%s9 + $0x38] sm:$0xff]
    %v2431 = vld [vmem:[%s9 + $0x40] sm:$0xff]
    %v2432 = vld [vmem:[%s9 + $0x48] sm:$0xff]
    %v2433 = vld [vmem:[%s9 + $0x50] sm:$0xff]
    %v2434 = vld [vmem:[%s9 + $0x58] sm:$0xff]
    %v2435 = vld [vmem:[%s9 + $0x60] sm:$0xff]
    %v2436 = vld [vmem:[%s9 + $0x68] sm:$0xff]
    %v2437 = vld [vmem:[%s9 + $0x70] sm:$0xff]
    %v2438 = vld [vmem:[%s9 + $0x78] sm:$0xff]
    %v2439 = vld [vmem:[%s9 + $0x80] sm:$0xff]
    %v2440 = vld [vmem:[%s9 + $0x88] sm:$0xff]
    %v2441 = vld [vmem:[%s9 + $0x90] sm:$0xff]
    %v2442 = vld [vmem:[%s9 + $0x98] sm:$0xff]
    %v2443 = vld [vmem:[%s9 + $0xa0] sm:$0xff]
    %v2444 = vld [vmem:[%s9 + $0xa8] sm:$0xff]
    %v2445 = vld [vmem:[%s9 + $0xb0] sm:$0xff]
    %v2446 = vld [vmem:[%s9 + $0xb8] sm:$0xff]
    %v2447 = vld [vmem:[%s9 + $0xc0] sm:$0xff]
    %v2448 = vld [vmem:[%s9 + $0xc8] sm:$0xff]
    %v2449 = vld [vmem:[%s9 + $0xd0] sm:$0xff]
    %v2450 = vld [vmem:[%s9 + $0xd8] sm:$0xff]
    %v2451 = vld [vmem:[%s9 + $0xe0] sm:$0xff]
    %v2452 = vld [vmem:[%s9 + $0xe8] sm:$0xff]
    %v2453 = vld [vmem:[%s9 + $0xf0] sm:$0xff]
    %v2454 = vld [vmem:[%s9 + $0xf8] sm:$0xff]
    %v2455 = vld [vmem:[%s9 + $0x100] sm:$0xff]
    %v2456 = vld [vmem:[%s9 + $0x108] sm:$0xff]
    %v2457 = vld [vmem:[%s9 + $0x110] sm:$0xff]
    %v2458 = vld [vmem:[%s9 + $0x118] sm:$0xff]
    %v2459 = vld [vmem:[%s9 + $0x120] sm:$0xff]
    %v2460 = vld [vmem:[%s9 + $0x128] sm:$0xff]
    %v2461 = vld [vmem:[%s9 + $0x130] sm:$0xff]
    %v2462 = vld [vmem:[%s9 + $0x138] sm:$0xff]
    %v2463 = vld [vmem:[%s9 + $0x140] sm:$0xff]
    %v2464 = vld [vmem:[%s9 + $0x148] sm:$0xff]
    %v2465 = vld [vmem:[%s9 + $0x150] sm:$0xff]
    %v2466 = vld [vmem:[%s9 + $0x158] sm:$0xff]
    %v2467 = vld [vmem:[%s9 + $0x160] sm:$0xff]
    %v2468 = vld [vmem:[%s9 + $0x168] sm:$0xff]
    %v2469 = vld [vmem:[%s9 + $0x170] sm:$0xff]
    %v2470 = vld [vmem:[%s9 + $0x178] sm:$0xff]
    %v2471 = vld [vmem:[%s9 + $0x180] sm:$0xff]
    %v2472 = vld [vmem:[%s9 + $0x188] sm:$0xff]
    %v2473 = vld [vmem:[%s10] sm:$0x1]
    %v2475 = vlaneseq
    %v2476 = vshrl.u32 %v2475, 7
    %v2477 = vsub.s32 0, %v2476
    %v2478 = vrot.slane %v2473, %v2477
    %v2481 = vcombine.high %v2422, %v2422
    %v2483 = vunpack.c.l.s4 1983009808
    %v2484 = vunpack.c.0.s8 %v2483
    %v2485 = vlaneseq
    %v2486 = vshrl.u32 %v2485, 7
    %v2487 = vsub.s32 %v2484, %v2486
    %v2488 = vrot.slane %v2422, %v2487
    %v2490 = vunpack.c.l.s4 1983009808
    %v2491 = vunpack.c.0.s8 %v2490
    %v2492 = vlaneseq
    %v2493 = vshrl.u32 %v2492, 7
    %v2494 = vsub.s32 %v2491, %v2493
    %v2495 = vrot.slane %v2481, %v2494
    %v2496 = vcombine.high %v2488, %v2488
    %v2497 = vcombine.high %v2495, %v2495
    %vm2501 = vcmask 130048
    %v2502 = vsel %vm2501, %v2497, 0
    %2504 = vmatprep.subr.mxu0 0.0
    %2505 = vmatpush1.msra.mxu0 %v2438
    %2506 = vmatprep.subr.mxu0 0.0
    %2507 = vmatpush1.msra.mxu0 %v2437
    %2508 = vmatprep.subr.mxu0 0.0
    %2509 = vmatpush1.msra.mxu0 %v2436
    %2510 = vmatprep.subr.mxu0 0.0
    %2511 = vmatpush1.msra.mxu0 %v2435
    %2512 = vmatprep.subr.mxu0 0.0
    %2513 = vmatpush1.msra.mxu0 %v2434
    %2514 = vmatprep.subr.mxu0 0.0
    %2515 = vmatpush1.msra.mxu0 %v2433
    %2516 = vmatprep.subr.mxu0 0.0
    %2517 = vmatpush1.msra.mxu0 %v2432
    %2518 = vmatprep.subr.mxu0 0.0
    %2519 = vmatpush1.msra.mxu0 %v2431
    %2520 = vmatprep.subr.mxu0 0.0
    %2521 = vmatpush1.msra.mxu0 %v2430
    %2522 = vmatprep.subr.mxu0 0.0
    %2523 = vmatpush1.msra.mxu0 %v2429
    %2524 = vmatprep.subr.mxu0 0.0
    %2525 = vmatpush1.msra.mxu0 %v2428
    %2526 = vmatprep.subr.mxu0 0.0
    %2527 = vmatpush1.msra.mxu0 %v2427
    %2528 = vmatprep.subr.mxu0 0.0
    %2529 = vmatpush1.msra.mxu0 %v2426
    %2530 = vmatprep.subr.mxu0 0.0
    %2531 = vmatpush1.msra.mxu0 %v2425
    %2532 = vmatprep.subr.mxu0 0.0
    %2533 = vmatpush1.msra.mxu0 %v2424
    %2534 = vmatprep.subr.mxu0 0.0
    %2535 = vmatpush1.msra.mxu0 %v2423
    %2536 = vmatprep.subr.mxu0 0.0
    %2537 = vmatpush2.msra.mxu0 %v2454
    %2538 = vmatprep.subr.mxu0 0.0
    %2539 = vmatpush2.msra.mxu0 %v2453
    %2540 = vmatprep.subr.mxu0 0.0
    %2541 = vmatpush2.msra.mxu0 %v2452
    %2542 = vmatprep.subr.mxu0 0.0
    %2543 = vmatpush2.msra.mxu0 %v2451
    %2544 = vmatprep.subr.mxu0 0.0
    %2545 = vmatpush2.msra.mxu0 %v2450
    %2546 = vmatprep.subr.mxu0 0.0
    %2547 = vmatpush2.msra.mxu0 %v2449
    %2548 = vmatprep.subr.mxu0 0.0
    %2549 = vmatpush2.msra.mxu0 %v2448
    %2550 = vmatprep.subr.mxu0 0.0
    %2551 = vmatpush2.msra.mxu0 %v2447
    %2552 = vmatprep.subr.mxu0 0.0
    %2553 = vmatpush2.msra.mxu0 %v2446
    %2554 = vmatprep.subr.mxu0 0.0
    %2555 = vmatpush2.msra.mxu0 %v2445
    %2556 = vmatprep.subr.mxu0 0.0
    %2557 = vmatpush2.msra.mxu0 %v2444
    %2558 = vmatprep.subr.mxu0 0.0
    %2559 = vmatpush2.msra.mxu0 %v2443
    %2560 = vmatprep.subr.mxu0 0.0
    %2561 = vmatpush2.msra.mxu0 %v2442
    %2562 = vmatprep.subr.mxu0 0.0
    %2563 = vmatpush2.msra.mxu0 %v2441
    %2564 = vmatprep.subr.mxu0 0.0
    %2565 = vmatpush2.msra.mxu0 %v2440
    %2566 = vmatprep.subr.mxu0 0.0
    %2567 = vmatpush2.msra.mxu0 %v2439
    %2568 = vmatprep.mubr.f32.mxu0 %v2496
    %2569 = vmatmul.mubr.f32.gmra.mxu0 %v2488
    %v2570 = vpop.f32.mrf.mxu0
    %v2571 = vadd.f32 %v2478, %v2570
    %v2572 = vpop.f32.mrf.mxu0
    %2573 = vdwg.mxu0
    %2574 = vmatprep.subr.mxu0 0.0
    %2575 = vmatpush1.msra.mxu0 %v2470
    %2576 = vmatprep.subr.mxu0 0.0
    %2577 = vmatpush1.msra.mxu0 %v2469
    %2578 = vmatprep.subr.mxu0 0.0
    %2579 = vmatpush1.msra.mxu0 %v2468
    %2580 = vmatprep.subr.mxu0 0.0
    %2581 = vmatpush1.msra.mxu0 %v2467
    %2582 = vmatprep.subr.mxu0 0.0
    %2583 = vmatpush1.msra.mxu0 %v2466
    %2584 = vmatprep.subr.mxu0 0.0
    %2585 = vmatpush1.msra.mxu0 %v2465
    %2586 = vmatprep.subr.mxu0 0.0
    %2587 = vmatpush1.msra.mxu0 %v2464
    %2588 = vmatprep.subr.mxu0 0.0
    %2589 = vmatpush1.msra.mxu0 %v2463
    %2590 = vmatprep.subr.mxu0 0.0
    %2591 = vmatpush1.msra.mxu0 %v2462
    %2592 = vmatprep.subr.mxu0 0.0
    %2593 = vmatpush1.msra.mxu0 %v2461
    %2594 = vmatprep.subr.mxu0 0.0
    %2595 = vmatpush1.msra.mxu0 %v2460
    %2596 = vmatprep.subr.mxu0 0.0
    %2597 = vmatpush1.msra.mxu0 %v2459
    %2598 = vmatprep.subr.mxu0 0.0
    %2599 = vmatpush1.msra.mxu0 %v2458
    %2600 = vmatprep.subr.mxu0 0.0
    %2601 = vmatpush1.msra.mxu0 %v2457
    %2602 = vmatprep.subr.mxu0 0.0
    %2603 = vmatpush1.msra.mxu0 %v2456
    %2604 = vmatprep.subr.mxu0 0.0
    %2605 = vmatpush1.msra.mxu0 %v2455
    %2606 = vmatprep.subr.mxu0 0.0
    %2607 = vmatpush2.msra.mxu0 0.0
    %2608 = vmatprep.subr.mxu0 0.0
    %2609 = vmatpush2.msra.mxu0 0.0
    %2610 = vmatprep.subr.mxu0 0.0
    %2611 = vmatpush2.msra.mxu0 0.0
    %2612 = vmatprep.subr.mxu0 0.0
    %2613 = vmatpush2.msra.mxu0 0.0
    %2614 = vmatprep.subr.mxu0 0.0
    %2615 = vmatpush2.msra.mxu0 0.0
    %2616 = vmatprep.subr.mxu0 0.0
    %2617 = vmatpush2.msra.mxu0 0.0
    %2618 = vmatprep.subr.mxu0 0.0
    %2619 = vmatpush2.msra.mxu0 0.0
    %2620 = vmatprep.subr.mxu0 0.0
    %2621 = vmatpush2.msra.mxu0 0.0
    %2622 = vmatprep.subr.mxu0 0.0
    %2623 = vmatpush2.msra.mxu0 0.0
    %2624 = vmatprep.subr.mxu0 0.0
    %2625 = vmatpush2.msra.mxu0 0.0
    %2626 = vmatprep.subr.mxu0 0.0
    %2627 = vmatpush2.msra.mxu0 0.0
    %2628 = vmatprep.subr.mxu0 0.0
    %2629 = vmatpush2.msra.mxu0 0.0
    %2630 = vmatprep.subr.mxu0 0.0
    %2631 = vmatpush2.msra.mxu0 0.0
    %2632 = vmatprep.subr.mxu0 0.0
    %2633 = vmatpush2.msra.mxu0 0.0
    %2634 = vmatprep.subr.mxu0 0.0
    %2635 = vmatpush2.msra.mxu0 %v2472
    %2636 = vmatprep.subr.mxu0 0.0
    %2637 = vmatpush2.msra.mxu0 %v2471
    %2638 = vmatprep.mubr.f32.mxu0 %v2502
    %2639 = vmatmul.mubr.f32.gmra.mxu0 %v2495
    %v2640 = vpop.f32.mrf.mxu0
    %v2641 = vadd.f32 %v2571, %v2640
    %v2642 = vpop.f32.mrf.mxu0
    %2643 = vdwg.mxu0
    %v2644 = vsub.f32 0.0, %v2641
    %v2645 = vmul.f32 %v2644, 1.442695
    %v2646 = vpow.pop %v2645
    %v2647 = vadd.f32 %v2646, 1.0
    %v2648 = vrcp.pop %v2647
    %v2649 = vld [vmem:[%s11] sm:$0xff]
    %v2650 = vld [vmem:[%s11 + $0x8] sm:$0xff]
    %v2651 = vld [vmem:[%s11 + $0x10] sm:$0xff]
    %v2652 = vld [vmem:[%s11 + $0x18] sm:$0xff]
    %v2653 = vld [vmem:[%s11 + $0x20] sm:$0xff]
    %v2654 = vld [vmem:[%s11 + $0x28] sm:$0xff]
    %v2655 = vld [vmem:[%s11 + $0x30] sm:$0xff]
    %v2656 = vld [vmem:[%s11 + $0x38] sm:$0xff]
    %v2657 = vld [vmem:[%s11 + $0x40] sm:$0xff]
    %v2658 = vld [vmem:[%s11 + $0x48] sm:$0xff]
    %v2659 = vld [vmem:[%s11 + $0x50] sm:$0xff]
    %v2660 = vld [vmem:[%s11 + $0x58] sm:$0xff]
    %v2661 = vld [vmem:[%s11 + $0x60] sm:$0xff]
    %v2662 = vld [vmem:[%s11 + $0x68] sm:$0xff]
    %v2663 = vld [vmem:[%s11 + $0x70] sm:$0xff]
    %v2664 = vld [vmem:[%s12] sm:$0x1]
    %v2666 = vlaneseq
    %v2667 = vshrl.u32 %v2666, 7
    %v2668 = vsub.s32 0, %v2667
    %v2669 = vrot.slane %v2664, %v2668
    %vm2671 = vcmask 982016
    %v2673 = vsel %vm2671, %v2648, 0
    %2675 = vmatprep.subr.mxu0 0.0
    %2676 = vmatpush1.msra.mxu0 0.0
    %2677 = vmatprep.subr.mxu0 0.0
    %2678 = vmatpush1.msra.mxu0 %v2663
    %2679 = vmatprep.subr.mxu0 0.0
    %2680 = vmatpush1.msra.mxu0 %v2662
    %2681 = vmatprep.subr.mxu0 0.0
    %2682 = vmatpush1.msra.mxu0 %v2661
    %2683 = vmatprep.subr.mxu0 0.0
    %2684 = vmatpush1.msra.mxu0 %v2660
    %2685 = vmatprep.subr.mxu0 0.0
    %2686 = vmatpush1.msra.mxu0 %v2659
    %2687 = vmatprep.subr.mxu0 0.0
    %2688 = vmatpush1.msra.mxu0 %v2658
    %2689 = vmatprep.subr.mxu0 0.0
    %2690 = vmatpush1.msra.mxu0 %v2657
    %2691 = vmatprep.subr.mxu0 0.0
    %2692 = vmatpush1.msra.mxu0 %v2656
    %2693 = vmatprep.subr.mxu0 0.0
    %2694 = vmatpush1.msra.mxu0 %v2655
    %2695 = vmatprep.subr.mxu0 0.0
    %2696 = vmatpush1.msra.mxu0 %v2654
    %2697 = vmatprep.subr.mxu0 0.0
    %2698 = vmatpush1.msra.mxu0 %v2653
    %2699 = vmatprep.subr.mxu0 0.0
    %2700 = vmatpush1.msra.mxu0 %v2652
    %2701 = vmatprep.subr.mxu0 0.0
    %2702 = vmatpush1.msra.mxu0 %v2651
    %2703 = vmatprep.subr.mxu0 0.0
    %2704 = vmatpush1.msra.mxu0 %v2650
    %2705 = vmatprep.subr.mxu0 0.0
    %2706 = vmatpush1.msra.mxu0 %v2649
    %2707 = vmatprep.subr.mxu0 0.0
    %2708 = vmatpush2.msra.mxu0 0.0
    %2709 = vmatprep.subr.mxu0 0.0
    %2710 = vmatpush2.msra.mxu0 0.0
    %2711 = vmatprep.subr.mxu0 0.0
    %2712 = vmatpush2.msra.mxu0 0.0
    %2713 = vmatprep.subr.mxu0 0.0
    %2714 = vmatpush2.msra.mxu0 0.0
    %2715 = vmatprep.subr.mxu0 0.0
    %2716 = vmatpush2.msra.mxu0 0.0
    %2717 = vmatprep.subr.mxu0 0.0
    %2718 = vmatpush2.msra.mxu0 0.0
    %2719 = vmatprep.subr.mxu0 0.0
    %2720 = vmatpush2.msra.mxu0 0.0
    %2721 = vmatprep.subr.mxu0 0.0
    %2722 = vmatpush2.msra.mxu0 0.0
    %2723 = vmatprep.subr.mxu0 0.0
    %2724 = vmatpush2.msra.mxu0 0.0
    %2725 = vmatprep.subr.mxu0 0.0
    %2726 = vmatpush2.msra.mxu0 0.0
    %2727 = vmatprep.subr.mxu0 0.0
    %2728 = vmatpush2.msra.mxu0 0.0
    %2729 = vmatprep.subr.mxu0 0.0
    %2730 = vmatpush2.msra.mxu0 0.0
    %2731 = vmatprep.subr.mxu0 0.0
    %2732 = vmatpush2.msra.mxu0 0.0
    %2733 = vmatprep.subr.mxu0 0.0
    %2734 = vmatpush2.msra.mxu0 0.0
    %2735 = vmatprep.subr.mxu0 0.0
    %2736 = vmatpush2.msra.mxu0 0.0
    %2737 = vmatprep.subr.mxu0 0.0
    %2738 = vmatpush2.msra.mxu0 0.0
    %2739 = vmatprep.mubr.f32.mxu0 0.0
    %2740 = vmatmul.mubr.f32.gmra.mxu0 %v2673
    %v2741 = vpop.f32.mrf.mxu0
    %v2742 = vadd.f32 %v2669, %v2741
    %v2743 = vpop.f32.mrf.mxu0
    %2744 = vdwg.mxu0
    %v2745 = vsub.f32 0.0, %v2742
    %v2746 = vmul.f32 %v2745, 1.442695
    %v2747 = vpow.pop %v2746
    %v2748 = vadd.f32 %v2747, 1.0
    %v2749 = vrcp.pop %v2748
    %v2750 = vld [vmem:[%s13] sm:$0xff]
    %v2751 = vld [vmem:[%s13 + $0x8] sm:$0xff]
    %v2752 = vld [vmem:[%s13 + $0x10] sm:$0xff]
    %v2753 = vld [vmem:[%s13 + $0x18] sm:$0xff]
    %v2754 = vld [vmem:[%s13 + $0x20] sm:$0xff]
    %v2755 = vld [vmem:[%s13 + $0x28] sm:$0xff]
    %v2756 = vld [vmem:[%s13 + $0x30] sm:$0xff]
    %v2757 = vld [vmem:[%s13 + $0x38] sm:$0xff]
    %v2758 = vld [vmem:[%s13 + $0x40] sm:$0xff]
    %v2759 = vld [vmem:[%s13 + $0x48] sm:$0xff]
    %v2760 = vld [vmem:[%s13 + $0x50] sm:$0xf]
    %v2761 = vld [vmem:[%s14] sm:$0x1]
    %v2763 = vlaneseq
    %v2764 = vshrl.u32 %v2763, 7
    %v2765 = vsub.s32 0, %v2764
    %v2766 = vrot.slane %v2761, %v2765
    %v2769 = vsel %vm1292, %v2749, 0
    %v2772 = vsel %vm1341, %v2760, 0
    %2774 = vmatprep.subr.mxu0 0.0
    %2775 = vmatpush1.msra.mxu0 0.0
    %2776 = vmatprep.subr.mxu0 0.0
    %2777 = vmatpush1.msra.mxu0 0.0
    %2778 = vmatprep.subr.mxu0 0.0
    %2779 = vmatpush1.msra.mxu0 0.0
    %2780 = vmatprep.subr.mxu0 0.0
    %2781 = vmatpush1.msra.mxu0 0.0
    %2782 = vmatprep.subr.mxu0 0.0
    %2783 = vmatpush1.msra.mxu0 0.0
    %2784 = vmatprep.subr.mxu0 0.0
    %2785 = vmatpush1.msra.mxu0 %v2772
    %2786 = vmatprep.subr.mxu0 0.0
    %2787 = vmatpush1.msra.mxu0 %v2759
    %2788 = vmatprep.subr.mxu0 0.0
    %2789 = vmatpush1.msra.mxu0 %v2758
    %2790 = vmatprep.subr.mxu0 0.0
    %2791 = vmatpush1.msra.mxu0 %v2757
    %2792 = vmatprep.subr.mxu0 0.0
    %2793 = vmatpush1.msra.mxu0 %v2756
    %2794 = vmatprep.subr.mxu0 0.0
    %2795 = vmatpush1.msra.mxu0 %v2755
    %2796 = vmatprep.subr.mxu0 0.0
    %2797 = vmatpush1.msra.mxu0 %v2754
    %2798 = vmatprep.subr.mxu0 0.0
    %2799 = vmatpush1.msra.mxu0 %v2753
    %2800 = vmatprep.subr.mxu0 0.0
    %2801 = vmatpush1.msra.mxu0 %v2752
    %2802 = vmatprep.subr.mxu0 0.0
    %2803 = vmatpush1.msra.mxu0 %v2751
    %2804 = vmatprep.subr.mxu0 0.0
    %2805 = vmatpush1.msra.mxu0 %v2750
    %2806 = vmatprep.subr.mxu0 0.0
    %2807 = vmatpush2.msra.mxu0 0.0
    %2808 = vmatprep.subr.mxu0 0.0
    %2809 = vmatpush2.msra.mxu0 0.0
    %2810 = vmatprep.subr.mxu0 0.0
    %2811 = vmatpush2.msra.mxu0 0.0
    %2812 = vmatprep.subr.mxu0 0.0
    %2813 = vmatpush2.msra.mxu0 0.0
    %2814 = vmatprep.subr.mxu0 0.0
    %2815 = vmatpush2.msra.mxu0 0.0
    %2816 = vmatprep.subr.mxu0 0.0
    %2817 = vmatpush2.msra.mxu0 0.0
    %2818 = vmatprep.subr.mxu0 0.0
    %2819 = vmatpush2.msra.mxu0 0.0
    %2820 = vmatprep.subr.mxu0 0.0
    %2821 = vmatpush2.msra.mxu0 0.0
    %2822 = vmatprep.subr.mxu0 0.0
    %2823 = vmatpush2.msra.mxu0 0.0
    %2824 = vmatprep.subr.mxu0 0.0
    %2825 = vmatpush2.msra.mxu0 0.0
    %2826 = vmatprep.subr.mxu0 0.0
    %2827 = vmatpush2.msra.mxu0 0.0
    %2828 = vmatprep.subr.mxu0 0.0
    %2829 = vmatpush2.msra.mxu0 0.0
    %2830 = vmatprep.subr.mxu0 0.0
    %2831 = vmatpush2.msra.mxu0 0.0
    %2832 = vmatprep.subr.mxu0 0.0
    %2833 = vmatpush2.msra.mxu0 0.0
    %2834 = vmatprep.subr.mxu0 0.0
    %2835 = vmatpush2.msra.mxu0 0.0
    %2836 = vmatprep.subr.mxu0 0.0
    %2837 = vmatpush2.msra.mxu0 0.0
    %2838 = vmatprep.mubr.f32.mxu0 0.0
    %2839 = vmatmul.mubr.f32.gmra.mxu0 %v2769
    %v2840 = vpop.f32.mrf.mxu0
    %v2841 = vadd.f32 %v2766, %v2840
    %v2842 = vpop.f32.mrf.mxu0
    %2843 = vdwg.mxu0
    %2844 = vst [vmem:[#allocation8] sm:$0x3] %v2841
    // Predicated region
    $region62: #{lenet_forward.1} parent=1 // pred_check
      _
    $region63: #{lenet_forward.1} parent=1 // pred_check_branch
      %2846 = sbr.rel (0) target = $region65
    $region64: #{lenet_forward.1} parent=1 // pred_region
      %s2848 = ssub.s32 32, 32
      %2849 = vsyncadd [#allocation9], %s2848
      %s2851 = sshll.u32 [#allocation8], 4
      %s2852 = int_to_ptr.vmem [resolvable:$true] %s2851
      %2854 = dma.vmem_to_hbm [thread:$0]  %s2852, 32, %s15, [#allocation9]
    $region65: #{lenet_forward.1} parent=1 // pred_fallthru
      _
    // Predicated region
    $region66: #{lenet_forward.1} parent=1 // pred_check
      _
    $region67: #{lenet_forward.1} parent=1 // pred_check_branch
      %2856 = sbr.rel (0) target = $region69
    $region68: #{lenet_forward.1} parent=1 // pred_region
      %2857 = dma.done [#allocation9], 32
    $region69: #{lenet_forward.1} parent=1 // pred_fallthru
      _
    %2858 = vsyncpa [#allocation9], 1

</llo_original>
